<compile_context>
chip_gen: v7x
topology: tpu7x:2x2x1
jax: 0.10.0
libtpu: 0.0.40
codegen_flags: <defaults>
</compile_context>

<pallas_src>
import functools

import jax
import jax.numpy as jnp
from jax.experimental import pallas as pl
from jax.experimental.pallas import tpu as pltpu

# ----- constants from the reference module (forward-value glue only) -----
beta1, beta2, epsilon = 0.9, 0.98, 1e-09
d_model_ref = 512
step_num, warmup_step = 100, 4000
learning_rate = d_model_ref ** (-0.5) * min(step_num ** (-0.5),
                                            step_num * warmup_step ** (-1.5))
# TODO(synk): DataLoader batching, the Adam optimizer state, loss.backward()/optimizer.step()
#             and the infinite <EOS>-scan while-loop have no Pallas equivalent; only the
#             forward compute (encoder, two greedy T=1 decode steps, softmax + CE values) is
#             implemented, with the while-loop unrolled to a single extra decode step.


def _vmem_limit_bytes():
    # Per-generation VMEM budget: ~48 MiB on v7x (64 MiB physical),
    # ~96 MiB on v5e / v6e (128 MiB physical).
    cap = 64 * 1024 * 1024
    try:
        info = pltpu.get_tpu_info()
        cap = int(getattr(info, "vmem_capacity_bytes", 0) or cap)
    except Exception:
        pass
    return int((cap * 3) // 4)


VMEM_LIMIT = _vmem_limit_bytes()
VMEM_SPEC = pl.BlockSpec(memory_space=pltpu.MemorySpace.VMEM)


def _cparams(sem=None):
    return pltpu.CompilerParams(dimension_semantics=sem, vmem_limit_bytes=VMEM_LIMIT)


def _pick_tile(dim, target, quantum):
    """Largest tile <= target that divides dim (multiple of quantum), else full dim."""
    if dim <= target:
        return dim
    t = (target // quantum) * quantum
    while t >= quantum:
        if dim % t == 0:
            return t
        t -= quantum
    return dim


def _layernorm(x, g, b, eps=1e-6):
    """f32 LayerNorm over the last axis. g/b are (1, D)."""
    mu = jnp.mean(x, axis=-1, keepdims=True)
    var = jnp.mean((x - mu) ** 2, axis=-1, keepdims=True)
    return (x - mu) * jax.lax.rsqrt(var + eps) * g + b


# =========================================================================================
# Encoder kernel 1: fused QKV projection + self-attention + output projection + add + LN
# Grid over batch; weight BlockSpecs use a constant index map so they stay VMEM-resident
# (no per-step re-DMA).  QKV split happens inside the kernel (no host slicing).
# =========================================================================================

def _enc_attn_kernel(x_ref, wqkv_ref, bqkv_ref, wo_ref, bo_ref, g_ref, bn_ref, o_ref,
                     *, d_model):
    D = d_model
    x = x_ref[0]                                                    # (S, D) bf16
    scale = 1.0 / float(D) ** 0.5

    qkv = jnp.dot(x, wqkv_ref[...], preferred_element_type=jnp.float32) + bqkv_ref[...]
    # scale folded into q: one (S, D) VALU pass instead of the full (S, S) score pass
    q = (qkv[:, :D] * scale).astype(jnp.bfloat16)
    k = qkv[:, D:2 * D].astype(jnp.bfloat16)
    v = qkv[:, 2 * D:].astype(jnp.bfloat16)

    # TODO(synk): for long sequences this single-block softmax would be tiled (flash-style,
    #             online softmax over KV blocks); at S of this module it fits one block.
    s = jnp.einsum('qd,kd->qk', q, k, preferred_element_type=jnp.float32)
    m = jnp.max(s, axis=-1, keepdims=True)
    e = jnp.exp(s - m)
    p = (e / jnp.sum(e, axis=-1, keepdims=True)).astype(jnp.bfloat16)
    a = jnp.einsum('qk,kd->qd', p, v, preferred_element_type=jnp.float32).astype(jnp.bfloat16)

    o = jnp.dot(a, wo_ref[...], preferred_element_type=jnp.float32) + bo_ref[...]
    h = _layernorm(o + x.astype(jnp.float32), g_ref[...], bn_ref[...])
    o_ref[0] = h.astype(o_ref.dtype)


def encoder_attention_block(x_emb, wqkv, bqkv, wo, bo, g, bn):
    B, S, D = x_emb.shape
    kern = functools.partial(_enc_attn_kernel, d_model=D)
    return pl.pallas_call(
        kern,
        out_shape=jax.ShapeDtypeStruct((B, S, D), jnp.bfloat16),
        grid=(B,),
        in_specs=[
            pl.BlockSpec((1, S, D), lambda b: (b, 0, 0)),
            pl.BlockSpec((D, 3 * D), lambda b: (0, 0)),     # resident weights
            pl.BlockSpec((1, 3 * D), lambda b: (0, 0)),
            pl.BlockSpec((D, D), lambda b: (0, 0)),
            pl.BlockSpec((1, D), lambda b: (0, 0)),
            pl.BlockSpec((1, D), lambda b: (0, 0)),
            pl.BlockSpec((1, D), lambda b: (0, 0)),
        ],
        out_specs=pl.BlockSpec((1, S, D), lambda b: (b, 0, 0)),
        compiler_params=_cparams(("parallel",)),
    )(x_emb.astype(jnp.bfloat16), wqkv, bqkv, wo, bo, g, bn)


# =========================================================================================
# Encoder kernel 2: FFN (W1+ReLU, W2) + add + LN  fused with the decoder's cross-attention
# K/V projection of the encoder output (computed once, reused by every decode step).
# Two separate lane-dense outputs — no host slicing of the fused KV result.
# =========================================================================================

def _enc_ffn_kv_kernel(h_ref, w1_ref, b1_ref, w2_ref, b2_ref, g_ref, bn_ref,
                       wkv_ref, bkv_ref, k_ref, v_ref, *, d_model):
    D = d_model
    h = h_ref[...]                                                  # (tm, D) bf16
    f = jnp.dot(h, w1_ref[...], preferred_element_type=jnp.float32) + b1_ref[...]
    f = jnp.maximum(f, 0.0).astype(jnp.bfloat16)
    o = jnp.dot(f, w2_ref[...], preferred_element_type=jnp.float32) + b2_ref[...]
    enc = _layernorm(o + h.astype(jnp.float32), g_ref[...], bn_ref[...])
    kv = jnp.dot(enc.astype(jnp.bfloat16), wkv_ref[...],
                 preferred_element_type=jnp.float32) + bkv_ref[...]
    k_ref[...] = kv[:, :D].astype(k_ref.dtype)
    v_ref[...] = kv[:, D:].astype(v_ref.dtype)


def encoder_ffn_and_cross_kv(h2d, w1, b1, w2, b2, g, bn, wkv, bkv):
    M, D = h2d.shape
    DFF = w1.shape[1]
    tm = _pick_tile(M, 256, 16)                  # 16-row quantum for bf16 sublane packing
    kern = functools.partial(_enc_ffn_kv_kernel, d_model=D)
    k_out, v_out = pl.pallas_call(
        kern,
        out_shape=(jax.ShapeDtypeStruct((M, D), jnp.bfloat16),
                   jax.ShapeDtypeStruct((M, D), jnp.bfloat16)),
        grid=(M // tm,),
        in_specs=[
            pl.BlockSpec((tm, D), lambda i: (i, 0)),
            pl.BlockSpec((D, DFF), lambda i: (0, 0)),
            pl.BlockSpec((1, DFF), lambda i: (0, 0)),
            pl.BlockSpec((DFF, D), lambda i: (0, 0)),
            pl.BlockSpec((1, D), lambda i: (0, 0)),
            pl.BlockSpec((1, D), lambda i: (0, 0)),
            pl.BlockSpec((1, D), lambda i: (0, 0)),
            pl.BlockSpec((D, 2 * D), lambda i: (0, 0)),
            pl.BlockSpec((1, 2 * D), lambda i: (0, 0)),
        ],
        out_specs=(pl.BlockSpec((tm, D), lambda i: (i, 0)),
                   pl.BlockSpec((tm, D), lambda i: (i, 0))),
        compiler_params=_cparams(("parallel",)),
    )(h2d, w1, b1, w2, b2, g, bn, wkv, bkv)
    return k_out, v_out


# =========================================================================================
# Decoder: the ENTIRE T=1 greedy decode step as ONE gridless kernel.
#   self-attn (exact: softmax over own single position == 1 -> value projection only),
#   cross-attn to encoder K/V, FFN, three LayerNorms, output projection, and a fused
#   softmax / argmax-token / cross-entropy epilogue (logits read once).
# =========================================================================================

def _decoder_step_kernel(y_ref, ek_ref, ev_ref, tgt_ref,
                         wqkv_ref, bqkv_ref, wo_ref, bo_ref,
                         wcq_ref, bcq_ref, wco_ref, bco_ref,
                         w1_ref, b1_ref, w2_ref, b2_ref,
                         wout_ref, bout_ref,
                         g1_ref, bn1_ref, g2_ref, bn2_ref, g3_ref, bn3_ref,
                         probs_ref, nll_ref, tok_ref, *, d_model):
    D = d_model
    y32 = y_ref[...].astype(jnp.float32)                            # (B, D)
    yb = y_ref[...].astype(jnp.bfloat16)

    # --- masked self-attention at T=1: the causal softmax over the single own position is
    #     exactly 1, so the attention output equals the value projection of y. Only the
    #     V third of the fused QKV weight is loaded/used (no masked K/V DMA at all).
    v_self = (jnp.dot(yb, wqkv_ref[:, 2 * D:3 * D], preferred_element_type=jnp.float32)
              + bqkv_ref[:, 2 * D:3 * D]).astype(jnp.bfloat16)
    a = jnp.dot(v_self, wo_ref[...], preferred_element_type=jnp.float32) + bo_ref[...]
    h = _layernorm(a + y32, g1_ref[...], bn1_ref[...])

    # --- cross-attention to the (precomputed) encoder K/V; scale folded into q
    scale = 1.0 / float(D) ** 0.5
    cq = (jnp.dot(h.astype(jnp.bfloat16), wcq_ref[...],
                  preferred_element_type=jnp.float32) + bcq_ref[...]) * scale   # (B, D)
    ek = ek_ref[...].astype(jnp.float32)                            # (B, S, D)
    ev = ev_ref[...].astype(jnp.float32)
    s = jnp.sum(cq[:, None, :] * ek, axis=-1)                       # (B, S)
    m = jnp.max(s, axis=-1, keepdims=True)
    e = jnp.exp(s - m)
    p = e / jnp.sum(e, axis=-1, keepdims=True)
    c = jnp.sum(p[:, :, None] * ev, axis=1)                         # (B, D)
    c = jnp.dot(c.astype(jnp.bfloat16), wco_ref[...],
                preferred_element_type=jnp.float32) + bco_ref[...]
    h2 = _layernorm(c + h, g2_ref[...], bn2_ref[...])

    # --- feed-forward
    f = jnp.dot(h2.astype(jnp.bfloat16), w1_ref[...],
                preferred_element_type=jnp.float32) + b1_ref[...]
    f = jnp.maximum(f, 0.0).astype(jnp.bfloat16)
    o = jnp.dot(f, w2_ref[...], preferred_element_type=jnp.float32) + b2_ref[...]
    h3 = _layernorm(o + h2, g3_ref[...], bn3_ref[...])

    # --- output projection + fused softmax / greedy-argmax / cross-entropy (one pass)
    # TODO(synk): at production vocab sizes (e.g. 25000 padded to 25088) this epilogue
    #             would tile V with an online softmax; at the shapes used here it fits VMEM.
    logits = jnp.dot(h3.astype(jnp.bfloat16), wout_ref[...],
                     preferred_element_type=jnp.float32) + bout_ref[...]        # (B, V)
    lmax = jnp.max(logits, axis=-1, keepdims=True)
    ex = jnp.exp(logits - lmax)
    se = jnp.sum(ex, axis=-1, keepdims=True)
    probs_ref[...] = (ex / se).astype(probs_ref.dtype)
    lse = lmax + jnp.log(se)
    ids = jax.lax.broadcasted_iota(jnp.int32, logits.shape, 1)
    picked = jnp.sum(jnp.where(ids == tgt_ref[...], logits, 0.0), axis=-1, keepdims=True)
    nll_ref[...] = (lse - picked).astype(nll_ref.dtype)
    vocab = logits.shape[-1]
    tok_ref[...] = jnp.min(jnp.where(logits >= lmax, ids, vocab),
                           axis=-1, keepdims=True).astype(jnp.int32)


def decoder_step(y_emb, enc_k, enc_v, targets, p):
    B, D = y_emb.shape
    V = p['out_w'].shape[1]
    kern = functools.partial(_decoder_step_kernel, d_model=D)
    probs, nll, tok = pl.pallas_call(
        kern,
        out_shape=(jax.ShapeDtypeStruct((B, V), jnp.float32),
                   jax.ShapeDtypeStruct((B, 1), jnp.float32),
                   jax.ShapeDtypeStruct((B, 1), jnp.int32)),
        in_specs=[VMEM_SPEC] * 24,
        out_specs=(VMEM_SPEC, VMEM_SPEC, VMEM_SPEC),
        compiler_params=_cparams(),
    )(y_emb.astype(jnp.bfloat16), enc_k, enc_v,
      targets.reshape(B, 1).astype(jnp.int32),
      p['d_wqkv'], p['d_bqkv'], p['d_wo'], p['d_bo'],
      p['d_cwq'], p['d_cbq'], p['d_cwo'], p['d_cbo'],
      p['d_w1'], p['d_b1'], p['d_w2'], p['d_b2'],
      p['out_w'], p['out_b'],
      p['d_g1'], p['d_bn1'], p['d_g2'], p['d_bn2'], p['d_g3'], p['d_bn3'])
    return probs, nll, tok


# ------------------------- parameters / positional encoding -------------------------

def init_params(key, d_model, d_ff, vocab):
    # Channel dims are kept multiples of 128 so every kernel output is lane-dense
    # (unmasked vst); the reference d_model=512 / d_ff=2048 satisfy this naturally,
    # a real vocab (25000) would be padded to 25088.
    assert d_model % 128 == 0 and d_ff % 128 == 0 and vocab % 128 == 0
    ks = jax.random.split(key, 13)
    wn = lambda k, s: (0.02 * jax.random.normal(k, s)).astype(jnp.bfloat16)
    z = lambda n: jnp.zeros((1, n), jnp.float32)
    one = lambda n: jnp.ones((1, n), jnp.float32)
    return dict(
        embed=(0.02 * jax.random.normal(ks[0], (vocab, d_model))).astype(jnp.float32),
        # encoder (fused QKV)
        e_wqkv=wn(ks[1], (d_model, 3 * d_model)), e_bqkv=z(3 * d_model),
        e_wo=wn(ks[2], (d_model, d_model)), e_bo=z(d_model),
        e_w1=wn(ks[3], (d_model, d_ff)), e_b1=z(d_ff),
        e_w2=wn(ks[4], (d_ff, d_model)), e_b2=z(d_model),
        e_g1=one(d_model), e_bn1=z(d_model),
        e_g2=one(d_model), e_bn2=z(d_model),
        # decoder (fused self QKV, fused cross KV projected from encoder output once)
        d_wqkv=wn(ks[5], (d_model, 3 * d_model)), d_bqkv=z(3 * d_model),
        d_wo=wn(ks[6], (d_model, d_model)), d_bo=z(d_model),
        d_cwq=wn(ks[7], (d_model, d_model)), d_cbq=z(d_model),
        d_cwkv=wn(ks[8], (d_model, 2 * d_model)), d_cbkv=z(2 * d_model),
        d_cwo=wn(ks[9], (d_model, d_model)), d_cbo=z(d_model),
        d_w1=wn(ks[10], (d_model, d_ff)), d_b1=z(d_ff),
        d_w2=wn(ks[11], (d_ff, d_model)), d_b2=z(d_model),
        d_g1=one(d_model), d_bn1=z(d_model),
        d_g2=one(d_model), d_bn2=z(d_model),
        d_g3=one(d_model), d_bn3=z(d_model),
        out_w=wn(ks[12], (d_model, vocab)), out_b=z(vocab),
    )


def sinusoidal_pe(seq, d_model):
    pos = jnp.arange(seq)[:, None].astype(jnp.float32)
    i = jnp.arange(d_model)[None, :].astype(jnp.float32)
    angle = pos / jnp.power(10000.0, (2.0 * jnp.floor(i / 2.0)) / d_model)
    return jnp.where(jnp.arange(d_model)[None, :] % 2 == 0,
                     jnp.sin(angle), jnp.cos(angle)).astype(jnp.float32)


# ------------------------- model -------------------------

class Train:
    """Forward-pass analogue of the reference `train` module (one epoch, two decode steps)."""

    def __init__(self, params, vocab, sos_id=1):
        self.p = params
        self.vocab = vocab
        self.sos_id = sos_id

    def forward(self, x_ids, y_ids):
        p = self.p
        B, S = x_ids.shape
        D = p['embed'].shape[1]

        # embedding + positional encoding (host glue), bf16 activations
        x_emb = (jnp.take(p['embed'], x_ids, axis=0)
                 + sinusoidal_pe(S, D)[None]).astype(jnp.bfloat16)

        # ----- encoder: 2 fused kernels -----
        h_attn = encoder_attention_block(
            x_emb, p['e_wqkv'], p['e_bqkv'], p['e_wo'], p['e_bo'], p['e_g1'], p['e_bn1'])
        enc_k2d, enc_v2d = encoder_ffn_and_cross_kv(
            h_attn.reshape(B * S, D), p['e_w1'], p['e_b1'], p['e_w2'], p['e_b2'],
            p['e_g2'], p['e_bn2'], p['d_cwkv'], p['d_cbkv'])
        enc_k = enc_k2d.reshape(B, S, D)          # cross-attn K/V reused by both decode steps
        enc_v = enc_v2d.reshape(B, S, D)

        # ----- decode step 1: '<SOS>' -----
        start = jnp.full((B,), self.sos_id, jnp.int32)
        start_emb = jnp.take(p['embed'], start, axis=0)                      # (B, D)
        probs1, nll1, tok1 = decoder_step(start_emb, enc_k, enc_v, y_ids[:B], p)

        # ----- one unrolled step of the (otherwise infinite) greedy loop -----
        tok_emb = jnp.take(p['embed'], tok1[:, 0], axis=0)
        probs2, nll2, tok2 = decoder_step(tok_emb, enc_k, enc_v, y_ids[B:], p)

        loss_softmax = jnp.concatenate([probs1, probs2], axis=0)[:, None, :]  # (2B, 1, V)
        tokens = jnp.concatenate([tok1, tok2], axis=1)                        # (B, 2)
        # cross-entropy over the concatenated decode logits (per-row nll already computed
        # inside the fused decoder kernels; targets ordered [step-1 batch; step-2 batch])
        loss = jnp.mean(jnp.concatenate([nll1, nll2], axis=0))
        return loss, tokens, loss_softmax


# ------------------------- main -------------------------

if __name__ == "__main__":
    # Lane-dense toy dims (multiples of 128 channels, 16-row bf16 sequence tiles).
    B, S, D, DFF, V = 2, 16, 128, 256, 128

    key = jax.random.PRNGKey(0)
    kp, kx, ky = jax.random.split(key, 3)
    params = init_params(kp, D, DFF, V)
    x_ids = jax.random.randint(kx, (B, S), 0, V, dtype=jnp.int32)
    y_ids = jax.random.randint(ky, (2 * B,), 0, V, dtype=jnp.int32)  # targets for both steps

    model = Train(params, vocab=V)
    fwd = jax.jit(model.forward)
    loss, tokens, probs = fwd(x_ids, y_ids)
    jax.block_until_ready((loss, tokens, probs))

    assert probs.shape == (2 * B, 1, V)
    assert tokens.shape == (B, 2)
    assert bool(jnp.isfinite(loss))
    print("KERNEL_OK")
</pallas_src>

<mosaic_0001>
module attributes {stable_mosaic.version = 11 : i64} {
  func.func @_enc_ffn_kv_kernel(%arg0: i32, %arg1: memref<32x128xbf16, #tpu.memory_space<vmem>>, %arg2: memref<128x256xbf16, #tpu.memory_space<vmem>>, %arg3: memref<1x256xf32, #tpu.memory_space<vmem>>, %arg4: memref<256x128xbf16, #tpu.memory_space<vmem>>, %arg5: memref<1x128xf32, #tpu.memory_space<vmem>>, %arg6: memref<1x128xf32, #tpu.memory_space<vmem>>, %arg7: memref<1x128xf32, #tpu.memory_space<vmem>>, %arg8: memref<128x256xbf16, #tpu.memory_space<vmem>>, %arg9: memref<1x256xf32, #tpu.memory_space<vmem>>, %arg10: memref<32x128xbf16, #tpu.memory_space<vmem>>, %arg11: memref<32x128xbf16, #tpu.memory_space<vmem>>) attributes {dimension_semantics = [#tpu.dimension_semantics<parallel>], iteration_bounds = array<i64: 1>, scalar_prefetch = 0 : i64, scratch_operands = 0 : i64, tpu.core_type = #tpu.core_type<tc>, window_params = [{transform_indices = @transform_0, window_bounds = array<i64: 32, 128>}, {pipeline_mode = #tpu.pipeline_mode<synchronous>, transform_indices = @transform_1, window_bounds = array<i64: 128, 256>}, {pipeline_mode = #tpu.pipeline_mode<synchronous>, transform_indices = @transform_2, window_bounds = array<i64: 1, 256>}, {pipeline_mode = #tpu.pipeline_mode<synchronous>, transform_indices = @transform_3, window_bounds = array<i64: 256, 128>}, {pipeline_mode = #tpu.pipeline_mode<synchronous>, transform_indices = @transform_4, window_bounds = array<i64: 1, 128>}, {pipeline_mode = #tpu.pipeline_mode<synchronous>, transform_indices = @transform_5, window_bounds = array<i64: 1, 128>}, {pipeline_mode = #tpu.pipeline_mode<synchronous>, transform_indices = @transform_6, window_bounds = array<i64: 1, 128>}, {pipeline_mode = #tpu.pipeline_mode<synchronous>, transform_indices = @transform_7, window_bounds = array<i64: 128, 256>}, {pipeline_mode = #tpu.pipeline_mode<synchronous>, transform_indices = @transform_8, window_bounds = array<i64: 1, 256>}, {transform_indices = @transform_9, window_bounds = array<i64: 32, 128>}, {transform_indices = @transform_10, window_bounds = array<i64: 32, 128>}]} {
    %c0 = arith.constant 0 : index
    %c0_0 = arith.constant 0 : index
    %0 = vector.load %arg1[%c0, %c0_0] : memref<32x128xbf16, #tpu.memory_space<vmem>>, vector<32x128xbf16>
    %c0_1 = arith.constant 0 : index
    %c0_2 = arith.constant 0 : index
    %1 = vector.load %arg2[%c0_1, %c0_2] : memref<128x256xbf16, #tpu.memory_space<vmem>>, vector<128x256xbf16>
    %cst = arith.constant dense<0.000000e+00> : vector<32x256xf32>
    %2 = tpu.matmul %0, %1, %cst {dimension_numbers = #tpu.dot_dimension_numbers<[1], [0], [0], [1], [0, 0, 1, 1], [], []>} : vector<32x128xbf16>, vector<128x256xbf16>, vector<32x256xf32> -> vector<32x256xf32>
    %c0_3 = arith.constant 0 : index
    %c0_4 = arith.constant 0 : index
    %3 = vector.load %arg3[%c0_3, %c0_4] : memref<1x256xf32, #tpu.memory_space<vmem>>, vector<1x256xf32>
    %4 = vector.broadcast %3 : vector<1x256xf32> to vector<32x256xf32>
    %5 = arith.addf %2, %4 : vector<32x256xf32>
    %cst_5 = arith.constant 0.000000e+00 : f32
    %6 = vector.broadcast %cst_5 : f32 to vector<32x256xf32>
    %7 = arith.maximumf %5, %6 : vector<32x256xf32>
    %8 = arith.truncf %7 : vector<32x256xf32> to vector<32x256xbf16>
    %c0_6 = arith.constant 0 : index
    %c0_7 = arith.constant 0 : index
    %9 = vector.load %arg4[%c0_6, %c0_7] : memref<256x128xbf16, #tpu.memory_space<vmem>>, vector<256x128xbf16>
    %cst_8 = arith.constant dense<0.000000e+00> : vector<32x128xf32>
    %10 = tpu.matmul %8, %9, %cst_8 {dimension_numbers = #tpu.dot_dimension_numbers<[1], [0], [0], [1], [0, 0, 1, 1], [], []>} : vector<32x256xbf16>, vector<256x128xbf16>, vector<32x128xf32> -> vector<32x128xf32>
    %c0_9 = arith.constant 0 : index
    %c0_10 = arith.constant 0 : index
    %11 = vector.load %arg5[%c0_9, %c0_10] : memref<1x128xf32, #tpu.memory_space<vmem>>, vector<1x128xf32>
    %12 = vector.broadcast %11 : vector<1x128xf32> to vector<32x128xf32>
    %13 = arith.addf %10, %12 : vector<32x128xf32>
    %14 = arith.extf %0 : vector<32x128xbf16> to vector<32x128xf32>
    %15 = arith.addf %13, %14 : vector<32x128xf32>
    %c0_11 = arith.constant 0 : index
    %c0_12 = arith.constant 0 : index
    %16 = vector.load %arg6[%c0_11, %c0_12] : memref<1x128xf32, #tpu.memory_space<vmem>>, vector<1x128xf32>
    %c0_13 = arith.constant 0 : index
    %c0_14 = arith.constant 0 : index
    %17 = vector.load %arg7[%c0_13, %c0_14] : memref<1x128xf32, #tpu.memory_space<vmem>>, vector<1x128xf32>
    %cst_15 = arith.constant dense<0.000000e+00> : vector<32xf32>
    %18 = vector.multi_reduction <add>, %15, %cst_15 [1] : vector<32x128xf32> to vector<32xf32>
    %19 = vector.shape_cast %18 : vector<32xf32> to vector<32x1xf32>
    %cst_16 = arith.constant 1.280000e+02 : f32
    %20 = vector.broadcast %cst_16 : f32 to vector<32x1xf32>
    %21 = arith.divf %19, %20 : vector<32x1xf32>
    %22 = vector.broadcast %21 : vector<32x1xf32> to vector<32x128xf32>
    %23 = arith.subf %15, %22 : vector<32x128xf32>
    %24 = arith.mulf %23, %23 : vector<32x128xf32>
    %cst_17 = arith.constant dense<0.000000e+00> : vector<32xf32>
    %25 = vector.multi_reduction <add>, %24, %cst_17 [1] : vector<32x128xf32> to vector<32xf32>
    %26 = vector.shape_cast %25 : vector<32xf32> to vector<32x1xf32>
    %cst_18 = arith.constant 1.280000e+02 : f32
    %27 = vector.broadcast %cst_18 : f32 to vector<32x1xf32>
    %28 = arith.divf %26, %27 : vector<32x1xf32>
    %29 = vector.broadcast %21 : vector<32x1xf32> to vector<32x128xf32>
    %30 = arith.subf %15, %29 : vector<32x128xf32>
    %cst_19 = arith.constant 9.99999997E-7 : f32
    %31 = vector.broadcast %cst_19 : f32 to vector<32x1xf32>
    %32 = arith.addf %28, %31 : vector<32x1xf32>
    %33 = math.rsqrt %32 : vector<32x1xf32>
    %34 = vector.broadcast %33 : vector<32x1xf32> to vector<32x128xf32>
    %35 = arith.mulf %30, %34 : vector<32x128xf32>
    %36 = vector.broadcast %16 : vector<1x128xf32> to vector<32x128xf32>
    %37 = arith.mulf %35, %36 : vector<32x128xf32>
    %38 = vector.broadcast %17 : vector<1x128xf32> to vector<32x128xf32>
    %39 = arith.addf %37, %38 : vector<32x128xf32>
    %40 = arith.truncf %39 : vector<32x128xf32> to vector<32x128xbf16>
    %c0_20 = arith.constant 0 : index
    %c0_21 = arith.constant 0 : index
    %41 = vector.load %arg8[%c0_20, %c0_21] : memref<128x256xbf16, #tpu.memory_space<vmem>>, vector<128x256xbf16>
    %cst_22 = arith.constant dense<0.000000e+00> : vector<32x256xf32>
    %42 = tpu.matmul %40, %41, %cst_22 {dimension_numbers = #tpu.dot_dimension_numbers<[1], [0], [0], [1], [0, 0, 1, 1], [], []>} : vector<32x128xbf16>, vector<128x256xbf16>, vector<32x256xf32> -> vector<32x256xf32>
    %c0_23 = arith.constant 0 : index
    %c0_24 = arith.constant 0 : index
    %43 = vector.load %arg9[%c0_23, %c0_24] : memref<1x256xf32, #tpu.memory_space<vmem>>, vector<1x256xf32>
    %44 = vector.broadcast %43 : vector<1x256xf32> to vector<32x256xf32>
    %45 = arith.addf %42, %44 : vector<32x256xf32>
    %46 = vector.extract_strided_slice %45 {offsets = [0, 0], sizes = [32, 128], strides = [1, 1]} : vector<32x256xf32> to vector<32x128xf32>
    %47 = arith.truncf %46 : vector<32x128xf32> to vector<32x128xbf16>
    %c0_25 = arith.constant 0 : index
    %c0_26 = arith.constant 0 : index
    %48 = vector.load %arg10[%c0_25, %c0_26] : memref<32x128xbf16, #tpu.memory_space<vmem>>, vector<32x128xbf16>
    tpu.vector_store %arg10[%c0_25, %c0_26], %47 {strides = array<i32>} : memref<32x128xbf16, #tpu.memory_space<vmem>>, vector<32x128xbf16>,
    %49 = vector.extract_strided_slice %45 {offsets = [0, 128], sizes = [32, 128], strides = [1, 1]} : vector<32x256xf32> to vector<32x128xf32>
    %50 = arith.truncf %49 : vector<32x128xf32> to vector<32x128xbf16>
    %c0_27 = arith.constant 0 : index
    %c0_28 = arith.constant 0 : index
    %51 = vector.load %arg11[%c0_27, %c0_28] : memref<32x128xbf16, #tpu.memory_space<vmem>>, vector<32x128xbf16>
    tpu.vector_store %arg11[%c0_27, %c0_28], %50 {strides = array<i32>} : memref<32x128xbf16, #tpu.memory_space<vmem>>, vector<32x128xbf16>,
    return
  }
  func.func @transform_0(%arg0: i32) -> (i32, i32) {
    %c0_i32 = arith.constant 0 : i32
    %c0_i32_0 = arith.constant 0 : i32
    return %arg0, %c0_i32 : i32, i32
  }
  func.func @transform_1(%arg0: i32) -> (i32, i32) {
    %c0_i32 = arith.constant 0 : i32
    %c0_i32_0 = arith.constant 0 : i32
    %c0_i32_1 = arith.constant 0 : i32
    return %c0_i32, %c0_i32_0 : i32, i32
  }
  func.func @transform_2(%arg0: i32) -> (i32, i32) {
    %c0_i32 = arith.constant 0 : i32
    %c0_i32_0 = arith.constant 0 : i32
    %c0_i32_1 = arith.constant 0 : i32
    return %c0_i32, %c0_i32_0 : i32, i32
  }
  func.func @transform_3(%arg0: i32) -> (i32, i32) {
    %c0_i32 = arith.constant 0 : i32
    %c0_i32_0 = arith.constant 0 : i32
    %c0_i32_1 = arith.constant 0 : i32
    return %c0_i32, %c0_i32_0 : i32, i32
  }
  func.func @transform_4(%arg0: i32) -> (i32, i32) {
    %c0_i32 = arith.constant 0 : i32
    %c0_i32_0 = arith.constant 0 : i32
    %c0_i32_1 = arith.constant 0 : i32
    return %c0_i32, %c0_i32_0 : i32, i32
  }
  func.func @transform_5(%arg0: i32) -> (i32, i32) {
    %c0_i32 = arith.constant 0 : i32
    %c0_i32_0 = arith.constant 0 : i32
    %c0_i32_1 = arith.constant 0 : i32
    return %c0_i32, %c0_i32_0 : i32, i32
  }
  func.func @transform_6(%arg0: i32) -> (i32, i32) {
    %c0_i32 = arith.constant 0 : i32
    %c0_i32_0 = arith.constant 0 : i32
    %c0_i32_1 = arith.constant 0 : i32
    return %c0_i32, %c0_i32_0 : i32, i32
  }
  func.func @transform_7(%arg0: i32) -> (i32, i32) {
    %c0_i32 = arith.constant 0 : i32
    %c0_i32_0 = arith.constant 0 : i32
    %c0_i32_1 = arith.constant 0 : i32
    return %c0_i32, %c0_i32_0 : i32, i32
  }
  func.func @transform_8(%arg0: i32) -> (i32, i32) {
    %c0_i32 = arith.constant 0 : i32
    %c0_i32_0 = arith.constant 0 : i32
    %c0_i32_1 = arith.constant 0 : i32
    return %c0_i32, %c0_i32_0 : i32, i32
  }
  func.func @transform_9(%arg0: i32) -> (i32, i32) {
    %c0_i32 = arith.constant 0 : i32
    %c0_i32_0 = arith.constant 0 : i32
    return %arg0, %c0_i32 : i32, i32
  }
  func.func @transform_10(%arg0: i32) -> (i32, i32) {
    %c0_i32 = arith.constant 0 : i32
    %c0_i32_0 = arith.constant 0 : i32
    return %arg0, %c0_i32 : i32, i32
  }
}

module attributes {stable_mosaic.version = 11 : i64} {
  func.func @_enc_attn_kernel(%arg0: i32, %arg1: memref<1x16x128xbf16, #tpu.memory_space<vmem>>, %arg2: memref<128x384xbf16, #tpu.memory_space<vmem>>, %arg3: memref<1x384xf32, #tpu.memory_space<vmem>>, %arg4: memref<128x128xbf16, #tpu.memory_space<vmem>>, %arg5: memref<1x128xf32, #tpu.memory_space<vmem>>, %arg6: memref<1x128xf32, #tpu.memory_space<vmem>>, %arg7: memref<1x128xf32, #tpu.memory_space<vmem>>, %arg8: memref<1x16x128xbf16, #tpu.memory_space<vmem>>) attributes {dimension_semantics = [#tpu.dimension_semantics<parallel>], iteration_bounds = array<i64: 2>, scalar_prefetch = 0 : i64, scratch_operands = 0 : i64, tpu.core_type = #tpu.core_type<tc>, window_params = [{transform_indices = @transform_0, window_bounds = array<i64: 1, 16, 128>}, {pipeline_mode = #tpu.pipeline_mode<synchronous>, transform_indices = @transform_1, window_bounds = array<i64: 128, 384>}, {pipeline_mode = #tpu.pipeline_mode<synchronous>, transform_indices = @transform_2, window_bounds = array<i64: 1, 384>}, {pipeline_mode = #tpu.pipeline_mode<synchronous>, transform_indices = @transform_3, window_bounds = array<i64: 128, 128>}, {pipeline_mode = #tpu.pipeline_mode<synchronous>, transform_indices = @transform_4, window_bounds = array<i64: 1, 128>}, {pipeline_mode = #tpu.pipeline_mode<synchronous>, transform_indices = @transform_5, window_bounds = array<i64: 1, 128>}, {pipeline_mode = #tpu.pipeline_mode<synchronous>, transform_indices = @transform_6, window_bounds = array<i64: 1, 128>}, {transform_indices = @transform_7, window_bounds = array<i64: 1, 16, 128>}]} {
    %c0 = arith.constant 0 : index
    %c0_0 = arith.constant 0 : index
    %c0_1 = arith.constant 0 : index
    %0 = vector.load %arg1[%c0, %c0_0, %c0_1] : memref<1x16x128xbf16, #tpu.memory_space<vmem>>, vector<1x16x128xbf16>
    %1 = vector.shape_cast %0 : vector<1x16x128xbf16> to vector<16x128xbf16>
    %c0_2 = arith.constant 0 : index
    %c0_3 = arith.constant 0 : index
    %2 = vector.load %arg2[%c0_2, %c0_3] : memref<128x384xbf16, #tpu.memory_space<vmem>>, vector<128x384xbf16>
    %cst = arith.constant dense<0.000000e+00> : vector<16x384xf32>
    %3 = tpu.matmul %1, %2, %cst {dimension_numbers = #tpu.dot_dimension_numbers<[1], [0], [0], [1], [0, 0, 1, 1], [], []>} : vector<16x128xbf16>, vector<128x384xbf16>, vector<16x384xf32> -> vector<16x384xf32>
    %c0_4 = arith.constant 0 : index
    %c0_5 = arith.constant 0 : index
    %4 = vector.load %arg3[%c0_4, %c0_5] : memref<1x384xf32, #tpu.memory_space<vmem>>, vector<1x384xf32>
    %5 = vector.broadcast %4 : vector<1x384xf32> to vector<16x384xf32>
    %6 = arith.addf %3, %5 : vector<16x384xf32>
    %7 = vector.extract_strided_slice %6 {offsets = [0, 0], sizes = [16, 128], strides = [1, 1]} : vector<16x384xf32> to vector<16x128xf32>
    %cst_6 = arith.constant 0.0883883461 : f32
    %8 = vector.broadcast %cst_6 : f32 to vector<16x128xf32>
    %9 = arith.mulf %7, %8 : vector<16x128xf32>
    %10 = arith.truncf %9 : vector<16x128xf32> to vector<16x128xbf16>
    %11 = vector.extract_strided_slice %6 {offsets = [0, 128], sizes = [16, 128], strides = [1, 1]} : vector<16x384xf32> to vector<16x128xf32>
    %12 = arith.truncf %11 : vector<16x128xf32> to vector<16x128xbf16>
    %13 = vector.extract_strided_slice %6 {offsets = [0, 256], sizes = [16, 128], strides = [1, 1]} : vector<16x384xf32> to vector<16x128xf32>
    %14 = arith.truncf %13 : vector<16x128xf32> to vector<16x128xbf16>
    "tpu.trace_start"() <{level = 10 : i32, message = "qd,kd->qk"}> : () -> ()
    %cst_7 = arith.constant dense<0.000000e+00> : vector<16x16xf32>
    %15 = tpu.matmul %10, %12, %cst_7 {dimension_numbers = #tpu.dot_dimension_numbers<[1], [1], [0], [0], [0, 0, 1, 0], [], []>} : vector<16x128xbf16>, vector<16x128xbf16>, vector<16x16xf32> -> vector<16x16xf32>
    "tpu.trace_stop"() : () -> ()
    %cst_8 = arith.constant dense<0xFF800000> : vector<16xf32>
    %16 = vector.multi_reduction <maximumf>, %15, %cst_8 [1] : vector<16x16xf32> to vector<16xf32>
    %17 = vector.shape_cast %16 : vector<16xf32> to vector<16x1xf32>
    %18 = vector.broadcast %17 : vector<16x1xf32> to vector<16x16xf32>
    %19 = arith.subf %15, %18 : vector<16x16xf32>
    %20 = math.exp %19 : vector<16x16xf32>
    %cst_9 = arith.constant dense<0.000000e+00> : vector<16xf32>
    %21 = vector.multi_reduction <add>, %20, %cst_9 [1] : vector<16x16xf32> to vector<16xf32>
    %22 = vector.shape_cast %21 : vector<16xf32> to vector<16x1xf32>
    %23 = vector.broadcast %22 : vector<16x1xf32> to vector<16x16xf32>
    %24 = arith.divf %20, %23 : vector<16x16xf32>
    %25 = arith.truncf %24 : vector<16x16xf32> to vector<16x16xbf16>
    "tpu.trace_start"() <{level = 10 : i32, message = "qk,kd->qd"}> : () -> ()
    %cst_10 = arith.constant dense<0.000000e+00> : vector<16x128xf32>
    %26 = tpu.matmul %25, %14, %cst_10 {dimension_numbers = #tpu.dot_dimension_numbers<[1], [0], [0], [1], [0, 0, 1, 1], [], []>} : vector<16x16xbf16>, vector<16x128xbf16>, vector<16x128xf32> -> vector<16x128xf32>
    "tpu.trace_stop"() : () -> ()
    %27 = arith.truncf %26 : vector<16x128xf32> to vector<16x128xbf16>
    %c0_11 = arith.constant 0 : index
    %c0_12 = arith.constant 0 : index
    %28 = vector.load %arg4[%c0_11, %c0_12] : memref<128x128xbf16, #tpu.memory_space<vmem>>, vector<128x128xbf16>
    %cst_13 = arith.constant dense<0.000000e+00> : vector<16x128xf32>
    %29 = tpu.matmul %27, %28, %cst_13 {dimension_numbers = #tpu.dot_dimension_numbers<[1], [0], [0], [1], [0, 0, 1, 1], [], []>} : vector<16x128xbf16>, vector<128x128xbf16>, vector<16x128xf32> -> vector<16x128xf32>
    %c0_14 = arith.constant 0 : index
    %c0_15 = arith.constant 0 : index
    %30 = vector.load %arg5[%c0_14, %c0_15] : memref<1x128xf32, #tpu.memory_space<vmem>>, vector<1x128xf32>
    %31 = vector.broadcast %30 : vector<1x128xf32> to vector<16x128xf32>
    %32 = arith.addf %29, %31 : vector<16x128xf32>
    %33 = arith.extf %1 : vector<16x128xbf16> to vector<16x128xf32>
    %34 = arith.addf %32, %33 : vector<16x128xf32>
    %c0_16 = arith.constant 0 : index
    %c0_17 = arith.constant 0 : index
    %35 = vector.load %arg6[%c0_16, %c0_17] : memref<1x128xf32, #tpu.memory_space<vmem>>, vector<1x128xf32>
    %c0_18 = arith.constant 0 : index
    %c0_19 = arith.constant 0 : index
    %36 = vector.load %arg7[%c0_18, %c0_19] : memref<1x128xf32, #tpu.memory_space<vmem>>, vector<1x128xf32>
    %cst_20 = arith.constant dense<0.000000e+00> : vector<16xf32>
    %37 = vector.multi_reduction <add>, %34, %cst_20 [1] : vector<16x128xf32> to vector<16xf32>
    %38 = vector.shape_cast %37 : vector<16xf32> to vector<16x1xf32>
    %cst_21 = arith.constant 1.280000e+02 : f32
    %39 = vector.broadcast %cst_21 : f32 to vector<16x1xf32>
    %40 = arith.divf %38, %39 : vector<16x1xf32>
    %41 = vector.broadcast %40 : vector<16x1xf32> to vector<16x128xf32>
    %42 = arith.subf %34, %41 : vector<16x128xf32>
    %43 = arith.mulf %42, %42 : vector<16x128xf32>
    %cst_22 = arith.constant dense<0.000000e+00> : vector<16xf32>
    %44 = vector.multi_reduction <add>, %43, %cst_22 [1] : vector<16x128xf32> to vector<16xf32>
    %45 = vector.shape_cast %44 : vector<16xf32> to vector<16x1xf32>
    %cst_23 = arith.constant 1.280000e+02 : f32
    %46 = vector.broadcast %cst_23 : f32 to vector<16x1xf32>
    %47 = arith.divf %45, %46 : vector<16x1xf32>
    %48 = vector.broadcast %40 : vector<16x1xf32> to vector<16x128xf32>
    %49 = arith.subf %34, %48 : vector<16x128xf32>
    %cst_24 = arith.constant 9.99999997E-7 : f32
    %50 = vector.broadcast %cst_24 : f32 to vector<16x1xf32>
    %51 = arith.addf %47, %50 : vector<16x1xf32>
    %52 = math.rsqrt %51 : vector<16x1xf32>
    %53 = vector.broadcast %52 : vector<16x1xf32> to vector<16x128xf32>
    %54 = arith.mulf %49, %53 : vector<16x128xf32>
    %55 = vector.broadcast %35 : vector<1x128xf32> to vector<16x128xf32>
    %56 = arith.mulf %54, %55 : vector<16x128xf32>
    %57 = vector.broadcast %36 : vector<1x128xf32> to vector<16x128xf32>
    %58 = arith.addf %56, %57 : vector<16x128xf32>
    %59 = arith.truncf %58 : vector<16x128xf32> to vector<16x128xbf16>
    %c0_25 = arith.constant 0 : index
    %c0_26 = arith.constant 0 : index
    %c0_27 = arith.constant 0 : index
    %60 = vector.load %arg8[%c0_25, %c0_26, %c0_27] : memref<1x16x128xbf16, #tpu.memory_space<vmem>>, vector<1x16x128xbf16>
    %61 = vector.shape_cast %60 : vector<1x16x128xbf16> to vector<16x128xbf16>
    %62 = vector.shape_cast %59 : vector<16x128xbf16> to vector<1x16x128xbf16>
    tpu.vector_store %arg8[%c0_25, %c0_26, %c0_27], %62 {strides = array<i32>} : memref<1x16x128xbf16, #tpu.memory_space<vmem>>, vector<1x16x128xbf16>,
    return
  }
  func.func @transform_0(%arg0: i32) -> (i32, i32, i32) {
    %c0_i32 = arith.constant 0 : i32
    %c0_i32_0 = arith.constant 0 : i32
    %c0_i32_1 = arith.constant 0 : i32
    return %arg0, %c0_i32, %c0_i32_0 : i32, i32, i32
  }
  func.func @transform_1(%arg0: i32) -> (i32, i32) {
    %c0_i32 = arith.constant 0 : i32
    %c0_i32_0 = arith.constant 0 : i32
    %c0_i32_1 = arith.constant 0 : i32
    return %c0_i32, %c0_i32_0 : i32, i32
  }
  func.func @transform_2(%arg0: i32) -> (i32, i32) {
    %c0_i32 = arith.constant 0 : i32
    %c0_i32_0 = arith.constant 0 : i32
    %c0_i32_1 = arith.constant 0 : i32
    return %c0_i32, %c0_i32_0 : i32, i32
  }
  func.func @transform_3(%arg0: i32) -> (i32, i32) {
    %c0_i32 = arith.constant 0 : i32
    %c0_i32_0 = arith.constant 0 : i32
    %c0_i32_1 = arith.constant 0 : i32
    return %c0_i32, %c0_i32_0 : i32, i32
  }
  func.func @transform_4(%arg0: i32) -> (i32, i32) {
    %c0_i32 = arith.constant 0 : i32
    %c0_i32_0 = arith.constant 0 : i32
    %c0_i32_1 = arith.constant 0 : i32
    return %c0_i32, %c0_i32_0 : i32, i32
  }
  func.func @transform_5(%arg0: i32) -> (i32, i32) {
    %c0_i32 = arith.constant 0 : i32
    %c0_i32_0 = arith.constant 0 : i32
    %c0_i32_1 = arith.constant 0 : i32
    return %c0_i32, %c0_i32_0 : i32, i32
  }
  func.func @transform_6(%arg0: i32) -> (i32, i32) {
    %c0_i32 = arith.constant 0 : i32
    %c0_i32_0 = arith.constant 0 : i32
    %c0_i32_1 = arith.constant 0 : i32
    return %c0_i32, %c0_i32_0 : i32, i32
  }
  func.func @transform_7(%arg0: i32) -> (i32, i32, i32) {
    %c0_i32 = arith.constant 0 : i32
    %c0_i32_0 = arith.constant 0 : i32
    %c0_i32_1 = arith.constant 0 : i32
    return %arg0, %c0_i32, %c0_i32_0 : i32, i32, i32
  }
}

module attributes {stable_mosaic.version = 11 : i64} {
  func.func @_decoder_step_kernel(%arg0: memref<2x128xbf16, #tpu.memory_space<vmem>>, %arg1: memref<2x16x128xbf16, #tpu.memory_space<vmem>>, %arg2: memref<2x16x128xbf16, #tpu.memory_space<vmem>>, %arg3: memref<2x1xi32, #tpu.memory_space<vmem>>, %arg4: memref<128x384xbf16, #tpu.memory_space<vmem>>, %arg5: memref<1x384xf32, #tpu.memory_space<vmem>>, %arg6: memref<128x128xbf16, #tpu.memory_space<vmem>>, %arg7: memref<1x128xf32, #tpu.memory_space<vmem>>, %arg8: memref<128x128xbf16, #tpu.memory_space<vmem>>, %arg9: memref<1x128xf32, #tpu.memory_space<vmem>>, %arg10: memref<128x128xbf16, #tpu.memory_space<vmem>>, %arg11: memref<1x128xf32, #tpu.memory_space<vmem>>, %arg12: memref<128x256xbf16, #tpu.memory_space<vmem>>, %arg13: memref<1x256xf32, #tpu.memory_space<vmem>>, %arg14: memref<256x128xbf16, #tpu.memory_space<vmem>>, %arg15: memref<1x128xf32, #tpu.memory_space<vmem>>, %arg16: memref<128x128xbf16, #tpu.memory_space<vmem>>, %arg17: memref<1x128xf32, #tpu.memory_space<vmem>>, %arg18: memref<1x128xf32, #tpu.memory_space<vmem>>, %arg19: memref<1x128xf32, #tpu.memory_space<vmem>>, %arg20: memref<1x128xf32, #tpu.memory_space<vmem>>, %arg21: memref<1x128xf32, #tpu.memory_space<vmem>>, %arg22: memref<1x128xf32, #tpu.memory_space<vmem>>, %arg23: memref<1x128xf32, #tpu.memory_space<vmem>>, %arg24: memref<2x128xf32, #tpu.memory_space<vmem>>, %arg25: memref<2x1xf32, #tpu.memory_space<vmem>>, %arg26: memref<2x1xi32, #tpu.memory_space<vmem>>) attributes {dimension_semantics = [], scalar_prefetch = 0 : i64, scratch_operands = 0 : i64, tpu.core_type = #tpu.core_type<tc>} {
    %c0 = arith.constant 0 : index
    %c0_0 = arith.constant 0 : index
    %0 = vector.load %arg0[%c0, %c0_0] : memref<2x128xbf16, #tpu.memory_space<vmem>>, vector<2x128xbf16>
    %1 = arith.extf %0 : vector<2x128xbf16> to vector<2x128xf32>
    %c0_1 = arith.constant 0 : index
    %c0_2 = arith.constant 0 : index
    %2 = vector.load %arg0[%c0_1, %c0_2] : memref<2x128xbf16, #tpu.memory_space<vmem>>, vector<2x128xbf16>
    %c0_3 = arith.constant 0 : index
    %c256 = arith.constant 256 : index
    %3 = vector.load %arg4[%c0_3, %c256] : memref<128x384xbf16, #tpu.memory_space<vmem>>, vector<128x128xbf16>
    %cst = arith.constant dense<0.000000e+00> : vector<2x128xf32>
    %4 = tpu.matmul %2, %3, %cst {dimension_numbers = #tpu.dot_dimension_numbers<[1], [0], [0], [1], [0, 0, 1, 1], [], []>} : vector<2x128xbf16>, vector<128x128xbf16>, vector<2x128xf32> -> vector<2x128xf32>
    %c0_4 = arith.constant 0 : index
    %c256_5 = arith.constant 256 : index
    %5 = vector.load %arg5[%c0_4, %c256_5] : memref<1x384xf32, #tpu.memory_space<vmem>>, vector<1x128xf32>
    %6 = vector.broadcast %5 : vector<1x128xf32> to vector<2x128xf32>
    %7 = arith.addf %4, %6 : vector<2x128xf32>
    %8 = arith.truncf %7 : vector<2x128xf32> to vector<2x128xbf16>
    %c0_6 = arith.constant 0 : index
    %c0_7 = arith.constant 0 : index
    %9 = vector.load %arg6[%c0_6, %c0_7] : memref<128x128xbf16, #tpu.memory_space<vmem>>, vector<128x128xbf16>
    %cst_8 = arith.constant dense<0.000000e+00> : vector<2x128xf32>
    %10 = tpu.matmul %8, %9, %cst_8 {dimension_numbers = #tpu.dot_dimension_numbers<[1], [0], [0], [1], [0, 0, 1, 1], [], []>} : vector<2x128xbf16>, vector<128x128xbf16>, vector<2x128xf32> -> vector<2x128xf32>
    %c0_9 = arith.constant 0 : index
    %c0_10 = arith.constant 0 : index
    %11 = vector.load %arg7[%c0_9, %c0_10] : memref<1x128xf32, #tpu.memory_space<vmem>>, vector<1x128xf32>
    %12 = vector.broadcast %11 : vector<1x128xf32> to vector<2x128xf32>
    %13 = arith.addf %10, %12 : vector<2x128xf32>
    %14 = arith.addf %13, %1 : vector<2x128xf32>
    %c0_11 = arith.constant 0 : index
    %c0_12 = arith.constant 0 : index
    %15 = vector.load %arg18[%c0_11, %c0_12] : memref<1x128xf32, #tpu.memory_space<vmem>>, vector<1x128xf32>
    %c0_13 = arith.constant 0 : index
    %c0_14 = arith.constant 0 : index
    %16 = vector.load %arg19[%c0_13, %c0_14] : memref<1x128xf32, #tpu.memory_space<vmem>>, vector<1x128xf32>
    %cst_15 = arith.constant dense<0.000000e+00> : vector<2xf32>
    %17 = vector.multi_reduction <add>, %14, %cst_15 [1] : vector<2x128xf32> to vector<2xf32>
    %18 = vector.shape_cast %17 : vector<2xf32> to vector<2x1xf32>
    %cst_16 = arith.constant 1.280000e+02 : f32
    %19 = vector.broadcast %cst_16 : f32 to vector<2x1xf32>
    %20 = arith.divf %18, %19 : vector<2x1xf32>
    %21 = vector.broadcast %20 : vector<2x1xf32> to vector<2x128xf32>
    %22 = arith.subf %14, %21 : vector<2x128xf32>
    %23 = arith.mulf %22, %22 : vector<2x128xf32>
    %cst_17 = arith.constant dense<0.000000e+00> : vector<2xf32>
    %24 = vector.multi_reduction <add>, %23, %cst_17 [1] : vector<2x128xf32> to vector<2xf32>
    %25 = vector.shape_cast %24 : vector<2xf32> to vector<2x1xf32>
    %cst_18 = arith.constant 1.280000e+02 : f32
    %26 = vector.broadcast %cst_18 : f32 to vector<2x1xf32>
    %27 = arith.divf %25, %26 : vector<2x1xf32>
    %28 = vector.broadcast %20 : vector<2x1xf32> to vector<2x128xf32>
    %29 = arith.subf %14, %28 : vector<2x128xf32>
    %cst_19 = arith.constant 9.99999997E-7 : f32
    %30 = vector.broadcast %cst_19 : f32 to vector<2x1xf32>
    %31 = arith.addf %27, %30 : vector<2x1xf32>
    %32 = math.rsqrt %31 : vector<2x1xf32>
    %33 = vector.broadcast %32 : vector<2x1xf32> to vector<2x128xf32>
    %34 = arith.mulf %29, %33 : vector<2x128xf32>
    %35 = vector.broadcast %15 : vector<1x128xf32> to vector<2x128xf32>
    %36 = arith.mulf %34, %35 : vector<2x128xf32>
    %37 = vector.broadcast %16 : vector<1x128xf32> to vector<2x128xf32>
    %38 = arith.addf %36, %37 : vector<2x128xf32>
    %39 = arith.truncf %38 : vector<2x128xf32> to vector<2x128xbf16>
    %c0_20 = arith.constant 0 : index
    %c0_21 = arith.constant 0 : index
    %40 = vector.load %arg8[%c0_20, %c0_21] : memref<128x128xbf16, #tpu.memory_space<vmem>>, vector<128x128xbf16>
    %cst_22 = arith.constant dense<0.000000e+00> : vector<2x128xf32>
    %41 = tpu.matmul %39, %40, %cst_22 {dimension_numbers = #tpu.dot_dimension_numbers<[1], [0], [0], [1], [0, 0, 1, 1], [], []>} : vector<2x128xbf16>, vector<128x128xbf16>, vector<2x128xf32> -> vector<2x128xf32>
    %c0_23 = arith.constant 0 : index
    %c0_24 = arith.constant 0 : index
    %42 = vector.load %arg9[%c0_23, %c0_24] : memref<1x128xf32, #tpu.memory_space<vmem>>, vector<1x128xf32>
    %43 = vector.broadcast %42 : vector<1x128xf32> to vector<2x128xf32>
    %44 = arith.addf %41, %43 : vector<2x128xf32>
    %cst_25 = arith.constant 0.0883883461 : f32
    %45 = vector.broadcast %cst_25 : f32 to vector<2x128xf32>
    %46 = arith.mulf %44, %45 : vector<2x128xf32>
    %c0_26 = arith.constant 0 : index
    %c0_27 = arith.constant 0 : index
    %c0_28 = arith.constant 0 : index
    %47 = vector.load %arg1[%c0_26, %c0_27, %c0_28] : memref<2x16x128xbf16, #tpu.memory_space<vmem>>, vector<2x16x128xbf16>
    %48 = arith.extf %47 : vector<2x16x128xbf16> to vector<2x16x128xf32>
    %c0_29 = arith.constant 0 : index
    %c0_30 = arith.constant 0 : index
    %c0_31 = arith.constant 0 : index
    %49 = vector.load %arg2[%c0_29, %c0_30, %c0_31] : memref<2x16x128xbf16, #tpu.memory_space<vmem>>, vector<2x16x128xbf16>
    %50 = arith.extf %49 : vector<2x16x128xbf16> to vector<2x16x128xf32>
    %51 = vector.shape_cast %46 : vector<2x128xf32> to vector<2x1x128xf32>
    %52 = vector.broadcast %51 : vector<2x1x128xf32> to vector<2x16x128xf32>
    %53 = arith.mulf %52, %48 : vector<2x16x128xf32>
    %cst_32 = arith.constant dense<0.000000e+00> : vector<2x16xf32>
    %54 = vector.multi_reduction <add>, %53, %cst_32 [2] : vector<2x16x128xf32> to vector<2x16xf32>
    %cst_33 = arith.constant dense<0xFF800000> : vector<2xf32>
    %55 = vector.multi_reduction <maximumf>, %54, %cst_33 [1] : vector<2x16xf32> to vector<2xf32>
    %56 = vector.shape_cast %55 : vector<2xf32> to vector<2x1xf32>
    %57 = vector.broadcast %56 : vector<2x1xf32> to vector<2x16xf32>
    %58 = arith.subf %54, %57 : vector<2x16xf32>
    %59 = math.exp %58 : vector<2x16xf32>
    %cst_34 = arith.constant dense<0.000000e+00> : vector<2xf32>
    %60 = vector.multi_reduction <add>, %59, %cst_34 [1] : vector<2x16xf32> to vector<2xf32>
    %61 = vector.shape_cast %60 : vector<2xf32> to vector<2x1xf32>
    %62 = vector.broadcast %61 : vector<2x1xf32> to vector<2x16xf32>
    %63 = arith.divf %59, %62 : vector<2x16xf32>
    %64 = vector.shape_cast %63 : vector<2x16xf32> to vector<2x16x1xf32>
    %65 = vector.broadcast %64 : vector<2x16x1xf32> to vector<2x16x128xf32>
    %66 = arith.mulf %65, %50 : vector<2x16x128xf32>
    %cst_35 = arith.constant dense<0.000000e+00> : vector<2x128xf32>
    %67 = vector.multi_reduction <add>, %66, %cst_35 [1] : vector<2x16x128xf32> to vector<2x128xf32>
    %68 = arith.truncf %67 : vector<2x128xf32> to vector<2x128xbf16>
    %c0_36 = arith.constant 0 : index
    %c0_37 = arith.constant 0 : index
    %69 = vector.load %arg10[%c0_36, %c0_37] : memref<128x128xbf16, #tpu.memory_space<vmem>>, vector<128x128xbf16>
    %cst_38 = arith.constant dense<0.000000e+00> : vector<2x128xf32>
    %70 = tpu.matmul %68, %69, %cst_38 {dimension_numbers = #tpu.dot_dimension_numbers<[1], [0], [0], [1], [0, 0, 1, 1], [], []>} : vector<2x128xbf16>, vector<128x128xbf16>, vector<2x128xf32> -> vector<2x128xf32>
    %c0_39 = arith.constant 0 : index
    %c0_40 = arith.constant 0 : index
    %71 = vector.load %arg11[%c0_39, %c0_40] : memref<1x128xf32, #tpu.memory_space<vmem>>, vector<1x128xf32>
    %72 = vector.broadcast %71 : vector<1x128xf32> to vector<2x128xf32>
    %73 = arith.addf %70, %72 : vector<2x128xf32>
    %74 = arith.addf %73, %38 : vector<2x128xf32>
    %c0_41 = arith.constant 0 : index
    %c0_42 = arith.constant 0 : index
    %75 = vector.load %arg20[%c0_41, %c0_42] : memref<1x128xf32, #tpu.memory_space<vmem>>, vector<1x128xf32>
    %c0_43 = arith.constant 0 : index
    %c0_44 = arith.constant 0 : index
    %76 = vector.load %arg21[%c0_43, %c0_44] : memref<1x128xf32, #tpu.memory_space<vmem>>, vector<1x128xf32>
    %cst_45 = arith.constant dense<0.000000e+00> : vector<2xf32>
    %77 = vector.multi_reduction <add>, %74, %cst_45 [1] : vector<2x128xf32> to vector<2xf32>
    %78 = vector.shape_cast %77 : vector<2xf32> to vector<2x1xf32>
    %cst_46 = arith.constant 1.280000e+02 : f32
    %79 = vector.broadcast %cst_46 : f32 to vector<2x1xf32>
    %80 = arith.divf %78, %79 : vector<2x1xf32>
    %81 = vector.broadcast %80 : vector<2x1xf32> to vector<2x128xf32>
    %82 = arith.subf %74, %81 : vector<2x128xf32>
    %83 = arith.mulf %82, %82 : vector<2x128xf32>
    %cst_47 = arith.constant dense<0.000000e+00> : vector<2xf32>
    %84 = vector.multi_reduction <add>, %83, %cst_47 [1] : vector<2x128xf32> to vector<2xf32>
    %85 = vector.shape_cast %84 : vector<2xf32> to vector<2x1xf32>
    %cst_48 = arith.constant 1.280000e+02 : f32
    %86 = vector.broadcast %cst_48 : f32 to vector<2x1xf32>
    %87 = arith.divf %85, %86 : vector<2x1xf32>
    %88 = vector.broadcast %80 : vector<2x1xf32> to vector<2x128xf32>
    %89 = arith.subf %74, %88 : vector<2x128xf32>
    %cst_49 = arith.constant 9.99999997E-7 : f32
    %90 = vector.broadcast %cst_49 : f32 to vector<2x1xf32>
    %91 = arith.addf %87, %90 : vector<2x1xf32>
    %92 = math.rsqrt %91 : vector<2x1xf32>
    %93 = vector.broadcast %92 : vector<2x1xf32> to vector<2x128xf32>
    %94 = arith.mulf %89, %93 : vector<2x128xf32>
    %95 = vector.broadcast %75 : vector<1x128xf32> to vector<2x128xf32>
    %96 = arith.mulf %94, %95 : vector<2x128xf32>
    %97 = vector.broadcast %76 : vector<1x128xf32> to vector<2x128xf32>
    %98 = arith.addf %96, %97 : vector<2x128xf32>
    %99 = arith.truncf %98 : vector<2x128xf32> to vector<2x128xbf16>
    %c0_50 = arith.constant 0 : index
    %c0_51 = arith.constant 0 : index
    %100 = vector.load %arg12[%c0_50, %c0_51] : memref<128x256xbf16, #tpu.memory_space<vmem>>, vector<128x256xbf16>
    %cst_52 = arith.constant dense<0.000000e+00> : vector<2x256xf32>
    %101 = tpu.matmul %99, %100, %cst_52 {dimension_numbers = #tpu.dot_dimension_numbers<[1], [0], [0], [1], [0, 0, 1, 1], [], []>} : vector<2x128xbf16>, vector<128x256xbf16>, vector<2x256xf32> -> vector<2x256xf32>
    %c0_53 = arith.constant 0 : index
    %c0_54 = arith.constant 0 : index
    %102 = vector.load %arg13[%c0_53, %c0_54] : memref<1x256xf32, #tpu.memory_space<vmem>>, vector<1x256xf32>
    %103 = vector.broadcast %102 : vector<1x256xf32> to vector<2x256xf32>
    %104 = arith.addf %101, %103 : vector<2x256xf32>
    %cst_55 = arith.constant 0.000000e+00 : f32
    %105 = vector.broadcast %cst_55 : f32 to vector<2x256xf32>
    %106 = arith.maximumf %104, %105 : vector<2x256xf32>
    %107 = arith.truncf %106 : vector<2x256xf32> to vector<2x256xbf16>
    %c0_56 = arith.constant 0 : index
    %c0_57 = arith.constant 0 : index
    %108 = vector.load %arg14[%c0_56, %c0_57] : memref<256x128xbf16, #tpu.memory_space<vmem>>, vector<256x128xbf16>
    %cst_58 = arith.constant dense<0.000000e+00> : vector<2x128xf32>
    %109 = tpu.matmul %107, %108, %cst_58 {dimension_numbers = #tpu.dot_dimension_numbers<[1], [0], [0], [1], [0, 0, 1, 1], [], []>} : vector<2x256xbf16>, vector<256x128xbf16>, vector<2x128xf32> -> vector<2x128xf32>
    %c0_59 = arith.constant 0 : index
    %c0_60 = arith.constant 0 : index
    %110 = vector.load %arg15[%c0_59, %c0_60] : memref<1x128xf32, #tpu.memory_space<vmem>>, vector<1x128xf32>
    %111 = vector.broadcast %110 : vector<1x128xf32> to vector<2x128xf32>
    %112 = arith.addf %109, %111 : vector<2x128xf32>
    %113 = arith.addf %112, %98 : vector<2x128xf32>
    %c0_61 = arith.constant 0 : index
    %c0_62 = arith.constant 0 : index
    %114 = vector.load %arg22[%c0_61, %c0_62] : memref<1x128xf32, #tpu.memory_space<vmem>>, vector<1x128xf32>
    %c0_63 = arith.constant 0 : index
    %c0_64 = arith.constant 0 : index
    %115 = vector.load %arg23[%c0_63, %c0_64] : memref<1x128xf32, #tpu.memory_space<vmem>>, vector<1x128xf32>
    %cst_65 = arith.constant dense<0.000000e+00> : vector<2xf32>
    %116 = vector.multi_reduction <add>, %113, %cst_65 [1] : vector<2x128xf32> to vector<2xf32>
    %117 = vector.shape_cast %116 : vector<2xf32> to vector<2x1xf32>
    %cst_66 = arith.constant 1.280000e+02 : f32
    %118 = vector.broadcast %cst_66 : f32 to vector<2x1xf32>
    %119 = arith.divf %117, %118 : vector<2x1xf32>
    %120 = vector.broadcast %119 : vector<2x1xf32> to vector<2x128xf32>
    %121 = arith.subf %113, %120 : vector<2x128xf32>
    %122 = arith.mulf %121, %121 : vector<2x128xf32>
    %cst_67 = arith.constant dense<0.000000e+00> : vector<2xf32>
    %123 = vector.multi_reduction <add>, %122, %cst_67 [1] : vector<2x128xf32> to vector<2xf32>
    %124 = vector.shape_cast %123 : vector<2xf32> to vector<2x1xf32>
    %cst_68 = arith.constant 1.280000e+02 : f32
    %125 = vector.broadcast %cst_68 : f32 to vector<2x1xf32>
    %126 = arith.divf %124, %125 : vector<2x1xf32>
    %127 = vector.broadcast %119 : vector<2x1xf32> to vector<2x128xf32>
    %128 = arith.subf %113, %127 : vector<2x128xf32>
    %cst_69 = arith.constant 9.99999997E-7 : f32
    %129 = vector.broadcast %cst_69 : f32 to vector<2x1xf32>
    %130 = arith.addf %126, %129 : vector<2x1xf32>
    %131 = math.rsqrt %130 : vector<2x1xf32>
    %132 = vector.broadcast %131 : vector<2x1xf32> to vector<2x128xf32>
    %133 = arith.mulf %128, %132 : vector<2x128xf32>
    %134 = vector.broadcast %114 : vector<1x128xf32> to vector<2x128xf32>
    %135 = arith.mulf %133, %134 : vector<2x128xf32>
    %136 = vector.broadcast %115 : vector<1x128xf32> to vector<2x128xf32>
    %137 = arith.addf %135, %136 : vector<2x128xf32>
    %138 = arith.truncf %137 : vector<2x128xf32> to vector<2x128xbf16>
    %c0_70 = arith.constant 0 : index
    %c0_71 = arith.constant 0 : index
    %139 = vector.load %arg16[%c0_70, %c0_71] : memref<128x128xbf16, #tpu.memory_space<vmem>>, vector<128x128xbf16>
    %cst_72 = arith.constant dense<0.000000e+00> : vector<2x128xf32>
    %140 = tpu.matmul %138, %139, %cst_72 {dimension_numbers = #tpu.dot_dimension_numbers<[1], [0], [0], [1], [0, 0, 1, 1], [], []>} : vector<2x128xbf16>, vector<128x128xbf16>, vector<2x128xf32> -> vector<2x128xf32>
    %c0_73 = arith.constant 0 : index
    %c0_74 = arith.constant 0 : index
    %141 = vector.load %arg17[%c0_73, %c0_74] : memref<1x128xf32, #tpu.memory_space<vmem>>, vector<1x128xf32>
    %142 = vector.broadcast %141 : vector<1x128xf32> to vector<2x128xf32>
    %143 = arith.addf %140, %142 : vector<2x128xf32>
    %cst_75 = arith.constant dense<0xFF800000> : vector<2xf32>
    %144 = vector.multi_reduction <maximumf>, %143, %cst_75 [1] : vector<2x128xf32> to vector<2xf32>
    %145 = vector.shape_cast %144 : vector<2xf32> to vector<2x1xf32>
    %146 = vector.broadcast %145 : vector<2x1xf32> to vector<2x128xf32>
    %147 = arith.subf %143, %146 : vector<2x128xf32>
    %148 = math.exp %147 : vector<2x128xf32>
    %cst_76 = arith.constant dense<0.000000e+00> : vector<2xf32>
    %149 = vector.multi_reduction <add>, %148, %cst_76 [1] : vector<2x128xf32> to vector<2xf32>
    %150 = vector.shape_cast %149 : vector<2xf32> to vector<2x1xf32>
    %151 = vector.broadcast %150 : vector<2x1xf32> to vector<2x128xf32>
    %152 = arith.divf %148, %151 : vector<2x128xf32>
    %c0_77 = arith.constant 0 : index
    %c0_78 = arith.constant 0 : index
    %153 = vector.load %arg24[%c0_77, %c0_78] : memref<2x128xf32, #tpu.memory_space<vmem>>, vector<2x128xf32>
    tpu.vector_store %arg24[%c0_77, %c0_78], %152 {strides = array<i32>} : memref<2x128xf32, #tpu.memory_space<vmem>>, vector<2x128xf32>,
    %154 = math.log %150 : vector<2x1xf32>
    %155 = arith.addf %145, %154 : vector<2x1xf32>
    %156 = tpu.iota {dimensions = array<i32: 1>} : vector<2x128xi32>
    %c0_79 = arith.constant 0 : index
    %c0_80 = arith.constant 0 : index
    %157 = vector.load %arg3[%c0_79, %c0_80] : memref<2x1xi32, #tpu.memory_space<vmem>>, vector<2x1xi32>
    %158 = vector.broadcast %157 : vector<2x1xi32> to vector<2x128xi32>
    %159 = arith.cmpi eq, %156, %158 : vector<2x128xi32>
    %cst_81 = arith.constant 0.000000e+00 : f32
    %160 = vector.broadcast %cst_81 : f32 to vector<2x128xf32>
    %161 = arith.select %159, %143, %160 : vector<2x128xi1>, vector<2x128xf32>
    %cst_82 = arith.constant dense<0.000000e+00> : vector<2xf32>
    %162 = vector.multi_reduction <add>, %161, %cst_82 [1] : vector<2x128xf32> to vector<2xf32>
    %163 = vector.shape_cast %162 : vector<2xf32> to vector<2x1xf32>
    %164 = arith.subf %155, %163 : vector<2x1xf32>
    %c0_83 = arith.constant 0 : index
    %c0_84 = arith.constant 0 : index
    %165 = vector.load %arg25[%c0_83, %c0_84] : memref<2x1xf32, #tpu.memory_space<vmem>>, vector<2x1xf32>
    tpu.vector_store %arg25[%c0_83, %c0_84], %164 {strides = array<i32>} : memref<2x1xf32, #tpu.memory_space<vmem>>, vector<2x1xf32>,
    %166 = vector.broadcast %145 : vector<2x1xf32> to vector<2x128xf32>
    %167 = arith.cmpf oge, %143, %166 : vector<2x128xf32>
    %c128_i32 = arith.constant 128 : i32
    %168 = vector.broadcast %c128_i32 : i32 to vector<2x128xi32>
    %169 = arith.select %167, %156, %168 : vector<2x128xi1>, vector<2x128xi32>
    %cst_85 = arith.constant dense<2147483647> : vector<2xi32>
    %170 = vector.multi_reduction <minsi>, %169, %cst_85 [1] : vector<2x128xi32> to vector<2xi32>
    %171 = vector.shape_cast %170 : vector<2xi32> to vector<2x1xi32>
    %c0_86 = arith.constant 0 : index
    %c0_87 = arith.constant 0 : index
    %172 = vector.load %arg26[%c0_86, %c0_87] : memref<2x1xi32, #tpu.memory_space<vmem>>, vector<2x1xi32>
    tpu.vector_store %arg26[%c0_86, %c0_87], %171 {strides = array<i32>} : memref<2x1xi32, #tpu.memory_space<vmem>>, vector<2x1xi32>,
    return
  }
}

</mosaic_0001>

<llo_original>
// kernel: forward.4
$region0: #{forward.4}
  #allocation0 [shape = 'u32[]', space=smem, size = 0x4, offset = 0x4, fixed_abs, tag = 'smem constant byte address 0x4 - core index']
  #allocation1 [shape = 'u32[144,128]{1,0:T(1,128)}', space=vmem, size = 0x12000, scoped, tag = 'internal scratch']
  %s0 = inlined_call_operand.vmem [shape: bf16[2,16,128], index: 0, kind: input, shape index: {}]
  %s1 = inlined_call_operand.vmem [shape: bf16[128,384], index: 1, kind: input, shape index: {}]
  %s2 = inlined_call_operand.vmem [shape: f32[1,384], index: 2, kind: input, shape index: {}]
  %s3 = inlined_call_operand.vmem [shape: bf16[128,128], index: 3, kind: input, shape index: {}]
  %s4 = inlined_call_operand.vmem [shape: f32[1,128], index: 4, kind: input, shape index: {}, may-alias: {4,6}]
  %s5 = inlined_call_operand.vmem [shape: f32[1,128], index: 5, kind: input, shape index: {}]
  %s6 = inlined_call_operand.vmem [shape: f32[1,128], index: 6, kind: input, shape index: {}, may-alias: {4,6}]
  %s7 = inlined_call_operand.vmem [shape: bf16[2,16,128], index: 7, kind: output, shape index: {}]
  %s8 = sld [smem:[#allocation0]]
  $region61: #{forward.4} parent=0
    _
  %s10 = ssub.s32 1, %s8
  %s11 = scalar_select 0, %s10, %s8
  loop: start=0, step=1, limit=4
  $region2: #{forward.4} parent=0 // loop_pre_header
    _
  $region3: #{forward.4} parent=0 // loop_header
    %s13 = sphi 0, %s17
    %p14 = scmp.ge.s32.totalorder %s13, 4
    %s23 = sphi 0, %s25
    %s26 = sphi 0, %s23
    %s27 = sphi 0, %s26
    %s43 = sphi 0, %s27
    %s47 = sphi 0, %s47
    %s49 = sphi 0, %s47
    %s50 = sphi 0, %s49
    %s64 = sphi 0, %s50
    %s68 = sphi 0, %s68
    %s70 = sphi 0, %s68
    %s71 = sphi 0, %s70
    %s85 = sphi 0, %s71
    %s89 = sphi 0, %s89
    %s91 = sphi 0, %s89
    %s92 = sphi 0, %s91
    %s106 = sphi 0, %s92
    %s110 = sphi 0, %s110
    %s112 = sphi 0, %s110
    %s113 = sphi 0, %s112
    %s127 = sphi 0, %s113
    %s131 = sphi 0, %s131
    %s133 = sphi 0, %s131
    %s134 = sphi 0, %s133
    %s148 = sphi 0, %s134
    %s152 = sphi 0, %s152
    %s154 = sphi 0, %s152
    %s155 = sphi 0, %s154
    %s169 = sphi 0, %s155
    %s175 = sphi 0, %s177
    %s178 = sphi 0, %s175
    %s179 = sphi 0, %s178
    %s195 = sphi 0, %s179
  $region4: #{forward.4} parent=0 // loop_header_branch
    %16 = sbr.rel (%p14) target = $region8
  $region5: #{forward.4} parent=0 // loop_body
    %s18 = ssub.s32 %s13, 1
    %s19 = ssub.s32 %s13, 2
    %s20 = sadd.s32 %s13, 1
    %s21 = ssub.s32 %s13, %s20
    %p22 = scmp.eq.s32.totalorder %s21, 0
    %s24 = sadd.s32 %s23, 1
    %s25 = scalar_select %p22, %s23, %s24
    %p28 = pneg %p22
    %p29 = scmp.eq.s32.totalorder %s13, 1
    %p30 = por %p28, %p29
    %p31 = scmp.ne.s32.totalorder %s23, %s26
    %p32 = scmp.eq.s32.totalorder %s13, 0
    %p33 = por %p31, %p32
    %p34 = scmp.ne.s32.totalorder %s23, %s26
    %p35 = scmp.eq.s32.totalorder %s18, 1
    %p36 = por %p34, %p35
    %p37 = scmp.ne.s32.totalorder %s26, %s27
    %p38 = scmp.eq.s32.totalorder %s18, 0
    %p39 = por %p37, %p38
    %p40 = scmp.ne.s32.totalorder %s26, %s27
    %p41 = scmp.eq.s32.totalorder %s19, 1
    %p42 = por %p40, %p41
    %p44 = scmp.ne.s32.totalorder %s27, %s43
    %p45 = scmp.eq.s32.totalorder %s19, 0
    %p46 = por %p44, %p45
    %s48 = sadd.s32 %s47, 1
    %p51 = scmp.eq.s32.totalorder %s13, 1
    %p52 = scmp.ne.s32.totalorder %s47, %s49
    %p53 = scmp.eq.s32.totalorder %s13, 0
    %p54 = por %p52, %p53
    %p55 = scmp.ne.s32.totalorder %s47, %s49
    %p56 = scmp.eq.s32.totalorder %s18, 1
    %p57 = por %p55, %p56
    %p58 = scmp.ne.s32.totalorder %s49, %s50
    %p59 = scmp.eq.s32.totalorder %s18, 0
    %p60 = por %p58, %p59
    %p61 = scmp.ne.s32.totalorder %s49, %s50
    %p62 = scmp.eq.s32.totalorder %s19, 1
    %p63 = por %p61, %p62
    %p65 = scmp.ne.s32.totalorder %s50, %s64
    %p66 = scmp.eq.s32.totalorder %s19, 0
    %p67 = por %p65, %p66
    %s69 = sadd.s32 %s68, 1
    %p72 = scmp.eq.s32.totalorder %s13, 1
    %p73 = scmp.ne.s32.totalorder %s68, %s70
    %p74 = scmp.eq.s32.totalorder %s13, 0
    %p75 = por %p73, %p74
    %p76 = scmp.ne.s32.totalorder %s68, %s70
    %p77 = scmp.eq.s32.totalorder %s18, 1
    %p78 = por %p76, %p77
    %p79 = scmp.ne.s32.totalorder %s70, %s71
    %p80 = scmp.eq.s32.totalorder %s18, 0
    %p81 = por %p79, %p80
    %p82 = scmp.ne.s32.totalorder %s70, %s71
    %p83 = scmp.eq.s32.totalorder %s19, 1
    %p84 = por %p82, %p83
    %p86 = scmp.ne.s32.totalorder %s71, %s85
    %p87 = scmp.eq.s32.totalorder %s19, 0
    %p88 = por %p86, %p87
    %s90 = sadd.s32 %s89, 1
    %p93 = scmp.eq.s32.totalorder %s13, 1
    %p94 = scmp.ne.s32.totalorder %s89, %s91
    %p95 = scmp.eq.s32.totalorder %s13, 0
    %p96 = por %p94, %p95
    %p97 = scmp.ne.s32.totalorder %s89, %s91
    %p98 = scmp.eq.s32.totalorder %s18, 1
    %p99 = por %p97, %p98
    %p100 = scmp.ne.s32.totalorder %s91, %s92
    %p101 = scmp.eq.s32.totalorder %s18, 0
    %p102 = por %p100, %p101
    %p103 = scmp.ne.s32.totalorder %s91, %s92
    %p104 = scmp.eq.s32.totalorder %s19, 1
    %p105 = por %p103, %p104
    %p107 = scmp.ne.s32.totalorder %s92, %s106
    %p108 = scmp.eq.s32.totalorder %s19, 0
    %p109 = por %p107, %p108
    %s111 = sadd.s32 %s110, 1
    %p114 = scmp.eq.s32.totalorder %s13, 1
    %p115 = scmp.ne.s32.totalorder %s110, %s112
    %p116 = scmp.eq.s32.totalorder %s13, 0
    %p117 = por %p115, %p116
    %p118 = scmp.ne.s32.totalorder %s110, %s112
    %p119 = scmp.eq.s32.totalorder %s18, 1
    %p120 = por %p118, %p119
    %p121 = scmp.ne.s32.totalorder %s112, %s113
    %p122 = scmp.eq.s32.totalorder %s18, 0
    %p123 = por %p121, %p122
    %p124 = scmp.ne.s32.totalorder %s112, %s113
    %p125 = scmp.eq.s32.totalorder %s19, 1
    %p126 = por %p124, %p125
    %p128 = scmp.ne.s32.totalorder %s113, %s127
    %p129 = scmp.eq.s32.totalorder %s19, 0
    %p130 = por %p128, %p129
    %s132 = sadd.s32 %s131, 1
    %p135 = scmp.eq.s32.totalorder %s13, 1
    %p136 = scmp.ne.s32.totalorder %s131, %s133
    %p137 = scmp.eq.s32.totalorder %s13, 0
    %p138 = por %p136, %p137
    %p139 = scmp.ne.s32.totalorder %s131, %s133
    %p140 = scmp.eq.s32.totalorder %s18, 1
    %p141 = por %p139, %p140
    %p142 = scmp.ne.s32.totalorder %s133, %s134
    %p143 = scmp.eq.s32.totalorder %s18, 0
    %p144 = por %p142, %p143
    %p145 = scmp.ne.s32.totalorder %s133, %s134
    %p146 = scmp.eq.s32.totalorder %s19, 1
    %p147 = por %p145, %p146
    %p149 = scmp.ne.s32.totalorder %s134, %s148
    %p150 = scmp.eq.s32.totalorder %s19, 0
    %p151 = por %p149, %p150
    %s153 = sadd.s32 %s152, 1
    %p156 = scmp.eq.s32.totalorder %s13, 1
    %p157 = scmp.ne.s32.totalorder %s152, %s154
    %p158 = scmp.eq.s32.totalorder %s13, 0
    %p159 = por %p157, %p158
    %p160 = scmp.ne.s32.totalorder %s152, %s154
    %p161 = scmp.eq.s32.totalorder %s18, 1
    %p162 = por %p160, %p161
    %p163 = scmp.ne.s32.totalorder %s154, %s155
    %p164 = scmp.eq.s32.totalorder %s18, 0
    %p165 = por %p163, %p164
    %p166 = scmp.ne.s32.totalorder %s154, %s155
    %p167 = scmp.eq.s32.totalorder %s19, 1
    %p168 = por %p166, %p167
    %p170 = scmp.ne.s32.totalorder %s155, %s169
    %p171 = scmp.eq.s32.totalorder %s19, 0
    %p172 = por %p170, %p171
    %s173 = ssub.s32 %s13, %s20
    %p174 = scmp.eq.s32.totalorder %s173, 0
    %s176 = sadd.s32 %s175, 1
    %s177 = scalar_select %p174, %s175, %s176
    %p180 = pneg %p174
    %p181 = scmp.eq.s32.totalorder %s13, 1
    %p182 = por %p180, %p181
    %p183 = scmp.ne.s32.totalorder %s175, %s178
    %p184 = scmp.eq.s32.totalorder %s13, 0
    %p185 = por %p183, %p184
    %p186 = scmp.ne.s32.totalorder %s175, %s178
    %p187 = scmp.eq.s32.totalorder %s18, 1
    %p188 = por %p186, %p187
    %p189 = scmp.ne.s32.totalorder %s178, %s179
    %p190 = scmp.eq.s32.totalorder %s18, 0
    %p191 = por %p189, %p190
    %p192 = scmp.ne.s32.totalorder %s178, %s179
    %p193 = scmp.eq.s32.totalorder %s19, 1
    %p194 = por %p192, %p193
    %p196 = scmp.ne.s32.totalorder %s179, %s195
    %p197 = scmp.eq.s32.totalorder %s19, 0
    %p198 = por %p196, %p197
    %p199 = scmp.le.s32.totalorder 1, %s13
    %p200 = scmp.lt.s32.totalorder %s13, 3
    %p201 = pnand %p199, %p200
    %p202 = pneg %p201
    // Predicated region
    $region9: #{forward.4} parent=5 // pred_check
      _
    $region10: #{forward.4} parent=5 // pred_check_branch
      %204 = sbr.rel (%p201) target = $region12
    $region11: #{forward.4} parent=5 // pred_region
      %s205 = ssub.s32 %s13, 1
      // Predicated region
      $region13: #{forward.4} parent=11 // pred_check
        %p206 = pneg %p60
      $region14: #{forward.4} parent=11 // pred_check_branch
        %208 = sbr.rel (%p206) target = $region16
      $region15: #{forward.4} parent=11 // pred_region
        _
      $region16: #{forward.4} parent=11 // pred_fallthru
        _
      // Predicated region
      $region17: #{forward.4} parent=11 // pred_check
        %p209 = pneg %p81
      $region18: #{forward.4} parent=11 // pred_check_branch
        %211 = sbr.rel (%p209) target = $region20
      $region19: #{forward.4} parent=11 // pred_region
        _
      $region20: #{forward.4} parent=11 // pred_fallthru
        _
      // Predicated region
      $region21: #{forward.4} parent=11 // pred_check
        %p212 = pneg %p102
      $region22: #{forward.4} parent=11 // pred_check_branch
        %214 = sbr.rel (%p212) target = $region24
      $region23: #{forward.4} parent=11 // pred_region
        _
      $region24: #{forward.4} parent=11 // pred_fallthru
        _
      // Predicated region
      $region25: #{forward.4} parent=11 // pred_check
        %p215 = pneg %p123
      $region26: #{forward.4} parent=11 // pred_check_branch
        %217 = sbr.rel (%p215) target = $region28
      $region27: #{forward.4} parent=11 // pred_region
        _
      $region28: #{forward.4} parent=11 // pred_fallthru
        _
      // Predicated region
      $region29: #{forward.4} parent=11 // pred_check
        %p218 = pneg %p144
      $region30: #{forward.4} parent=11 // pred_check_branch
        %220 = sbr.rel (%p218) target = $region32
      $region31: #{forward.4} parent=11 // pred_region
        _
      $region32: #{forward.4} parent=11 // pred_fallthru
        _
      // Predicated region
      $region33: #{forward.4} parent=11 // pred_check
        %p221 = pneg %p165
      $region34: #{forward.4} parent=11 // pred_check_branch
        %223 = sbr.rel (%p221) target = $region36
      $region35: #{forward.4} parent=11 // pred_region
        _
      $region36: #{forward.4} parent=11 // pred_fallthru
        _
    $region12: #{forward.4} parent=5 // pred_fallthru
      _
    %p224 = scmp.lt.s32.totalorder %s13, 2
    // Predicated region
    $region37: #{forward.4} parent=5 // pred_check
      %p225 = pneg %p224
    $region38: #{forward.4} parent=5 // pred_check_branch
      %227 = sbr.rel (%p225) target = $region40
    $region39: #{forward.4} parent=5 // pred_region
      // Predicated region
      $region41: #{forward.4} parent=39 // pred_check
        %p228 = pneg %p33
      $region42: #{forward.4} parent=39 // pred_check_branch
        %230 = sbr.rel (%p228) target = $region44
      $region43: #{forward.4} parent=39 // pred_region
        %p231 = scmp.lt.s32.totalorder %s13, 1
        %s232 = scalar_select %p231, %s13, 1
        %s233 = smul.addr %s232, 2
        %s234 = smul.addr %s233, 4
        %s235 = scalar_lea.vmem %s0, %s234
      $region44: #{forward.4} parent=39 // pred_fallthru
        _
    $region40: #{forward.4} parent=5 // pred_fallthru
      _
    %p236 = scmp.le.s32.totalorder 1, %s13
    %p237 = scmp.lt.s32.totalorder %s13, 3
    %p238 = pnand %p236, %p237
    %p239 = pneg %p238
    // Predicated region
    $region45: #{forward.4} parent=5 // pred_check
      _
    $region46: #{forward.4} parent=5 // pred_check_branch
      %241 = sbr.rel (%p238) target = $region48
    $region47: #{forward.4} parent=5 // pred_region
      %s242 = ssub.s32 %s13, 1
      %p243 = scmp.lt.s32.totalorder %s18, 1
      %s244 = scalar_select %p243, %s18, 1
      %s245 = smul.addr %s244, 2
      %s246 = smul.addr %s245, 4
      %s247 = scalar_lea.vmem %s0, %s246
      %p248 = pneg %p39
      %p249 = pneg %p36
      %p250 = pneg %p60
      %p251 = pneg %p57
      %p252 = pneg %p81
      %p253 = pneg %p78
      %p254 = pneg %p102
      %p255 = pneg %p99
      %p256 = pneg %p123
      %p257 = pneg %p120
      %p258 = pneg %p144
      %p259 = pneg %p141
      %p260 = pneg %p165
      %p261 = pneg %p162
      %p262 = pneg %p191
      %p263 = pneg %p188
      %p264 = scmp.lt.s32.totalorder %s18, 1
      %s265 = scalar_select %p264, %s18, 1
      %s266 = smul.addr %s265, 2
      %s267 = smul.addr %s266, 4
      %s268 = scalar_lea.vmem %s7, %s267
      %p269 = scmp.lt.s32.totalorder %s18, 1
      %s270 = scalar_select %p269, %s18, 1
      %s271 = smul.addr %s270, 2
      %s272 = smul.addr %s271, 4
      %s273 = scalar_lea.vmem %s0, %s272
      %p274 = scmp.lt.s32.totalorder %s18, 1
      %s275 = scalar_select %p274, %s18, 1
      %s276 = smul.addr %s275, 2
      %s277 = smul.addr %s276, 4
      %s278 = scalar_lea.vmem %s7, %s277
      %v280 = vld [vmem:[%s273] sm:$0xf]
      %v281 = vld [vmem:[%s273 + $0x4] sm:$0xf]
      %v282 = vld [vmem:[%s1] sm:$0xff]
      %v283 = vld [vmem:[%s1 + $0x8] sm:$0xf]
      %v284 = vld [vmem:[%s1 + $0xc] sm:$0xff]
      %v285 = vld [vmem:[%s1 + $0x14] sm:$0xf]
      %v286 = vld [vmem:[%s1 + $0x18] sm:$0xff]
      %v287 = vld [vmem:[%s1 + $0x20] sm:$0xf]
      %v288 = vld [vmem:[%s1 + $0x24] sm:$0xff]
      %v289 = vld [vmem:[%s1 + $0x2c] sm:$0xf]
      %v290 = vld [vmem:[%s1 + $0x30] sm:$0xff]
      %v291 = vld [vmem:[%s1 + $0x38] sm:$0xf]
      %v292 = vld [vmem:[%s1 + $0x3c] sm:$0xff]
      %v293 = vld [vmem:[%s1 + $0x44] sm:$0xf]
      %v294 = vld [vmem:[%s1 + $0x48] sm:$0xff]
      %v295 = vld [vmem:[%s1 + $0x50] sm:$0xf]
      %v296 = vld [vmem:[%s1 + $0x54] sm:$0xff]
      %v297 = vld [vmem:[%s1 + $0x5c] sm:$0xf]
      %v298 = vld [vmem:[%s1 + $0x60] sm:$0xff]
      %v299 = vld [vmem:[%s1 + $0x68] sm:$0xf]
      %v300 = vld [vmem:[%s1 + $0x6c] sm:$0xff]
      %v301 = vld [vmem:[%s1 + $0x74] sm:$0xf]
      %v302 = vld [vmem:[%s1 + $0x78] sm:$0xff]
      %v303 = vld [vmem:[%s1 + $0x80] sm:$0xf]
      %v304 = vld [vmem:[%s1 + $0x84] sm:$0xff]
      %v305 = vld [vmem:[%s1 + $0x8c] sm:$0xf]
      %v306 = vld [vmem:[%s1 + $0x90] sm:$0xff]
      %v307 = vld [vmem:[%s1 + $0x98] sm:$0xf]
      %v308 = vld [vmem:[%s1 + $0x9c] sm:$0xff]
      %v309 = vld [vmem:[%s1 + $0xa4] sm:$0xf]
      %v310 = vld [vmem:[%s1 + $0xa8] sm:$0xff]
      %v311 = vld [vmem:[%s1 + $0xb0] sm:$0xf]
      %v312 = vld [vmem:[%s1 + $0xb4] sm:$0xff]
      %v313 = vld [vmem:[%s1 + $0xbc] sm:$0xf]
      %v314 = vld [vmem:[%s2] sm:$0x7]
      %v316 = vlaneseq
      %v317 = vshrl.u32 %v316, 7
      %v318 = vsub.s32 0, %v317
      %v319 = vrot.slane %v314, %v318
      %v320 = vlaneseq
      %v321 = vshrl.u32 %v320, 7
      %v322 = vsub.s32 1, %v321
      %v323 = vrot.slane %v314, %v322
      %v324 = vlaneseq
      %v325 = vshrl.u32 %v324, 7
      %v326 = vsub.s32 2, %v325
      %v327 = vrot.slane %v314, %v326
      %v333 = vunpack.c.l.b16 %v280
      %v334 = vunpack.c.l.b16 %v281
      %v335 = vpack.c.b16 %v334, %v333
      %v369 = vunpack.c.l.b16 %v282
      %v370 = vunpack.c.h.b16 %v282
      %v371 = vunpack.c.l.b16 %v283
      %v372 = vunpack.c.l.b16 %v284
      %v373 = vunpack.c.h.b16 %v284
      %v374 = vunpack.c.l.b16 %v285
      %v375 = vunpack.c.l.b16 %v286
      %v376 = vunpack.c.h.b16 %v286
      %v377 = vunpack.c.l.b16 %v287
      %v378 = vunpack.c.l.b16 %v288
      %v379 = vunpack.c.h.b16 %v288
      %v380 = vunpack.c.l.b16 %v289
      %v381 = vunpack.c.l.b16 %v290
      %v382 = vunpack.c.h.b16 %v290
      %v383 = vunpack.c.l.b16 %v291
      %v384 = vunpack.c.l.b16 %v292
      %v385 = vunpack.c.h.b16 %v292
      %v386 = vunpack.c.l.b16 %v293
      %v387 = vunpack.c.l.b16 %v294
      %v388 = vunpack.c.h.b16 %v294
      %v389 = vunpack.c.l.b16 %v295
      %v390 = vunpack.c.l.b16 %v296
      %v391 = vunpack.c.h.b16 %v296
      %v392 = vunpack.c.l.b16 %v297
      %v393 = vunpack.c.l.b16 %v298
      %v394 = vunpack.c.h.b16 %v298
      %v395 = vunpack.c.l.b16 %v299
      %v396 = vunpack.c.l.b16 %v300
      %v397 = vunpack.c.h.b16 %v300
      %v398 = vunpack.c.l.b16 %v301
      %v399 = vunpack.c.l.b16 %v302
      %v400 = vunpack.c.h.b16 %v302
      %v401 = vunpack.c.l.b16 %v303
      %v402 = vunpack.c.l.b16 %v304
      %v403 = vunpack.c.h.b16 %v304
      %v404 = vunpack.c.l.b16 %v305
      %v405 = vunpack.c.l.b16 %v306
      %v406 = vunpack.c.h.b16 %v306
      %v407 = vunpack.c.l.b16 %v307
      %v408 = vunpack.c.l.b16 %v308
      %v409 = vunpack.c.h.b16 %v308
      %v410 = vunpack.c.l.b16 %v309
      %v411 = vunpack.c.l.b16 %v310
      %v412 = vunpack.c.h.b16 %v310
      %v413 = vunpack.c.l.b16 %v311
      %v414 = vunpack.c.l.b16 %v312
      %v415 = vunpack.c.h.b16 %v312
      %v416 = vunpack.c.l.b16 %v313
      %v417 = vpack.c.b16 %v372, %v369
      %v418 = vpack.c.b16 %v373, %v370
      %v419 = vpack.c.b16 %v374, %v371
      %v420 = vpack.c.b16 %v378, %v375
      %v421 = vpack.c.b16 %v379, %v376
      %v422 = vpack.c.b16 %v380, %v377
      %v423 = vpack.c.b16 %v384, %v381
      %v424 = vpack.c.b16 %v385, %v382
      %v425 = vpack.c.b16 %v386, %v383
      %v426 = vpack.c.b16 %v390, %v387
      %v427 = vpack.c.b16 %v391, %v388
      %v428 = vpack.c.b16 %v392, %v389
      %v429 = vpack.c.b16 %v396, %v393
      %v430 = vpack.c.b16 %v397, %v394
      %v431 = vpack.c.b16 %v398, %v395
      %v432 = vpack.c.b16 %v402, %v399
      %v433 = vpack.c.b16 %v403, %v400
      %v434 = vpack.c.b16 %v404, %v401
      %v435 = vpack.c.b16 %v408, %v405
      %v436 = vpack.c.b16 %v409, %v406
      %v437 = vpack.c.b16 %v410, %v407
      %v438 = vpack.c.b16 %v414, %v411
      %v439 = vpack.c.b16 %v415, %v412
      %v440 = vpack.c.b16 %v416, %v413
      %465 = vmatprep.subr.bf16.mxu0 %v418
      %466 = vmatpush1.bf16.msra.mxu0 %v417
      %467 = vmatprep.subr.bf16.mxu0 %v421
      %468 = vmatpush1.bf16.msra.mxu0 %v420
      %469 = vmatprep.subr.bf16.mxu0 %v424
      %470 = vmatpush1.bf16.msra.mxu0 %v423
      %471 = vmatprep.subr.bf16.mxu0 %v427
      %472 = vmatpush1.bf16.msra.mxu0 %v426
      %473 = vmatprep.subr.bf16.mxu0 %v430
      %474 = vmatpush1.bf16.msra.mxu0 %v429
      %475 = vmatprep.subr.bf16.mxu0 %v433
      %476 = vmatpush1.bf16.msra.mxu0 %v432
      %477 = vmatprep.subr.bf16.mxu0 %v436
      %478 = vmatpush1.bf16.msra.mxu0 %v435
      %479 = vmatprep.subr.bf16.mxu0 %v439
      %480 = vmatpush1.bf16.msra.mxu0 %v438
      %481 = vmatprep.subr.bf16.mxu0 0
      %482 = vmatpush1.bf16.msra.mxu0 0
      %483 = vmatprep.subr.bf16.mxu0 0
      %484 = vmatpush1.bf16.msra.mxu0 0
      %485 = vmatprep.subr.bf16.mxu0 0
      %486 = vmatpush1.bf16.msra.mxu0 0
      %487 = vmatprep.subr.bf16.mxu0 0
      %488 = vmatpush1.bf16.msra.mxu0 0
      %489 = vmatprep.subr.bf16.mxu0 0
      %490 = vmatpush1.bf16.msra.mxu0 0
      %491 = vmatprep.subr.bf16.mxu0 0
      %492 = vmatpush1.bf16.msra.mxu0 0
      %493 = vmatprep.subr.bf16.mxu0 0
      %494 = vmatpush1.bf16.msra.mxu0 0
      %495 = vmatprep.subr.bf16.mxu0 0
      %496 = vmatpush1.bf16.msra.mxu0 0
      %497 = vmatprep.mubr.bf16.mxu0 0
      %498 = vmatmul.mubr.bf16.gmra.mrb[0].mxu0 %v335
      %v499 = vpop.f32.mrb[0].mxu0
      %v500 = vadd.f32 %v319, %v499
      %v501 = vpop.f32.mrb[0].mxu0
      %v502 = vadd.f32 %v323, %v501
      %v503 = vpop.f32.mrb[0].mxu0
      %v504 = vadd.f32 %v319, %v503
      %v505 = vpop.f32.mrb[0].mxu0
      %v506 = vadd.f32 %v323, %v505
      %507 = vdwg.mxu0
      %508 = vmatprep.subr.bf16.mxu0 0
      %509 = vmatpush1.bf16.msra.mxu0 %v419
      %510 = vmatprep.subr.bf16.mxu0 0
      %511 = vmatpush1.bf16.msra.mxu0 %v422
      %512 = vmatprep.subr.bf16.mxu0 0
      %513 = vmatpush1.bf16.msra.mxu0 %v425
      %514 = vmatprep.subr.bf16.mxu0 0
      %515 = vmatpush1.bf16.msra.mxu0 %v428
      %516 = vmatprep.subr.bf16.mxu0 0
      %517 = vmatpush1.bf16.msra.mxu0 %v431
      %518 = vmatprep.subr.bf16.mxu0 0
      %519 = vmatpush1.bf16.msra.mxu0 %v434
      %520 = vmatprep.subr.bf16.mxu0 0
      %521 = vmatpush1.bf16.msra.mxu0 %v437
      %522 = vmatprep.subr.bf16.mxu0 0
      %523 = vmatpush1.bf16.msra.mxu0 %v440
      %524 = vmatprep.subr.bf16.mxu0 0
      %525 = vmatpush1.bf16.msra.mxu0 0
      %526 = vmatprep.subr.bf16.mxu0 0
      %527 = vmatpush1.bf16.msra.mxu0 0
      %528 = vmatprep.subr.bf16.mxu0 0
      %529 = vmatpush1.bf16.msra.mxu0 0
      %530 = vmatprep.subr.bf16.mxu0 0
      %531 = vmatpush1.bf16.msra.mxu0 0
      %532 = vmatprep.subr.bf16.mxu0 0
      %533 = vmatpush1.bf16.msra.mxu0 0
      %534 = vmatprep.subr.bf16.mxu0 0
      %535 = vmatpush1.bf16.msra.mxu0 0
      %536 = vmatprep.subr.bf16.mxu0 0
      %537 = vmatpush1.bf16.msra.mxu0 0
      %538 = vmatprep.subr.bf16.mxu0 0
      %539 = vmatpush1.bf16.msra.mxu0 0
      %540 = vmatprep.mubr.bf16.mxu0 0
      %541 = vmatmul.mubr.bf16.gmra.mrb[0].mxu0 %v335
      %v542 = vpop.f32.mrb[0].mxu0
      %v543 = vadd.f32 %v327, %v542
      %v544 = vpop.f32.mrb[0].mxu0
      %v545 = vpop.f32.mrb[0].mxu0
      %v546 = vadd.f32 %v327, %v545
      %v547 = vpop.f32.mrb[0].mxu0
      %548 = vdwg.mxu0
      %v549 = vmul.f32 %v500, 0.088388346
      %v550 = vmul.f32 %v504, 0.088388346
      %v551 = vpack.c.bf16 %v550, %v549
      %v552 = vpack.c.bf16 %v506, %v502
      %v553 = vpack.c.bf16 %v546, %v543
      %554 = vmatprep.subr.bf16.mxu0 0
      %555 = vmatpush1.bf16.xpose.msra.mxu0 %v552
      %556 = vmatprep.subr.bf16.mxu0 0
      %557 = vmatpush1.bf16.xpose.msra.mxu0 0
      %558 = vmatprep.subr.bf16.mxu0 0
      %559 = vmatpush1.bf16.xpose.msra.mxu0 0
      %560 = vmatprep.subr.bf16.mxu0 0
      %561 = vmatpush1.bf16.xpose.msra.mxu0 0
      %562 = vmatprep.subr.bf16.mxu0 0
      %563 = vmatpush1.bf16.xpose.msra.mxu0 0
      %564 = vmatprep.subr.bf16.mxu0 0
      %565 = vmatpush1.bf16.xpose.msra.mxu0 0
      %566 = vmatprep.subr.bf16.mxu0 0
      %567 = vmatpush1.bf16.xpose.msra.mxu0 0
      %568 = vmatprep.subr.bf16.mxu0 0
      %569 = vmatpush1.bf16.xpose.msra.mxu0 0
      %570 = vmatprep.subr.bf16.mxu0 0
      %571 = vmatpush1.bf16.xpose.msra.mxu0 0
      %572 = vmatprep.subr.bf16.mxu0 0
      %573 = vmatpush1.bf16.xpose.msra.mxu0 0
      %574 = vmatprep.subr.bf16.mxu0 0
      %575 = vmatpush1.bf16.xpose.msra.mxu0 0
      %576 = vmatprep.subr.bf16.mxu0 0
      %577 = vmatpush1.bf16.xpose.msra.mxu0 0
      %578 = vmatprep.subr.bf16.mxu0 0
      %579 = vmatpush1.bf16.xpose.msra.mxu0 0
      %580 = vmatprep.subr.bf16.mxu0 0
      %581 = vmatpush1.bf16.xpose.msra.mxu0 0
      %582 = vmatprep.subr.bf16.mxu0 0
      %583 = vmatpush1.bf16.xpose.msra.mxu0 0
      %584 = vmatprep.subr.bf16.mxu0 0
      %585 = vmatpush1.bf16.xpose.msra.mxu0 0
      %586 = vmatprep.mubr.bf16.mxu0 0
      %587 = vmatmul.mubr.bf16.gmra.mrb[0].mxu0 %v551
      %v588 = vpop.f32.mrb[0].mxu0
      %v589 = vadd.f32 0.0, %v588
      %v590 = vpop.f32.mrb[0].mxu0
      %v591 = vpop.f32.mrb[0].mxu0
      %v592 = vadd.f32 0.0, %v591
      %v593 = vpop.f32.mrb[0].mxu0
      %594 = vdwg.mxu0
      %vm595 = vcmask 130048
      %v596 = vsel %vm595, %v589, -inf
      %597 = vmax.xlane.f32.xlu0 %v596
      %v598 = vpop.xlane.xlu0 %597
      %v599 = vsel %vm595, %v592, -inf
      %600 = vmax.xlane.f32.xlu0 %v599
      %v601 = vpop.xlane.xlu0 %600
      %v602 = vsub.f32 %v589, %v598
      %v603 = vsub.f32 %v592, %v601
      %v604 = vmul.f32 %v602, 1.442695
      %v605 = vpow.pop %v604
      %v606 = vmul.f32 %v603, 1.442695
      %v607 = vpow.pop %v606
      %v608 = vsel %vm595, %v605, 0.0
      %609 = vadd.xlane.f32.xlu0 %v608
      %v610 = vpop.xlane.xlu0 %609
      %v611 = vsel %vm595, %v607, 0.0
      %612 = vadd.xlane.f32.xlu0 %v611
      %v613 = vpop.xlane.xlu0 %612
      %v614 = vrcp.pop %v610
      %v615 = vmul.f32 %v605, %v614
      %v616 = vrcp.pop %v613
      %v617 = vmul.f32 %v607, %v616
      %v618 = vpack.c.bf16 %v617, %v615
      %v620 = vsel %vm595, %v618, 0
      %622 = vmatprep.subr.bf16.mxu0 0
      %623 = vmatpush1.bf16.msra.mxu0 %v553
      %624 = vmatprep.subr.bf16.mxu0 0
      %625 = vmatpush1.bf16.msra.mxu0 0
      %626 = vmatprep.subr.bf16.mxu0 0
      %627 = vmatpush1.bf16.msra.mxu0 0
      %628 = vmatprep.subr.bf16.mxu0 0
      %629 = vmatpush1.bf16.msra.mxu0 0
      %630 = vmatprep.subr.bf16.mxu0 0
      %631 = vmatpush1.bf16.msra.mxu0 0
      %632 = vmatprep.subr.bf16.mxu0 0
      %633 = vmatpush1.bf16.msra.mxu0 0
      %634 = vmatprep.subr.bf16.mxu0 0
      %635 = vmatpush1.bf16.msra.mxu0 0
      %636 = vmatprep.subr.bf16.mxu0 0
      %637 = vmatpush1.bf16.msra.mxu0 0
      %638 = vmatprep.subr.bf16.mxu0 0
      %639 = vmatpush1.bf16.msra.mxu0 0
      %640 = vmatprep.subr.bf16.mxu0 0
      %641 = vmatpush1.bf16.msra.mxu0 0
      %642 = vmatprep.subr.bf16.mxu0 0
      %643 = vmatpush1.bf16.msra.mxu0 0
      %644 = vmatprep.subr.bf16.mxu0 0
      %645 = vmatpush1.bf16.msra.mxu0 0
      %646 = vmatprep.subr.bf16.mxu0 0
      %647 = vmatpush1.bf16.msra.mxu0 0
      %648 = vmatprep.subr.bf16.mxu0 0
      %649 = vmatpush1.bf16.msra.mxu0 0
      %650 = vmatprep.subr.bf16.mxu0 0
      %651 = vmatpush1.bf16.msra.mxu0 0
      %652 = vmatprep.subr.bf16.mxu0 0
      %653 = vmatpush1.bf16.msra.mxu0 0
      %654 = vmatprep.mubr.bf16.mxu0 0
      %655 = vmatmul.mubr.bf16.gmra.mrb[0].mxu0 %v620
      %v656 = vpop.f32.mrb[0].mxu0
      %v657 = vadd.f32 0.0, %v656
      %v658 = vpop.f32.mrb[0].mxu0
      %v659 = vpop.f32.mrb[0].mxu0
      %v660 = vadd.f32 0.0, %v659
      %v661 = vpop.f32.mrb[0].mxu0
      %662 = vdwg.mxu0
      %v663 = vpack.c.bf16 %v660, %v657
      %v664 = vld [vmem:[%s3] sm:$0xf]
      %v665 = vld [vmem:[%s3 + $0x4] sm:$0xf]
      %v666 = vld [vmem:[%s3 + $0x8] sm:$0xf]
      %v667 = vld [vmem:[%s3 + $0xc] sm:$0xf]
      %v668 = vld [vmem:[%s3 + $0x10] sm:$0xf]
      %v669 = vld [vmem:[%s3 + $0x14] sm:$0xf]
      %v670 = vld [vmem:[%s3 + $0x18] sm:$0xf]
      %v671 = vld [vmem:[%s3 + $0x1c] sm:$0xf]
      %v672 = vld [vmem:[%s3 + $0x20] sm:$0xf]
      %v673 = vld [vmem:[%s3 + $0x24] sm:$0xf]
      %v674 = vld [vmem:[%s3 + $0x28] sm:$0xf]
      %v675 = vld [vmem:[%s3 + $0x2c] sm:$0xf]
      %v676 = vld [vmem:[%s3 + $0x30] sm:$0xf]
      %v677 = vld [vmem:[%s3 + $0x34] sm:$0xf]
      %v678 = vld [vmem:[%s3 + $0x38] sm:$0xf]
      %v679 = vld [vmem:[%s3 + $0x3c] sm:$0xf]
      %v680 = vld [vmem:[%s4] sm:$0x1]
      %v682 = vlaneseq
      %v683 = vshrl.u32 %v682, 7
      %v684 = vsub.s32 0, %v683
      %v685 = vrot.slane %v680, %v684
      %v703 = vunpack.c.l.b16 %v664
      %v704 = vunpack.c.l.b16 %v665
      %v705 = vunpack.c.l.b16 %v666
      %v706 = vunpack.c.l.b16 %v667
      %v707 = vunpack.c.l.b16 %v668
      %v708 = vunpack.c.l.b16 %v669
      %v709 = vunpack.c.l.b16 %v670
      %v710 = vunpack.c.l.b16 %v671
      %v711 = vunpack.c.l.b16 %v672
      %v712 = vunpack.c.l.b16 %v673
      %v713 = vunpack.c.l.b16 %v674
      %v714 = vunpack.c.l.b16 %v675
      %v715 = vunpack.c.l.b16 %v676
      %v716 = vunpack.c.l.b16 %v677
      %v717 = vunpack.c.l.b16 %v678
      %v718 = vunpack.c.l.b16 %v679
      %v719 = vpack.c.b16 %v704, %v703
      %v720 = vpack.c.b16 %v706, %v705
      %v721 = vpack.c.b16 %v708, %v707
      %v722 = vpack.c.b16 %v710, %v709
      %v723 = vpack.c.b16 %v712, %v711
      %v724 = vpack.c.b16 %v714, %v713
      %v725 = vpack.c.b16 %v716, %v715
      %v726 = vpack.c.b16 %v718, %v717
      %735 = vmatprep.subr.bf16.mxu0 0
      %736 = vmatpush1.bf16.msra.mxu0 %v719
      %737 = vmatprep.subr.bf16.mxu0 0
      %738 = vmatpush1.bf16.msra.mxu0 %v720
      %739 = vmatprep.subr.bf16.mxu0 0
      %740 = vmatpush1.bf16.msra.mxu0 %v721
      %741 = vmatprep.subr.bf16.mxu0 0
      %742 = vmatpush1.bf16.msra.mxu0 %v722
      %743 = vmatprep.subr.bf16.mxu0 0
      %744 = vmatpush1.bf16.msra.mxu0 %v723
      %745 = vmatprep.subr.bf16.mxu0 0
      %746 = vmatpush1.bf16.msra.mxu0 %v724
      %747 = vmatprep.subr.bf16.mxu0 0
      %748 = vmatpush1.bf16.msra.mxu0 %v725
      %749 = vmatprep.subr.bf16.mxu0 0
      %750 = vmatpush1.bf16.msra.mxu0 %v726
      %751 = vmatprep.subr.bf16.mxu0 0
      %752 = vmatpush1.bf16.msra.mxu0 0
      %753 = vmatprep.subr.bf16.mxu0 0
      %754 = vmatpush1.bf16.msra.mxu0 0
      %755 = vmatprep.subr.bf16.mxu0 0
      %756 = vmatpush1.bf16.msra.mxu0 0
      %757 = vmatprep.subr.bf16.mxu0 0
      %758 = vmatpush1.bf16.msra.mxu0 0
      %759 = vmatprep.subr.bf16.mxu0 0
      %760 = vmatpush1.bf16.msra.mxu0 0
      %761 = vmatprep.subr.bf16.mxu0 0
      %762 = vmatpush1.bf16.msra.mxu0 0
      %763 = vmatprep.subr.bf16.mxu0 0
      %764 = vmatpush1.bf16.msra.mxu0 0
      %765 = vmatprep.subr.bf16.mxu0 0
      %766 = vmatpush1.bf16.msra.mxu0 0
      %767 = vmatprep.mubr.bf16.mxu0 0
      %768 = vmatmul.mubr.bf16.gmra.mrb[0].mxu0 %v663
      %v769 = vpop.f32.mrb[0].mxu0
      %v770 = vadd.f32 %v685, %v769
      %v771 = vpop.f32.mrb[0].mxu0
      %v772 = vpop.f32.mrb[0].mxu0
      %v773 = vadd.f32 %v685, %v772
      %v774 = vpop.f32.mrb[0].mxu0
      %775 = vdwg.mxu0
      %v776 = vunpack.c.l.bf16 %v280
      %v777 = vunpack.c.l.bf16 %v281
      %v778 = vadd.f32 %v770, %v776
      %v779 = vadd.f32 %v773, %v777
      %v780 = vld [vmem:[%s5] sm:$0x1]
      %v781 = vld [vmem:[%s6] sm:$0x1]
      %782 = vadd.xlane.f32.xlu0 %v778
      %v783 = vpop.xlane.xlu0 %782
      %784 = vadd.xlane.f32.xlu0 %v779
      %v785 = vpop.xlane.xlu0 %784
      %v786 = vrcp.pop 128.0
      %v787 = vmul.f32 %v783, %v786
      %v788 = vmul.f32 %v785, %v786
      %v789 = vsub.f32 %v778, %v787
      %v790 = vsub.f32 %v779, %v788
      %v791 = vmul.f32 %v789, %v789
      %v792 = vmul.f32 %v790, %v790
      %793 = vadd.xlane.f32.xlu0 %v791
      %v794 = vpop.xlane.xlu0 %793
      %795 = vadd.xlane.f32.xlu0 %v792
      %v796 = vpop.xlane.xlu0 %795
      %v797 = vmul.f32 %v794, %v786
      %v798 = vmul.f32 %v796, %v786
      %v799 = vadd.f32 %v797, 1e-06
      %v800 = vadd.f32 %v798, 1e-06
      %v801 = vrsqrt.pop %v799
      %v802 = vrsqrt.pop %v800
      %v803 = vmul.f32 %v789, %v801
      %v804 = vmul.f32 %v790, %v802
      %v806 = vlaneseq
      %v807 = vshrl.u32 %v806, 7
      %v808 = vsub.s32 0, %v807
      %v809 = vrot.slane %v780, %v808
      %v811 = vmul.f32 %v803, %v809
      %v812 = vmul.f32 %v804, %v809
      %v814 = vlaneseq
      %v815 = vshrl.u32 %v814, 7
      %v816 = vsub.s32 0, %v815
      %v817 = vrot.slane %v781, %v816
      %v819 = vadd.f32 %v811, %v817
      %v820 = vadd.f32 %v812, %v817
      %v821 = vpack.c.bf16 %v820, %v819
      %v823 = vunpack.c.l.b16 %v821
      %v824 = vunpack.c.h.b16 %v821
      %v825 = vpack.c.b16 %v823, %v823
      %v826 = vpack.c.b16 %v824, %v824
      %829 = vst [vmem:[%s278] sm:$0xf] %v825
      %830 = vst [vmem:[%s278 + $0x4] sm:$0xf] %v826
      %p831 = scmp.lt.s32.totalorder %s18, 1
      %s832 = scalar_select %p831, %s18, 1
      %s833 = smul.addr %s832, 2
      %s834 = smul.addr %s833, 4
      %s835 = scalar_lea.vmem %s7, %s834
      // Predicated region
      $region49: #{forward.4} parent=47 // pred_check
        %p836 = pneg %p188
      $region50: #{forward.4} parent=47 // pred_check_branch
        %838 = sbr.rel (%p836) target = $region52
      $region51: #{forward.4} parent=47 // pred_region
        _
      $region52: #{forward.4} parent=47 // pred_fallthru
        _
    $region48: #{forward.4} parent=5 // pred_fallthru
      _
    %p839 = scmp.le.s32.totalorder 2, %s13
    // Predicated region
    $region53: #{forward.4} parent=5 // pred_check
      %p840 = pneg %p839
    $region54: #{forward.4} parent=5 // pred_check_branch
      %842 = sbr.rel (%p840) target = $region56
    $region55: #{forward.4} parent=5 // pred_region
      %s843 = ssub.s32 %s13, 2
      // Predicated region
      $region57: #{forward.4} parent=55 // pred_check
        %p844 = pneg %p194
      $region58: #{forward.4} parent=55 // pred_check_branch
        %846 = sbr.rel (%p844) target = $region60
      $region59: #{forward.4} parent=55 // pred_region
        %p847 = scmp.lt.s32.totalorder %s19, 1
        %s848 = scalar_select %p847, %s19, 1
        %s849 = smul.addr %s848, 2
        %s850 = smul.addr %s849, 4
        %s851 = scalar_lea.vmem %s7, %s850
      $region60: #{forward.4} parent=55 // pred_fallthru
        _
    $region56: #{forward.4} parent=5 // pred_fallthru
      _
  $region6: #{forward.4} parent=0 // loop_footer
    %s17 = sadd.s32 1, %s13
  $region7: #{forward.4} parent=0 // loop_footer_branch
    %12 = sbr.rel target = $region3
  $region8: #{forward.4} parent=0 // loop_exit
    _

// kernel: forward.5
$region0: #{forward.5}
  #allocation0 [shape = 'u32[]', space=smem, size = 0x4, offset = 0x4, fixed_abs, tag = 'smem constant byte address 0x4 - core index']
  #allocation1 [shape = 'u32[144,128]{1,0:T(1,128)}', space=vmem, size = 0x12000, scoped, tag = 'internal scratch']
  %s0 = inlined_call_operand.vmem [shape: bf16[32,128], index: 0, kind: input, shape index: {}]
  %s1 = inlined_call_operand.vmem [shape: bf16[128,256], index: 1, kind: input, shape index: {}]
  %s2 = inlined_call_operand.vmem [shape: f32[1,256], index: 2, kind: input, shape index: {}, may-alias: {2,8}]
  %s3 = inlined_call_operand.vmem [shape: bf16[256,128], index: 3, kind: input, shape index: {}]
  %s4 = inlined_call_operand.vmem [shape: f32[1,128], index: 4, kind: input, shape index: {}, may-alias: {4,6}]
  %s5 = inlined_call_operand.vmem [shape: f32[1,128], index: 5, kind: input, shape index: {}]
  %s6 = inlined_call_operand.vmem [shape: f32[1,128], index: 6, kind: input, shape index: {}, may-alias: {4,6}]
  %s7 = inlined_call_operand.vmem [shape: bf16[128,256], index: 7, kind: input, shape index: {}]
  %s8 = inlined_call_operand.vmem [shape: f32[1,256], index: 8, kind: input, shape index: {}, may-alias: {2,8}]
  %s9 = inlined_call_operand.vmem [shape: bf16[32,128], index: 9, kind: output, shape index: {0}]
  %s10 = inlined_call_operand.vmem [shape: bf16[32,128], index: 10, kind: output, shape index: {1}]
  %11 = xla_tuple %s9, %s10
  %s12 = sld [smem:[#allocation0]]
  $region54: #{forward.5} parent=0
    _
  %s14 = ssub.s32 1, %s12
  %s15 = scalar_select 0, %s14, %s12
  // Predicated region
  $region2: #{forward.5} parent=0 // pred_check
    _
  $region3: #{forward.5} parent=0 // pred_check_branch
    %17 = sbr.rel (0) target = $region5
  $region4: #{forward.5} parent=0 // pred_region
    _
  $region5: #{forward.5} parent=0 // pred_fallthru
    _
  // Predicated region
  $region6: #{forward.5} parent=0 // pred_check
    _
  $region7: #{forward.5} parent=0 // pred_check_branch
    %19 = sbr.rel (0) target = $region9
  $region8: #{forward.5} parent=0 // pred_region
    _
  $region9: #{forward.5} parent=0 // pred_fallthru
    _
  // Predicated region
  $region10: #{forward.5} parent=0 // pred_check
    _
  $region11: #{forward.5} parent=0 // pred_check_branch
    %21 = sbr.rel (0) target = $region13
  $region12: #{forward.5} parent=0 // pred_region
    _
  $region13: #{forward.5} parent=0 // pred_fallthru
    _
  // Predicated region
  $region14: #{forward.5} parent=0 // pred_check
    _
  $region15: #{forward.5} parent=0 // pred_check_branch
    %23 = sbr.rel (0) target = $region17
  $region16: #{forward.5} parent=0 // pred_region
    _
  $region17: #{forward.5} parent=0 // pred_fallthru
    _
  // Predicated region
  $region18: #{forward.5} parent=0 // pred_check
    _
  $region19: #{forward.5} parent=0 // pred_check_branch
    %25 = sbr.rel (0) target = $region21
  $region20: #{forward.5} parent=0 // pred_region
    _
  $region21: #{forward.5} parent=0 // pred_fallthru
    _
  // Predicated region
  $region22: #{forward.5} parent=0 // pred_check
    _
  $region23: #{forward.5} parent=0 // pred_check_branch
    %27 = sbr.rel (0) target = $region25
  $region24: #{forward.5} parent=0 // pred_region
    _
  $region25: #{forward.5} parent=0 // pred_fallthru
    _
  // Predicated region
  $region26: #{forward.5} parent=0 // pred_check
    _
  $region27: #{forward.5} parent=0 // pred_check_branch
    %29 = sbr.rel (0) target = $region29
  $region28: #{forward.5} parent=0 // pred_region
    _
  $region29: #{forward.5} parent=0 // pred_fallthru
    _
  // Predicated region
  $region30: #{forward.5} parent=0 // pred_check
    _
  $region31: #{forward.5} parent=0 // pred_check_branch
    %31 = sbr.rel (0) target = $region33
  $region32: #{forward.5} parent=0 // pred_region
    _
  $region33: #{forward.5} parent=0 // pred_fallthru
    _
  // Predicated region
  $region34: #{forward.5} parent=0 // pred_check
    _
  $region35: #{forward.5} parent=0 // pred_check_branch
    %33 = sbr.rel (0) target = $region37
  $region36: #{forward.5} parent=0 // pred_region
    _
  $region37: #{forward.5} parent=0 // pred_fallthru
    _
  %v35 = vld [vmem:[%s0] sm:$0xf]
  %v36 = vld [vmem:[%s0 + $0x4] sm:$0xf]
  %v37 = vld [vmem:[%s0 + $0x8] sm:$0xf]
  %v38 = vld [vmem:[%s0 + $0xc] sm:$0xf]
  %v39 = vld [vmem:[%s1] sm:$0xff]
  %v40 = vld [vmem:[%s1 + $0x8] sm:$0xff]
  %v41 = vld [vmem:[%s1 + $0x10] sm:$0xff]
  %v42 = vld [vmem:[%s1 + $0x18] sm:$0xff]
  %v43 = vld [vmem:[%s1 + $0x20] sm:$0xff]
  %v44 = vld [vmem:[%s1 + $0x28] sm:$0xff]
  %v45 = vld [vmem:[%s1 + $0x30] sm:$0xff]
  %v46 = vld [vmem:[%s1 + $0x38] sm:$0xff]
  %v47 = vld [vmem:[%s1 + $0x40] sm:$0xff]
  %v48 = vld [vmem:[%s1 + $0x48] sm:$0xff]
  %v49 = vld [vmem:[%s1 + $0x50] sm:$0xff]
  %v50 = vld [vmem:[%s1 + $0x58] sm:$0xff]
  %v51 = vld [vmem:[%s1 + $0x60] sm:$0xff]
  %v52 = vld [vmem:[%s1 + $0x68] sm:$0xff]
  %v53 = vld [vmem:[%s1 + $0x70] sm:$0xff]
  %v54 = vld [vmem:[%s1 + $0x78] sm:$0xff]
  %v55 = vld [vmem:[%s2] sm:$0x3]
  %v57 = vlaneseq
  %v58 = vshrl.u32 %v57, 7
  %v59 = vsub.s32 0, %v58
  %v60 = vrot.slane %v55, %v59
  %v61 = vlaneseq
  %v62 = vshrl.u32 %v61, 7
  %v63 = vsub.s32 1, %v62
  %v64 = vrot.slane %v55, %v63
  %v71 = vunpack.c.l.b16 %v35
  %v72 = vunpack.c.l.b16 %v36
  %v73 = vunpack.c.l.b16 %v37
  %v74 = vunpack.c.l.b16 %v38
  %v75 = vpack.c.b16 %v72, %v71
  %v76 = vpack.c.b16 %v74, %v73
  %v95 = vunpack.c.l.b16 %v39
  %v96 = vunpack.c.h.b16 %v39
  %v97 = vunpack.c.l.b16 %v40
  %v98 = vunpack.c.h.b16 %v40
  %v99 = vunpack.c.l.b16 %v41
  %v100 = vunpack.c.h.b16 %v41
  %v101 = vunpack.c.l.b16 %v42
  %v102 = vunpack.c.h.b16 %v42
  %v103 = vunpack.c.l.b16 %v43
  %v104 = vunpack.c.h.b16 %v43
  %v105 = vunpack.c.l.b16 %v44
  %v106 = vunpack.c.h.b16 %v44
  %v107 = vunpack.c.l.b16 %v45
  %v108 = vunpack.c.h.b16 %v45
  %v109 = vunpack.c.l.b16 %v46
  %v110 = vunpack.c.h.b16 %v46
  %v111 = vunpack.c.l.b16 %v47
  %v112 = vunpack.c.h.b16 %v47
  %v113 = vunpack.c.l.b16 %v48
  %v114 = vunpack.c.h.b16 %v48
  %v115 = vunpack.c.l.b16 %v49
  %v116 = vunpack.c.h.b16 %v49
  %v117 = vunpack.c.l.b16 %v50
  %v118 = vunpack.c.h.b16 %v50
  %v119 = vunpack.c.l.b16 %v51
  %v120 = vunpack.c.h.b16 %v51
  %v121 = vunpack.c.l.b16 %v52
  %v122 = vunpack.c.h.b16 %v52
  %v123 = vunpack.c.l.b16 %v53
  %v124 = vunpack.c.h.b16 %v53
  %v125 = vunpack.c.l.b16 %v54
  %v126 = vunpack.c.h.b16 %v54
  %v127 = vpack.c.b16 %v97, %v95
  %v128 = vpack.c.b16 %v98, %v96
  %v129 = vpack.c.b16 %v101, %v99
  %v130 = vpack.c.b16 %v102, %v100
  %v131 = vpack.c.b16 %v105, %v103
  %v132 = vpack.c.b16 %v106, %v104
  %v133 = vpack.c.b16 %v109, %v107
  %v134 = vpack.c.b16 %v110, %v108
  %v135 = vpack.c.b16 %v113, %v111
  %v136 = vpack.c.b16 %v114, %v112
  %v137 = vpack.c.b16 %v117, %v115
  %v138 = vpack.c.b16 %v118, %v116
  %v139 = vpack.c.b16 %v121, %v119
  %v140 = vpack.c.b16 %v122, %v120
  %v141 = vpack.c.b16 %v125, %v123
  %v142 = vpack.c.b16 %v126, %v124
  %159 = vmatprep.subr.bf16.mxu0 %v128
  %160 = vmatpush1.bf16.msra.mxu0 %v127
  %161 = vmatprep.subr.bf16.mxu0 %v130
  %162 = vmatpush1.bf16.msra.mxu0 %v129
  %163 = vmatprep.subr.bf16.mxu0 %v132
  %164 = vmatpush1.bf16.msra.mxu0 %v131
  %165 = vmatprep.subr.bf16.mxu0 %v134
  %166 = vmatpush1.bf16.msra.mxu0 %v133
  %167 = vmatprep.subr.bf16.mxu0 %v136
  %168 = vmatpush1.bf16.msra.mxu0 %v135
  %169 = vmatprep.subr.bf16.mxu0 %v138
  %170 = vmatpush1.bf16.msra.mxu0 %v137
  %171 = vmatprep.subr.bf16.mxu0 %v140
  %172 = vmatpush1.bf16.msra.mxu0 %v139
  %173 = vmatprep.subr.bf16.mxu0 %v142
  %174 = vmatpush1.bf16.msra.mxu0 %v141
  %175 = vmatprep.subr.bf16.mxu0 0
  %176 = vmatpush1.bf16.msra.mxu0 0
  %177 = vmatprep.subr.bf16.mxu0 0
  %178 = vmatpush1.bf16.msra.mxu0 0
  %179 = vmatprep.subr.bf16.mxu0 0
  %180 = vmatpush1.bf16.msra.mxu0 0
  %181 = vmatprep.subr.bf16.mxu0 0
  %182 = vmatpush1.bf16.msra.mxu0 0
  %183 = vmatprep.subr.bf16.mxu0 0
  %184 = vmatpush1.bf16.msra.mxu0 0
  %185 = vmatprep.subr.bf16.mxu0 0
  %186 = vmatpush1.bf16.msra.mxu0 0
  %187 = vmatprep.subr.bf16.mxu0 0
  %188 = vmatpush1.bf16.msra.mxu0 0
  %189 = vmatprep.subr.bf16.mxu0 0
  %190 = vmatpush1.bf16.msra.mxu0 0
  %191 = vmatprep.mubr.bf16.mxu0 0
  %192 = vmatmul.mubr.bf16.gmra.mrb[0].mxu0 %v75
  %v193 = vpop.f32.mrb[0].mxu0
  %v194 = vadd.f32 %v60, %v193
  %v195 = vpop.f32.mrb[0].mxu0
  %v196 = vadd.f32 %v64, %v195
  %v197 = vpop.f32.mrb[0].mxu0
  %v198 = vadd.f32 %v60, %v197
  %v199 = vpop.f32.mrb[0].mxu0
  %v200 = vadd.f32 %v64, %v199
  %201 = vmatprep.mubr.bf16.mxu0 0
  %202 = vmatmul.mubr.bf16.gmra.mrb[0].mxu0 %v76
  %v203 = vpop.f32.mrb[0].mxu0
  %v204 = vadd.f32 %v60, %v203
  %v205 = vpop.f32.mrb[0].mxu0
  %v206 = vadd.f32 %v64, %v205
  %v207 = vpop.f32.mrb[0].mxu0
  %v208 = vadd.f32 %v60, %v207
  %v209 = vpop.f32.mrb[0].mxu0
  %v210 = vadd.f32 %v64, %v209
  %211 = vdwg.mxu0
  %v212 = vmax.f32 %v194, 0.0
  %v213 = vmax.f32 %v196, 0.0
  %v214 = vmax.f32 %v198, 0.0
  %v215 = vmax.f32 %v200, 0.0
  %v216 = vmax.f32 %v204, 0.0
  %v217 = vmax.f32 %v206, 0.0
  %v218 = vmax.f32 %v208, 0.0
  %v219 = vmax.f32 %v210, 0.0
  %v220 = vpack.c.bf16 %v214, %v212
  %v221 = vpack.c.bf16 %v215, %v213
  %v222 = vpack.c.bf16 %v218, %v216
  %v223 = vpack.c.bf16 %v219, %v217
  %v224 = vld [vmem:[%s3] sm:$0xf]
  %v225 = vld [vmem:[%s3 + $0x4] sm:$0xf]
  %v226 = vld [vmem:[%s3 + $0x8] sm:$0xf]
  %v227 = vld [vmem:[%s3 + $0xc] sm:$0xf]
  %v228 = vld [vmem:[%s3 + $0x10] sm:$0xf]
  %v229 = vld [vmem:[%s3 + $0x14] sm:$0xf]
  %v230 = vld [vmem:[%s3 + $0x18] sm:$0xf]
  %v231 = vld [vmem:[%s3 + $0x1c] sm:$0xf]
  %v232 = vld [vmem:[%s3 + $0x20] sm:$0xf]
  %v233 = vld [vmem:[%s3 + $0x24] sm:$0xf]
  %v234 = vld [vmem:[%s3 + $0x28] sm:$0xf]
  %v235 = vld [vmem:[%s3 + $0x2c] sm:$0xf]
  %v236 = vld [vmem:[%s3 + $0x30] sm:$0xf]
  %v237 = vld [vmem:[%s3 + $0x34] sm:$0xf]
  %v238 = vld [vmem:[%s3 + $0x38] sm:$0xf]
  %v239 = vld [vmem:[%s3 + $0x3c] sm:$0xf]
  %v240 = vld [vmem:[%s3 + $0x40] sm:$0xf]
  %v241 = vld [vmem:[%s3 + $0x44] sm:$0xf]
  %v242 = vld [vmem:[%s3 + $0x48] sm:$0xf]
  %v243 = vld [vmem:[%s3 + $0x4c] sm:$0xf]
  %v244 = vld [vmem:[%s3 + $0x50] sm:$0xf]
  %v245 = vld [vmem:[%s3 + $0x54] sm:$0xf]
  %v246 = vld [vmem:[%s3 + $0x58] sm:$0xf]
  %v247 = vld [vmem:[%s3 + $0x5c] sm:$0xf]
  %v248 = vld [vmem:[%s3 + $0x60] sm:$0xf]
  %v249 = vld [vmem:[%s3 + $0x64] sm:$0xf]
  %v250 = vld [vmem:[%s3 + $0x68] sm:$0xf]
  %v251 = vld [vmem:[%s3 + $0x6c] sm:$0xf]
  %v252 = vld [vmem:[%s3 + $0x70] sm:$0xf]
  %v253 = vld [vmem:[%s3 + $0x74] sm:$0xf]
  %v254 = vld [vmem:[%s3 + $0x78] sm:$0xf]
  %v255 = vld [vmem:[%s3 + $0x7c] sm:$0xf]
  %v256 = vld [vmem:[%s4] sm:$0x1]
  %v258 = vlaneseq
  %v259 = vshrl.u32 %v258, 7
  %v260 = vsub.s32 0, %v259
  %v261 = vrot.slane %v256, %v260
  %v295 = vunpack.c.l.b16 %v224
  %v296 = vunpack.c.l.b16 %v225
  %v297 = vunpack.c.l.b16 %v226
  %v298 = vunpack.c.l.b16 %v227
  %v299 = vunpack.c.l.b16 %v228
  %v300 = vunpack.c.l.b16 %v229
  %v301 = vunpack.c.l.b16 %v230
  %v302 = vunpack.c.l.b16 %v231
  %v303 = vunpack.c.l.b16 %v232
  %v304 = vunpack.c.l.b16 %v233
  %v305 = vunpack.c.l.b16 %v234
  %v306 = vunpack.c.l.b16 %v235
  %v307 = vunpack.c.l.b16 %v236
  %v308 = vunpack.c.l.b16 %v237
  %v309 = vunpack.c.l.b16 %v238
  %v310 = vunpack.c.l.b16 %v239
  %v311 = vunpack.c.l.b16 %v240
  %v312 = vunpack.c.l.b16 %v241
  %v313 = vunpack.c.l.b16 %v242
  %v314 = vunpack.c.l.b16 %v243
  %v315 = vunpack.c.l.b16 %v244
  %v316 = vunpack.c.l.b16 %v245
  %v317 = vunpack.c.l.b16 %v246
  %v318 = vunpack.c.l.b16 %v247
  %v319 = vunpack.c.l.b16 %v248
  %v320 = vunpack.c.l.b16 %v249
  %v321 = vunpack.c.l.b16 %v250
  %v322 = vunpack.c.l.b16 %v251
  %v323 = vunpack.c.l.b16 %v252
  %v324 = vunpack.c.l.b16 %v253
  %v325 = vunpack.c.l.b16 %v254
  %v326 = vunpack.c.l.b16 %v255
  %v327 = vpack.c.b16 %v296, %v295
  %v328 = vpack.c.b16 %v298, %v297
  %v329 = vpack.c.b16 %v300, %v299
  %v330 = vpack.c.b16 %v302, %v301
  %v331 = vpack.c.b16 %v304, %v303
  %v332 = vpack.c.b16 %v306, %v305
  %v333 = vpack.c.b16 %v308, %v307
  %v334 = vpack.c.b16 %v310, %v309
  %v335 = vpack.c.b16 %v312, %v311
  %v336 = vpack.c.b16 %v314, %v313
  %v337 = vpack.c.b16 %v316, %v315
  %v338 = vpack.c.b16 %v318, %v317
  %v339 = vpack.c.b16 %v320, %v319
  %v340 = vpack.c.b16 %v322, %v321
  %v341 = vpack.c.b16 %v324, %v323
  %v342 = vpack.c.b16 %v326, %v325
  %359 = vmatprep.subr.bf16.mxu0 0
  %360 = vmatpush1.bf16.msra.mxu0 %v327
  %361 = vmatprep.subr.bf16.mxu0 0
  %362 = vmatpush1.bf16.msra.mxu0 %v328
  %363 = vmatprep.subr.bf16.mxu0 0
  %364 = vmatpush1.bf16.msra.mxu0 %v329
  %365 = vmatprep.subr.bf16.mxu0 0
  %366 = vmatpush1.bf16.msra.mxu0 %v330
  %367 = vmatprep.subr.bf16.mxu0 0
  %368 = vmatpush1.bf16.msra.mxu0 %v331
  %369 = vmatprep.subr.bf16.mxu0 0
  %370 = vmatpush1.bf16.msra.mxu0 %v332
  %371 = vmatprep.subr.bf16.mxu0 0
  %372 = vmatpush1.bf16.msra.mxu0 %v333
  %373 = vmatprep.subr.bf16.mxu0 0
  %374 = vmatpush1.bf16.msra.mxu0 %v334
  %375 = vmatprep.subr.bf16.mxu0 0
  %376 = vmatpush1.bf16.msra.mxu0 %v335
  %377 = vmatprep.subr.bf16.mxu0 0
  %378 = vmatpush1.bf16.msra.mxu0 %v336
  %379 = vmatprep.subr.bf16.mxu0 0
  %380 = vmatpush1.bf16.msra.mxu0 %v337
  %381 = vmatprep.subr.bf16.mxu0 0
  %382 = vmatpush1.bf16.msra.mxu0 %v338
  %383 = vmatprep.subr.bf16.mxu0 0
  %384 = vmatpush1.bf16.msra.mxu0 %v339
  %385 = vmatprep.subr.bf16.mxu0 0
  %386 = vmatpush1.bf16.msra.mxu0 %v340
  %387 = vmatprep.subr.bf16.mxu0 0
  %388 = vmatpush1.bf16.msra.mxu0 %v341
  %389 = vmatprep.subr.bf16.mxu0 0
  %390 = vmatpush1.bf16.msra.mxu0 %v342
  %391 = vmatprep.mubr.bf16.mxu0 %v221
  %392 = vmatmul.mubr.bf16.gmra.mrb[0].mxu0 %v220
  %v393 = vpop.f32.mrb[0].mxu0
  %v394 = vadd.f32 %v261, %v393
  %v395 = vpop.f32.mrb[0].mxu0
  %v396 = vpop.f32.mrb[0].mxu0
  %v397 = vadd.f32 %v261, %v396
  %v398 = vpop.f32.mrb[0].mxu0
  %399 = vmatprep.mubr.bf16.mxu0 %v223
  %400 = vmatmul.mubr.bf16.gmra.mrb[0].mxu0 %v222
  %v401 = vpop.f32.mrb[0].mxu0
  %v402 = vadd.f32 %v261, %v401
  %v403 = vpop.f32.mrb[0].mxu0
  %v404 = vpop.f32.mrb[0].mxu0
  %v405 = vadd.f32 %v261, %v404
  %v406 = vpop.f32.mrb[0].mxu0
  %407 = vdwg.mxu0
  %v408 = vunpack.c.l.bf16 %v35
  %v409 = vunpack.c.l.bf16 %v36
  %v410 = vunpack.c.l.bf16 %v37
  %v411 = vunpack.c.l.bf16 %v38
  %v412 = vadd.f32 %v394, %v408
  %v413 = vadd.f32 %v397, %v409
  %v414 = vadd.f32 %v402, %v410
  %v415 = vadd.f32 %v405, %v411
  %v416 = vld [vmem:[%s5] sm:$0x1]
  %v417 = vld [vmem:[%s6] sm:$0x1]
  %418 = vadd.xlane.f32.xlu0 %v412
  %v419 = vpop.xlane.xlu0 %418
  %420 = vadd.xlane.f32.xlu0 %v413
  %v421 = vpop.xlane.xlu0 %420
  %422 = vadd.xlane.f32.xlu0 %v414
  %v423 = vpop.xlane.xlu0 %422
  %424 = vadd.xlane.f32.xlu0 %v415
  %v425 = vpop.xlane.xlu0 %424
  %v426 = vrcp.pop 128.0
  %v427 = vmul.f32 %v419, %v426
  %v428 = vmul.f32 %v421, %v426
  %v429 = vmul.f32 %v423, %v426
  %v430 = vmul.f32 %v425, %v426
  %v431 = vsub.f32 %v412, %v427
  %v432 = vsub.f32 %v413, %v428
  %v433 = vsub.f32 %v414, %v429
  %v434 = vsub.f32 %v415, %v430
  %v435 = vmul.f32 %v431, %v431
  %v436 = vmul.f32 %v432, %v432
  %v437 = vmul.f32 %v433, %v433
  %v438 = vmul.f32 %v434, %v434
  %439 = vadd.xlane.f32.xlu0 %v435
  %v440 = vpop.xlane.xlu0 %439
  %441 = vadd.xlane.f32.xlu0 %v436
  %v442 = vpop.xlane.xlu0 %441
  %443 = vadd.xlane.f32.xlu0 %v437
  %v444 = vpop.xlane.xlu0 %443
  %445 = vadd.xlane.f32.xlu0 %v438
  %v446 = vpop.xlane.xlu0 %445
  %v447 = vmul.f32 %v440, %v426
  %v448 = vmul.f32 %v442, %v426
  %v449 = vmul.f32 %v444, %v426
  %v450 = vmul.f32 %v446, %v426
  %v451 = vadd.f32 %v447, 1e-06
  %v452 = vadd.f32 %v448, 1e-06
  %v453 = vadd.f32 %v449, 1e-06
  %v454 = vadd.f32 %v450, 1e-06
  %v455 = vrsqrt.pop %v451
  %v456 = vrsqrt.pop %v452
  %v457 = vrsqrt.pop %v453
  %v458 = vrsqrt.pop %v454
  %v459 = vmul.f32 %v431, %v455
  %v460 = vmul.f32 %v432, %v456
  %v461 = vmul.f32 %v433, %v457
  %v462 = vmul.f32 %v434, %v458
  %v464 = vlaneseq
  %v465 = vshrl.u32 %v464, 7
  %v466 = vsub.s32 0, %v465
  %v467 = vrot.slane %v416, %v466
  %v469 = vmul.f32 %v459, %v467
  %v470 = vmul.f32 %v460, %v467
  %v471 = vmul.f32 %v461, %v467
  %v472 = vmul.f32 %v462, %v467
  %v474 = vlaneseq
  %v475 = vshrl.u32 %v474, 7
  %v476 = vsub.s32 0, %v475
  %v477 = vrot.slane %v417, %v476
  %v479 = vadd.f32 %v469, %v477
  %v480 = vadd.f32 %v470, %v477
  %v481 = vadd.f32 %v471, %v477
  %v482 = vadd.f32 %v472, %v477
  %v483 = vpack.c.bf16 %v480, %v479
  %v484 = vpack.c.bf16 %v482, %v481
  %v485 = vld [vmem:[%s7] sm:$0xff]
  %v486 = vld [vmem:[%s7 + $0x8] sm:$0xff]
  %v487 = vld [vmem:[%s7 + $0x10] sm:$0xff]
  %v488 = vld [vmem:[%s7 + $0x18] sm:$0xff]
  %v489 = vld [vmem:[%s7 + $0x20] sm:$0xff]
  %v490 = vld [vmem:[%s7 + $0x28] sm:$0xff]
  %v491 = vld [vmem:[%s7 + $0x30] sm:$0xff]
  %v492 = vld [vmem:[%s7 + $0x38] sm:$0xff]
  %v493 = vld [vmem:[%s7 + $0x40] sm:$0xff]
  %v494 = vld [vmem:[%s7 + $0x48] sm:$0xff]
  %v495 = vld [vmem:[%s7 + $0x50] sm:$0xff]
  %v496 = vld [vmem:[%s7 + $0x58] sm:$0xff]
  %v497 = vld [vmem:[%s7 + $0x60] sm:$0xff]
  %v498 = vld [vmem:[%s7 + $0x68] sm:$0xff]
  %v499 = vld [vmem:[%s7 + $0x70] sm:$0xff]
  %v500 = vld [vmem:[%s7 + $0x78] sm:$0xff]
  %v501 = vld [vmem:[%s8] sm:$0x3]
  %v503 = vlaneseq
  %v504 = vshrl.u32 %v503, 7
  %v505 = vsub.s32 0, %v504
  %v506 = vrot.slane %v501, %v505
  %v507 = vlaneseq
  %v508 = vshrl.u32 %v507, 7
  %v509 = vsub.s32 1, %v508
  %v510 = vrot.slane %v501, %v509
  %v529 = vunpack.c.l.b16 %v485
  %v530 = vunpack.c.h.b16 %v485
  %v531 = vunpack.c.l.b16 %v486
  %v532 = vunpack.c.h.b16 %v486
  %v533 = vunpack.c.l.b16 %v487
  %v534 = vunpack.c.h.b16 %v487
  %v535 = vunpack.c.l.b16 %v488
  %v536 = vunpack.c.h.b16 %v488
  %v537 = vunpack.c.l.b16 %v489
  %v538 = vunpack.c.h.b16 %v489
  %v539 = vunpack.c.l.b16 %v490
  %v540 = vunpack.c.h.b16 %v490
  %v541 = vunpack.c.l.b16 %v491
  %v542 = vunpack.c.h.b16 %v491
  %v543 = vunpack.c.l.b16 %v492
  %v544 = vunpack.c.h.b16 %v492
  %v545 = vunpack.c.l.b16 %v493
  %v546 = vunpack.c.h.b16 %v493
  %v547 = vunpack.c.l.b16 %v494
  %v548 = vunpack.c.h.b16 %v494
  %v549 = vunpack.c.l.b16 %v495
  %v550 = vunpack.c.h.b16 %v495
  %v551 = vunpack.c.l.b16 %v496
  %v552 = vunpack.c.h.b16 %v496
  %v553 = vunpack.c.l.b16 %v497
  %v554 = vunpack.c.h.b16 %v497
  %v555 = vunpack.c.l.b16 %v498
  %v556 = vunpack.c.h.b16 %v498
  %v557 = vunpack.c.l.b16 %v499
  %v558 = vunpack.c.h.b16 %v499
  %v559 = vunpack.c.l.b16 %v500
  %v560 = vunpack.c.h.b16 %v500
  %v561 = vpack.c.b16 %v531, %v529
  %v562 = vpack.c.b16 %v532, %v530
  %v563 = vpack.c.b16 %v535, %v533
  %v564 = vpack.c.b16 %v536, %v534
  %v565 = vpack.c.b16 %v539, %v537
  %v566 = vpack.c.b16 %v540, %v538
  %v567 = vpack.c.b16 %v543, %v541
  %v568 = vpack.c.b16 %v544, %v542
  %v569 = vpack.c.b16 %v547, %v545
  %v570 = vpack.c.b16 %v548, %v546
  %v571 = vpack.c.b16 %v551, %v549
  %v572 = vpack.c.b16 %v552, %v550
  %v573 = vpack.c.b16 %v555, %v553
  %v574 = vpack.c.b16 %v556, %v554
  %v575 = vpack.c.b16 %v559, %v557
  %v576 = vpack.c.b16 %v560, %v558
  %593 = vmatprep.subr.bf16.mxu0 %v562
  %594 = vmatpush1.bf16.msra.mxu0 %v561
  %595 = vmatprep.subr.bf16.mxu0 %v564
  %596 = vmatpush1.bf16.msra.mxu0 %v563
  %597 = vmatprep.subr.bf16.mxu0 %v566
  %598 = vmatpush1.bf16.msra.mxu0 %v565
  %599 = vmatprep.subr.bf16.mxu0 %v568
  %600 = vmatpush1.bf16.msra.mxu0 %v567
  %601 = vmatprep.subr.bf16.mxu0 %v570
  %602 = vmatpush1.bf16.msra.mxu0 %v569
  %603 = vmatprep.subr.bf16.mxu0 %v572
  %604 = vmatpush1.bf16.msra.mxu0 %v571
  %605 = vmatprep.subr.bf16.mxu0 %v574
  %606 = vmatpush1.bf16.msra.mxu0 %v573
  %607 = vmatprep.subr.bf16.mxu0 %v576
  %608 = vmatpush1.bf16.msra.mxu0 %v575
  %609 = vmatprep.subr.bf16.mxu0 0
  %610 = vmatpush1.bf16.msra.mxu0 0
  %611 = vmatprep.subr.bf16.mxu0 0
  %612 = vmatpush1.bf16.msra.mxu0 0
  %613 = vmatprep.subr.bf16.mxu0 0
  %614 = vmatpush1.bf16.msra.mxu0 0
  %615 = vmatprep.subr.bf16.mxu0 0
  %616 = vmatpush1.bf16.msra.mxu0 0
  %617 = vmatprep.subr.bf16.mxu0 0
  %618 = vmatpush1.bf16.msra.mxu0 0
  %619 = vmatprep.subr.bf16.mxu0 0
  %620 = vmatpush1.bf16.msra.mxu0 0
  %621 = vmatprep.subr.bf16.mxu0 0
  %622 = vmatpush1.bf16.msra.mxu0 0
  %623 = vmatprep.subr.bf16.mxu0 0
  %624 = vmatpush1.bf16.msra.mxu0 0
  %625 = vmatprep.mubr.bf16.mxu0 0
  %626 = vmatmul.mubr.bf16.gmra.mrb[0].mxu0 %v483
  %v627 = vpop.f32.mrb[0].mxu0
  %v628 = vadd.f32 %v506, %v627
  %v629 = vpop.f32.mrb[0].mxu0
  %v630 = vadd.f32 %v510, %v629
  %v631 = vpop.f32.mrb[0].mxu0
  %v632 = vadd.f32 %v506, %v631
  %v633 = vpop.f32.mrb[0].mxu0
  %v634 = vadd.f32 %v510, %v633
  %635 = vmatprep.mubr.bf16.mxu0 0
  %636 = vmatmul.mubr.bf16.gmra.mrb[0].mxu0 %v484
  %v637 = vpop.f32.mrb[0].mxu0
  %v638 = vadd.f32 %v506, %v637
  %v639 = vpop.f32.mrb[0].mxu0
  %v640 = vadd.f32 %v510, %v639
  %v641 = vpop.f32.mrb[0].mxu0
  %v642 = vadd.f32 %v506, %v641
  %v643 = vpop.f32.mrb[0].mxu0
  %v644 = vadd.f32 %v510, %v643
  %645 = vdwg.mxu0
  %v646 = vpack.c.bf16 %v632, %v628
  %v647 = vpack.c.bf16 %v642, %v638
  %v650 = vunpack.c.l.b16 %v646
  %v651 = vunpack.c.h.b16 %v646
  %v652 = vunpack.c.l.b16 %v647
  %v653 = vunpack.c.h.b16 %v647
  %v654 = vpack.c.b16 %v650, %v650
  %v655 = vpack.c.b16 %v651, %v651
  %v656 = vpack.c.b16 %v652, %v652
  %v657 = vpack.c.b16 %v653, %v653
  %662 = vst [vmem:[%s9] sm:$0xf] %v654
  %663 = vst [vmem:[%s9 + $0x4] sm:$0xf] %v655
  %664 = vst [vmem:[%s9 + $0x8] sm:$0xf] %v656
  %665 = vst [vmem:[%s9 + $0xc] sm:$0xf] %v657
  %v666 = vpack.c.bf16 %v634, %v630
  %v667 = vpack.c.bf16 %v644, %v640
  %v670 = vunpack.c.l.b16 %v666
  %v671 = vunpack.c.h.b16 %v666
  %v672 = vunpack.c.l.b16 %v667
  %v673 = vunpack.c.h.b16 %v667
  %v674 = vpack.c.b16 %v670, %v670
  %v675 = vpack.c.b16 %v671, %v671
  %v676 = vpack.c.b16 %v672, %v672
  %v677 = vpack.c.b16 %v673, %v673
  %682 = vst [vmem:[%s10] sm:$0xf] %v674
  %683 = vst [vmem:[%s10 + $0x4] sm:$0xf] %v675
  %684 = vst [vmem:[%s10 + $0x8] sm:$0xf] %v676
  %685 = vst [vmem:[%s10 + $0xc] sm:$0xf] %v677
  // Predicated region
  $region38: #{forward.5} parent=0 // pred_check
    _
  $region39: #{forward.5} parent=0 // pred_check_branch
    %687 = sbr.rel (0) target = $region41
  $region40: #{forward.5} parent=0 // pred_region
    _
  $region41: #{forward.5} parent=0 // pred_fallthru
    _
  // Predicated region
  $region42: #{forward.5} parent=0 // pred_check
    _
  $region43: #{forward.5} parent=0 // pred_check_branch
    %689 = sbr.rel (0) target = $region45
  $region44: #{forward.5} parent=0 // pred_region
    _
  $region45: #{forward.5} parent=0 // pred_fallthru
    _
  // Predicated region
  $region46: #{forward.5} parent=0 // pred_check
    _
  $region47: #{forward.5} parent=0 // pred_check_branch
    %691 = sbr.rel (0) target = $region49
  $region48: #{forward.5} parent=0 // pred_region
    _
  $region49: #{forward.5} parent=0 // pred_fallthru
    _
  // Predicated region
  $region50: #{forward.5} parent=0 // pred_check
    _
  $region51: #{forward.5} parent=0 // pred_check_branch
    %693 = sbr.rel (0) target = $region53
  $region52: #{forward.5} parent=0 // pred_region
    _
  $region53: #{forward.5} parent=0 // pred_fallthru
    _

// kernel: forward.6
$region0: #{forward.6}
  #allocation0 [shape = 'u32[]', space=smem, size = 0x4, offset = 0x4, fixed_abs, tag = 'smem constant byte address 0x4 - core index']
  #allocation1 [shape = 'u32[144,128]{1,0:T(1,128)}', space=vmem, size = 0x12000, scoped, tag = 'internal scratch']
  %s0 = inlined_call_operand.vmem [shape: bf16[2,128], index: 0, kind: input, shape index: {}]
  %s1 = inlined_call_operand.vmem [shape: bf16[2,16,128], index: 1, kind: input, shape index: {}]
  %s2 = inlined_call_operand.vmem [shape: bf16[2,16,128], index: 2, kind: input, shape index: {}]
  %s3 = inlined_call_operand.vmem [shape: s32[2,1], index: 3, kind: input, shape index: {}]
  %s4 = inlined_call_operand.vmem [shape: bf16[128,384], index: 4, kind: input, shape index: {}]
  %s5 = inlined_call_operand.vmem [shape: f32[1,384], index: 5, kind: input, shape index: {}]
  %s6 = inlined_call_operand.vmem [shape: bf16[128,128], index: 6, kind: input, shape index: {}]
  %s7 = inlined_call_operand.vmem [shape: f32[1,128], index: 7, kind: input, shape index: {}, may-alias: {7,9,11,15,17,19,21,23}]
  %s8 = inlined_call_operand.vmem [shape: bf16[128,128], index: 8, kind: input, shape index: {}]
  %s9 = inlined_call_operand.vmem [shape: f32[1,128], index: 9, kind: input, shape index: {}, may-alias: {7,9,11,15,17,19,21,23}]
  %s10 = inlined_call_operand.vmem [shape: bf16[128,128], index: 10, kind: input, shape index: {}]
  %s11 = inlined_call_operand.vmem [shape: f32[1,128], index: 11, kind: input, shape index: {}, may-alias: {7,9,11,15,17,19,21,23}]
  %s12 = inlined_call_operand.vmem [shape: bf16[128,256], index: 12, kind: input, shape index: {}]
  %s13 = inlined_call_operand.vmem [shape: f32[1,256], index: 13, kind: input, shape index: {}]
  %s14 = inlined_call_operand.vmem [shape: bf16[256,128], index: 14, kind: input, shape index: {}]
  %s15 = inlined_call_operand.vmem [shape: f32[1,128], index: 15, kind: input, shape index: {}, may-alias: {7,9,11,15,17,19,21,23}]
  %s16 = inlined_call_operand.vmem [shape: bf16[128,128], index: 16, kind: input, shape index: {}]
  %s17 = inlined_call_operand.vmem [shape: f32[1,128], index: 17, kind: input, shape index: {}, may-alias: {7,9,11,15,17,19,21,23}]
  %s18 = inlined_call_operand.vmem [shape: f32[1,128], index: 18, kind: input, shape index: {}, may-alias: {18,20,22}]
  %s19 = inlined_call_operand.vmem [shape: f32[1,128], index: 19, kind: input, shape index: {}, may-alias: {7,9,11,15,17,19,21,23}]
  %s20 = inlined_call_operand.vmem [shape: f32[1,128], index: 20, kind: input, shape index: {}, may-alias: {18,20,22}]
  %s21 = inlined_call_operand.vmem [shape: f32[1,128], index: 21, kind: input, shape index: {}, may-alias: {7,9,11,15,17,19,21,23}]
  %s22 = inlined_call_operand.vmem [shape: f32[1,128], index: 22, kind: input, shape index: {}, may-alias: {18,20,22}]
  %s23 = inlined_call_operand.vmem [shape: f32[1,128], index: 23, kind: input, shape index: {}, may-alias: {7,9,11,15,17,19,21,23}]
  %s24 = inlined_call_operand.vmem [shape: f32[2,128], index: 24, kind: output, shape index: {0}]
  %s25 = inlined_call_operand.vmem [shape: f32[2,1], index: 25, kind: output, shape index: {1}]
  %s26 = inlined_call_operand.vmem [shape: s32[2,1], index: 26, kind: output, shape index: {2}]
  %27 = xla_tuple %s24, %s25, %s26
  %s28 = sld [smem:[#allocation0]]
  $region122: #{forward.6} parent=0
    _
  %s30 = ssub.s32 1, %s28
  %s31 = scalar_select 0, %s30, %s28
  // Predicated region
  $region2: #{forward.6} parent=0 // pred_check
    _
  $region3: #{forward.6} parent=0 // pred_check_branch
    %33 = sbr.rel (0) target = $region5
  $region4: #{forward.6} parent=0 // pred_region
    _
  $region5: #{forward.6} parent=0 // pred_fallthru
    _
  // Predicated region
  $region6: #{forward.6} parent=0 // pred_check
    _
  $region7: #{forward.6} parent=0 // pred_check_branch
    %35 = sbr.rel (0) target = $region9
  $region8: #{forward.6} parent=0 // pred_region
    _
  $region9: #{forward.6} parent=0 // pred_fallthru
    _
  // Predicated region
  $region10: #{forward.6} parent=0 // pred_check
    _
  $region11: #{forward.6} parent=0 // pred_check_branch
    %37 = sbr.rel (0) target = $region13
  $region12: #{forward.6} parent=0 // pred_region
    _
  $region13: #{forward.6} parent=0 // pred_fallthru
    _
  // Predicated region
  $region14: #{forward.6} parent=0 // pred_check
    _
  $region15: #{forward.6} parent=0 // pred_check_branch
    %39 = sbr.rel (0) target = $region17
  $region16: #{forward.6} parent=0 // pred_region
    _
  $region17: #{forward.6} parent=0 // pred_fallthru
    _
  // Predicated region
  $region18: #{forward.6} parent=0 // pred_check
    _
  $region19: #{forward.6} parent=0 // pred_check_branch
    %41 = sbr.rel (0) target = $region21
  $region20: #{forward.6} parent=0 // pred_region
    _
  $region21: #{forward.6} parent=0 // pred_fallthru
    _
  // Predicated region
  $region22: #{forward.6} parent=0 // pred_check
    _
  $region23: #{forward.6} parent=0 // pred_check_branch
    %43 = sbr.rel (0) target = $region25
  $region24: #{forward.6} parent=0 // pred_region
    _
  $region25: #{forward.6} parent=0 // pred_fallthru
    _
  // Predicated region
  $region26: #{forward.6} parent=0 // pred_check
    _
  $region27: #{forward.6} parent=0 // pred_check_branch
    %45 = sbr.rel (0) target = $region29
  $region28: #{forward.6} parent=0 // pred_region
    _
  $region29: #{forward.6} parent=0 // pred_fallthru
    _
  // Predicated region
  $region30: #{forward.6} parent=0 // pred_check
    _
  $region31: #{forward.6} parent=0 // pred_check_branch
    %47 = sbr.rel (0) target = $region33
  $region32: #{forward.6} parent=0 // pred_region
    _
  $region33: #{forward.6} parent=0 // pred_fallthru
    _
  // Predicated region
  $region34: #{forward.6} parent=0 // pred_check
    _
  $region35: #{forward.6} parent=0 // pred_check_branch
    %49 = sbr.rel (0) target = $region37
  $region36: #{forward.6} parent=0 // pred_region
    _
  $region37: #{forward.6} parent=0 // pred_fallthru
    _
  // Predicated region
  $region38: #{forward.6} parent=0 // pred_check
    _
  $region39: #{forward.6} parent=0 // pred_check_branch
    %51 = sbr.rel (0) target = $region41
  $region40: #{forward.6} parent=0 // pred_region
    _
  $region41: #{forward.6} parent=0 // pred_fallthru
    _
  // Predicated region
  $region42: #{forward.6} parent=0 // pred_check
    _
  $region43: #{forward.6} parent=0 // pred_check_branch
    %53 = sbr.rel (0) target = $region45
  $region44: #{forward.6} parent=0 // pred_region
    _
  $region45: #{forward.6} parent=0 // pred_fallthru
    _
  // Predicated region
  $region46: #{forward.6} parent=0 // pred_check
    _
  $region47: #{forward.6} parent=0 // pred_check_branch
    %55 = sbr.rel (0) target = $region49
  $region48: #{forward.6} parent=0 // pred_region
    _
  $region49: #{forward.6} parent=0 // pred_fallthru
    _
  // Predicated region
  $region50: #{forward.6} parent=0 // pred_check
    _
  $region51: #{forward.6} parent=0 // pred_check_branch
    %57 = sbr.rel (0) target = $region53
  $region52: #{forward.6} parent=0 // pred_region
    _
  $region53: #{forward.6} parent=0 // pred_fallthru
    _
  // Predicated region
  $region54: #{forward.6} parent=0 // pred_check
    _
  $region55: #{forward.6} parent=0 // pred_check_branch
    %59 = sbr.rel (0) target = $region57
  $region56: #{forward.6} parent=0 // pred_region
    _
  $region57: #{forward.6} parent=0 // pred_fallthru
    _
  // Predicated region
  $region58: #{forward.6} parent=0 // pred_check
    _
  $region59: #{forward.6} parent=0 // pred_check_branch
    %61 = sbr.rel (0) target = $region61
  $region60: #{forward.6} parent=0 // pred_region
    _
  $region61: #{forward.6} parent=0 // pred_fallthru
    _
  // Predicated region
  $region62: #{forward.6} parent=0 // pred_check
    _
  $region63: #{forward.6} parent=0 // pred_check_branch
    %63 = sbr.rel (0) target = $region65
  $region64: #{forward.6} parent=0 // pred_region
    _
  $region65: #{forward.6} parent=0 // pred_fallthru
    _
  // Predicated region
  $region66: #{forward.6} parent=0 // pred_check
    _
  $region67: #{forward.6} parent=0 // pred_check_branch
    %65 = sbr.rel (0) target = $region69
  $region68: #{forward.6} parent=0 // pred_region
    _
  $region69: #{forward.6} parent=0 // pred_fallthru
    _
  // Predicated region
  $region70: #{forward.6} parent=0 // pred_check
    _
  $region71: #{forward.6} parent=0 // pred_check_branch
    %67 = sbr.rel (0) target = $region73
  $region72: #{forward.6} parent=0 // pred_region
    _
  $region73: #{forward.6} parent=0 // pred_fallthru
    _
  // Predicated region
  $region74: #{forward.6} parent=0 // pred_check
    _
  $region75: #{forward.6} parent=0 // pred_check_branch
    %69 = sbr.rel (0) target = $region77
  $region76: #{forward.6} parent=0 // pred_region
    _
  $region77: #{forward.6} parent=0 // pred_fallthru
    _
  // Predicated region
  $region78: #{forward.6} parent=0 // pred_check
    _
  $region79: #{forward.6} parent=0 // pred_check_branch
    %71 = sbr.rel (0) target = $region81
  $region80: #{forward.6} parent=0 // pred_region
    _
  $region81: #{forward.6} parent=0 // pred_fallthru
    _
  // Predicated region
  $region82: #{forward.6} parent=0 // pred_check
    _
  $region83: #{forward.6} parent=0 // pred_check_branch
    %73 = sbr.rel (0) target = $region85
  $region84: #{forward.6} parent=0 // pred_region
    _
  $region85: #{forward.6} parent=0 // pred_fallthru
    _
  // Predicated region
  $region86: #{forward.6} parent=0 // pred_check
    _
  $region87: #{forward.6} parent=0 // pred_check_branch
    %75 = sbr.rel (0) target = $region89
  $region88: #{forward.6} parent=0 // pred_region
    _
  $region89: #{forward.6} parent=0 // pred_fallthru
    _
  // Predicated region
  $region90: #{forward.6} parent=0 // pred_check
    _
  $region91: #{forward.6} parent=0 // pred_check_branch
    %77 = sbr.rel (0) target = $region93
  $region92: #{forward.6} parent=0 // pred_region
    _
  $region93: #{forward.6} parent=0 // pred_fallthru
    _
  // Predicated region
  $region94: #{forward.6} parent=0 // pred_check
    _
  $region95: #{forward.6} parent=0 // pred_check_branch
    %79 = sbr.rel (0) target = $region97
  $region96: #{forward.6} parent=0 // pred_region
    _
  $region97: #{forward.6} parent=0 // pred_fallthru
    _
  %v81 = vld [vmem:[%s0] sm:$0x1]
  %v82 = vunpack.c.l.bf16 %v81
  %v83 = vld [vmem:[%s4 + $0x8] sm:$0xf]
  %v84 = vld [vmem:[%s4 + $0x14] sm:$0xf]
  %v85 = vld [vmem:[%s4 + $0x20] sm:$0xf]
  %v86 = vld [vmem:[%s4 + $0x2c] sm:$0xf]
  %v87 = vld [vmem:[%s4 + $0x38] sm:$0xf]
  %v88 = vld [vmem:[%s4 + $0x44] sm:$0xf]
  %v89 = vld [vmem:[%s4 + $0x50] sm:$0xf]
  %v90 = vld [vmem:[%s4 + $0x5c] sm:$0xf]
  %v91 = vld [vmem:[%s4 + $0x68] sm:$0xf]
  %v92 = vld [vmem:[%s4 + $0x74] sm:$0xf]
  %v93 = vld [vmem:[%s4 + $0x80] sm:$0xf]
  %v94 = vld [vmem:[%s4 + $0x8c] sm:$0xf]
  %v95 = vld [vmem:[%s4 + $0x98] sm:$0xf]
  %v96 = vld [vmem:[%s4 + $0xa4] sm:$0xf]
  %v97 = vld [vmem:[%s4 + $0xb0] sm:$0xf]
  %v98 = vld [vmem:[%s4 + $0xbc] sm:$0xf]
  %v99 = vld [vmem:[%s5 + $0x2] sm:$0x1]
  %v101 = vlaneseq
  %v102 = vshrl.u32 %v101, 7
  %v103 = vsub.s32 0, %v102
  %v104 = vrot.slane %v99, %v103
  %v122 = vunpack.c.l.b16 %v83
  %v123 = vunpack.c.l.b16 %v84
  %v124 = vunpack.c.l.b16 %v85
  %v125 = vunpack.c.l.b16 %v86
  %v126 = vunpack.c.l.b16 %v87
  %v127 = vunpack.c.l.b16 %v88
  %v128 = vunpack.c.l.b16 %v89
  %v129 = vunpack.c.l.b16 %v90
  %v130 = vunpack.c.l.b16 %v91
  %v131 = vunpack.c.l.b16 %v92
  %v132 = vunpack.c.l.b16 %v93
  %v133 = vunpack.c.l.b16 %v94
  %v134 = vunpack.c.l.b16 %v95
  %v135 = vunpack.c.l.b16 %v96
  %v136 = vunpack.c.l.b16 %v97
  %v137 = vunpack.c.l.b16 %v98
  %v138 = vpack.c.b16 %v123, %v122
  %v139 = vpack.c.b16 %v125, %v124
  %v140 = vpack.c.b16 %v127, %v126
  %v141 = vpack.c.b16 %v129, %v128
  %v142 = vpack.c.b16 %v131, %v130
  %v143 = vpack.c.b16 %v133, %v132
  %v144 = vpack.c.b16 %v135, %v134
  %v145 = vpack.c.b16 %v137, %v136
  %154 = vmatprep.subr.bf16.mxu0 0
  %155 = vmatpush1.bf16.msra.mxu0 %v138
  %156 = vmatprep.subr.bf16.mxu0 0
  %157 = vmatpush1.bf16.msra.mxu0 %v139
  %158 = vmatprep.subr.bf16.mxu0 0
  %159 = vmatpush1.bf16.msra.mxu0 %v140
  %160 = vmatprep.subr.bf16.mxu0 0
  %161 = vmatpush1.bf16.msra.mxu0 %v141
  %162 = vmatprep.subr.bf16.mxu0 0
  %163 = vmatpush1.bf16.msra.mxu0 %v142
  %164 = vmatprep.subr.bf16.mxu0 0
  %165 = vmatpush1.bf16.msra.mxu0 %v143
  %166 = vmatprep.subr.bf16.mxu0 0
  %167 = vmatpush1.bf16.msra.mxu0 %v144
  %168 = vmatprep.subr.bf16.mxu0 0
  %169 = vmatpush1.bf16.msra.mxu0 %v145
  %170 = vmatprep.subr.bf16.mxu0 0
  %171 = vmatpush1.bf16.msra.mxu0 0
  %172 = vmatprep.subr.bf16.mxu0 0
  %173 = vmatpush1.bf16.msra.mxu0 0
  %174 = vmatprep.subr.bf16.mxu0 0
  %175 = vmatpush1.bf16.msra.mxu0 0
  %176 = vmatprep.subr.bf16.mxu0 0
  %177 = vmatpush1.bf16.msra.mxu0 0
  %178 = vmatprep.subr.bf16.mxu0 0
  %179 = vmatpush1.bf16.msra.mxu0 0
  %180 = vmatprep.subr.bf16.mxu0 0
  %181 = vmatpush1.bf16.msra.mxu0 0
  %182 = vmatprep.subr.bf16.mxu0 0
  %183 = vmatpush1.bf16.msra.mxu0 0
  %184 = vmatprep.subr.bf16.mxu0 0
  %185 = vmatpush1.bf16.msra.mxu0 0
  %186 = vmatprep.mubr.bf16.mxu0 0
  %187 = vmatmul.mubr.bf16.gmra.mrb[0].mxu0 %v81
  %v188 = vpop.f32.mrb[0].mxu0
  %v189 = vadd.f32 %v104, %v188
  %v190 = vpop.f32.mrb[0].mxu0
  %v191 = vpop.f32.mrb[0].mxu0
  %v192 = vpop.f32.mrb[0].mxu0
  %193 = vdwg.mxu0
  %v194 = vpack.c.bf16 %v189, %v189
  %v195 = vld [vmem:[%s6] sm:$0xf]
  %v196 = vld [vmem:[%s6 + $0x4] sm:$0xf]
  %v197 = vld [vmem:[%s6 + $0x8] sm:$0xf]
  %v198 = vld [vmem:[%s6 + $0xc] sm:$0xf]
  %v199 = vld [vmem:[%s6 + $0x10] sm:$0xf]
  %v200 = vld [vmem:[%s6 + $0x14] sm:$0xf]
  %v201 = vld [vmem:[%s6 + $0x18] sm:$0xf]
  %v202 = vld [vmem:[%s6 + $0x1c] sm:$0xf]
  %v203 = vld [vmem:[%s6 + $0x20] sm:$0xf]
  %v204 = vld [vmem:[%s6 + $0x24] sm:$0xf]
  %v205 = vld [vmem:[%s6 + $0x28] sm:$0xf]
  %v206 = vld [vmem:[%s6 + $0x2c] sm:$0xf]
  %v207 = vld [vmem:[%s6 + $0x30] sm:$0xf]
  %v208 = vld [vmem:[%s6 + $0x34] sm:$0xf]
  %v209 = vld [vmem:[%s6 + $0x38] sm:$0xf]
  %v210 = vld [vmem:[%s6 + $0x3c] sm:$0xf]
  %v211 = vld [vmem:[%s7] sm:$0x1]
  %v213 = vlaneseq
  %v214 = vshrl.u32 %v213, 7
  %v215 = vsub.s32 0, %v214
  %v216 = vrot.slane %v211, %v215
  %v234 = vunpack.c.l.b16 %v195
  %v235 = vunpack.c.l.b16 %v196
  %v236 = vunpack.c.l.b16 %v197
  %v237 = vunpack.c.l.b16 %v198
  %v238 = vunpack.c.l.b16 %v199
  %v239 = vunpack.c.l.b16 %v200
  %v240 = vunpack.c.l.b16 %v201
  %v241 = vunpack.c.l.b16 %v202
  %v242 = vunpack.c.l.b16 %v203
  %v243 = vunpack.c.l.b16 %v204
  %v244 = vunpack.c.l.b16 %v205
  %v245 = vunpack.c.l.b16 %v206
  %v246 = vunpack.c.l.b16 %v207
  %v247 = vunpack.c.l.b16 %v208
  %v248 = vunpack.c.l.b16 %v209
  %v249 = vunpack.c.l.b16 %v210
  %v250 = vpack.c.b16 %v235, %v234
  %v251 = vpack.c.b16 %v237, %v236
  %v252 = vpack.c.b16 %v239, %v238
  %v253 = vpack.c.b16 %v241, %v240
  %v254 = vpack.c.b16 %v243, %v242
  %v255 = vpack.c.b16 %v245, %v244
  %v256 = vpack.c.b16 %v247, %v246
  %v257 = vpack.c.b16 %v249, %v248
  %266 = vmatprep.subr.bf16.mxu0 0
  %267 = vmatpush1.bf16.msra.mxu0 %v250
  %268 = vmatprep.subr.bf16.mxu0 0
  %269 = vmatpush1.bf16.msra.mxu0 %v251
  %270 = vmatprep.subr.bf16.mxu0 0
  %271 = vmatpush1.bf16.msra.mxu0 %v252
  %272 = vmatprep.subr.bf16.mxu0 0
  %273 = vmatpush1.bf16.msra.mxu0 %v253
  %274 = vmatprep.subr.bf16.mxu0 0
  %275 = vmatpush1.bf16.msra.mxu0 %v254
  %276 = vmatprep.subr.bf16.mxu0 0
  %277 = vmatpush1.bf16.msra.mxu0 %v255
  %278 = vmatprep.subr.bf16.mxu0 0
  %279 = vmatpush1.bf16.msra.mxu0 %v256
  %280 = vmatprep.subr.bf16.mxu0 0
  %281 = vmatpush1.bf16.msra.mxu0 %v257
  %282 = vmatprep.subr.bf16.mxu0 0
  %283 = vmatpush1.bf16.msra.mxu0 0
  %284 = vmatprep.subr.bf16.mxu0 0
  %285 = vmatpush1.bf16.msra.mxu0 0
  %286 = vmatprep.subr.bf16.mxu0 0
  %287 = vmatpush1.bf16.msra.mxu0 0
  %288 = vmatprep.subr.bf16.mxu0 0
  %289 = vmatpush1.bf16.msra.mxu0 0
  %290 = vmatprep.subr.bf16.mxu0 0
  %291 = vmatpush1.bf16.msra.mxu0 0
  %292 = vmatprep.subr.bf16.mxu0 0
  %293 = vmatpush1.bf16.msra.mxu0 0
  %294 = vmatprep.subr.bf16.mxu0 0
  %295 = vmatpush1.bf16.msra.mxu0 0
  %296 = vmatprep.subr.bf16.mxu0 0
  %297 = vmatpush1.bf16.msra.mxu0 0
  %298 = vmatprep.mubr.bf16.mxu0 0
  %299 = vmatmul.mubr.bf16.gmra.mrb[0].mxu0 %v194
  %v300 = vpop.f32.mrb[0].mxu0
  %v301 = vadd.f32 %v216, %v300
  %v302 = vpop.f32.mrb[0].mxu0
  %v303 = vpop.f32.mrb[0].mxu0
  %v304 = vpop.f32.mrb[0].mxu0
  %305 = vdwg.mxu0
  %v306 = vadd.f32 %v301, %v82
  %v307 = vld [vmem:[%s18] sm:$0x1]
  %v308 = vld [vmem:[%s19] sm:$0x1]
  %vm309 = vcmask 1041408
  %v310 = vsel %vm309, %v306, 0.0
  %311 = vadd.xlane.f32.xlu0 %v310
  %v312 = vpop.xlane.xlu0 %311
  %v313 = vrcp.pop 128.0
  %v314 = vmul.f32 %v312, %v313
  %v315 = vsub.f32 %v306, %v314
  %v316 = vmul.f32 %v315, %v315
  %v317 = vsel %vm309, %v316, 0.0
  %318 = vadd.xlane.f32.xlu0 %v317
  %v319 = vpop.xlane.xlu0 %318
  %v320 = vmul.f32 %v319, %v313
  %v321 = vadd.f32 %v320, 1e-06
  %v322 = vrsqrt.pop %v321
  %v323 = vmul.f32 %v315, %v322
  %v325 = vlaneseq
  %v326 = vshrl.u32 %v325, 7
  %v327 = vsub.s32 0, %v326
  %v328 = vrot.slane %v307, %v327
  %v330 = vmul.f32 %v323, %v328
  %v332 = vlaneseq
  %v333 = vshrl.u32 %v332, 7
  %v334 = vsub.s32 0, %v333
  %v335 = vrot.slane %v308, %v334
  %v337 = vadd.f32 %v330, %v335
  %v338 = vpack.c.bf16 %v337, %v337
  %v339 = vld [vmem:[%s8] sm:$0xf]
  %v340 = vld [vmem:[%s8 + $0x4] sm:$0xf]
  %v341 = vld [vmem:[%s8 + $0x8] sm:$0xf]
  %v342 = vld [vmem:[%s8 + $0xc] sm:$0xf]
  %v343 = vld [vmem:[%s8 + $0x10] sm:$0xf]
  %v344 = vld [vmem:[%s8 + $0x14] sm:$0xf]
  %v345 = vld [vmem:[%s8 + $0x18] sm:$0xf]
  %v346 = vld [vmem:[%s8 + $0x1c] sm:$0xf]
  %v347 = vld [vmem:[%s8 + $0x20] sm:$0xf]
  %v348 = vld [vmem:[%s8 + $0x24] sm:$0xf]
  %v349 = vld [vmem:[%s8 + $0x28] sm:$0xf]
  %v350 = vld [vmem:[%s8 + $0x2c] sm:$0xf]
  %v351 = vld [vmem:[%s8 + $0x30] sm:$0xf]
  %v352 = vld [vmem:[%s8 + $0x34] sm:$0xf]
  %v353 = vld [vmem:[%s8 + $0x38] sm:$0xf]
  %v354 = vld [vmem:[%s8 + $0x3c] sm:$0xf]
  %v355 = vld [vmem:[%s9] sm:$0x1]
  %v357 = vlaneseq
  %v358 = vshrl.u32 %v357, 7
  %v359 = vsub.s32 0, %v358
  %v360 = vrot.slane %v355, %v359
  %v378 = vunpack.c.l.b16 %v339
  %v379 = vunpack.c.l.b16 %v340
  %v380 = vunpack.c.l.b16 %v341
  %v381 = vunpack.c.l.b16 %v342
  %v382 = vunpack.c.l.b16 %v343
  %v383 = vunpack.c.l.b16 %v344
  %v384 = vunpack.c.l.b16 %v345
  %v385 = vunpack.c.l.b16 %v346
  %v386 = vunpack.c.l.b16 %v347
  %v387 = vunpack.c.l.b16 %v348
  %v388 = vunpack.c.l.b16 %v349
  %v389 = vunpack.c.l.b16 %v350
  %v390 = vunpack.c.l.b16 %v351
  %v391 = vunpack.c.l.b16 %v352
  %v392 = vunpack.c.l.b16 %v353
  %v393 = vunpack.c.l.b16 %v354
  %v394 = vpack.c.b16 %v379, %v378
  %v395 = vpack.c.b16 %v381, %v380
  %v396 = vpack.c.b16 %v383, %v382
  %v397 = vpack.c.b16 %v385, %v384
  %v398 = vpack.c.b16 %v387, %v386
  %v399 = vpack.c.b16 %v389, %v388
  %v400 = vpack.c.b16 %v391, %v390
  %v401 = vpack.c.b16 %v393, %v392
  %410 = vmatprep.subr.bf16.mxu0 0
  %411 = vmatpush1.bf16.msra.mxu0 %v394
  %412 = vmatprep.subr.bf16.mxu0 0
  %413 = vmatpush1.bf16.msra.mxu0 %v395
  %414 = vmatprep.subr.bf16.mxu0 0
  %415 = vmatpush1.bf16.msra.mxu0 %v396
  %416 = vmatprep.subr.bf16.mxu0 0
  %417 = vmatpush1.bf16.msra.mxu0 %v397
  %418 = vmatprep.subr.bf16.mxu0 0
  %419 = vmatpush1.bf16.msra.mxu0 %v398
  %420 = vmatprep.subr.bf16.mxu0 0
  %421 = vmatpush1.bf16.msra.mxu0 %v399
  %422 = vmatprep.subr.bf16.mxu0 0
  %423 = vmatpush1.bf16.msra.mxu0 %v400
  %424 = vmatprep.subr.bf16.mxu0 0
  %425 = vmatpush1.bf16.msra.mxu0 %v401
  %426 = vmatprep.subr.bf16.mxu0 0
  %427 = vmatpush1.bf16.msra.mxu0 0
  %428 = vmatprep.subr.bf16.mxu0 0
  %429 = vmatpush1.bf16.msra.mxu0 0
  %430 = vmatprep.subr.bf16.mxu0 0
  %431 = vmatpush1.bf16.msra.mxu0 0
  %432 = vmatprep.subr.bf16.mxu0 0
  %433 = vmatpush1.bf16.msra.mxu0 0
  %434 = vmatprep.subr.bf16.mxu0 0
  %435 = vmatpush1.bf16.msra.mxu0 0
  %436 = vmatprep.subr.bf16.mxu0 0
  %437 = vmatpush1.bf16.msra.mxu0 0
  %438 = vmatprep.subr.bf16.mxu0 0
  %439 = vmatpush1.bf16.msra.mxu0 0
  %440 = vmatprep.subr.bf16.mxu0 0
  %441 = vmatpush1.bf16.msra.mxu0 0
  %442 = vmatprep.mubr.bf16.mxu0 0
  %443 = vmatmul.mubr.bf16.gmra.mrb[0].mxu0 %v338
  %v444 = vpop.f32.mrb[0].mxu0
  %v445 = vadd.f32 %v360, %v444
  %v446 = vpop.f32.mrb[0].mxu0
  %v447 = vpop.f32.mrb[0].mxu0
  %v448 = vpop.f32.mrb[0].mxu0
  %449 = vdwg.mxu0
  %v450 = vmul.f32 %v445, 0.088388346
  %v451 = vld [vmem:[%s1] sm:$0xf]
  %v452 = vld [vmem:[%s1 + $0x4] sm:$0xf]
  %v453 = vld [vmem:[%s1 + $0x8] sm:$0xf]
  %v454 = vld [vmem:[%s1 + $0xc] sm:$0xf]
  %v455 = vunpack.c.l.bf16 %v451
  %v456 = vunpack.c.l.bf16 %v452
  %v457 = vunpack.c.l.bf16 %v453
  %v458 = vunpack.c.l.bf16 %v454
  %v459 = vld [vmem:[%s2] sm:$0xf]
  %v460 = vld [vmem:[%s2 + $0x4] sm:$0xf]
  %v461 = vld [vmem:[%s2 + $0x8] sm:$0xf]
  %v462 = vld [vmem:[%s2 + $0xc] sm:$0xf]
  %v463 = vunpack.c.l.bf16 %v459
  %v464 = vunpack.c.l.bf16 %v460
  %v465 = vunpack.c.l.bf16 %v461
  %v466 = vunpack.c.l.bf16 %v462
  %v469 = vunpack.c.l.s4 1966171168
  %v470 = vunpack.c.0.s8 %v469
  %v471 = vlaneseq
  %v472 = vshrl.u32 %v471, 7
  %v473 = vsub.s32 %v470, %v472
  %v474 = vrot.slane %v450, %v473
  %v475 = vcombine.high %v474, %v474
  %v477 = vunpack.c.l.s4 1966171168
  %v478 = vunpack.c.0.s8 %v477
  %v479 = vlaneseq
  %v480 = vshrl.u32 %v479, 7
  %v481 = vsub.s32 %v478, %v480
  %v482 = vrot.slane %v474, %v481
  %v484 = vunpack.c.l.s4 1966171168
  %v485 = vunpack.c.0.s8 %v484
  %v486 = vlaneseq
  %v487 = vshrl.u32 %v486, 7
  %v488 = vsub.s32 %v485, %v487
  %v489 = vrot.slane %v475, %v488
  %v490 = vlaneseq
  %v491 = vshrl.u32 %v490, 7
  %v492 = vsub.s32 0, %v491
  %v493 = vrot.slane %v482, %v492
  %v494 = vlaneseq
  %v495 = vshrl.u32 %v494, 7
  %v496 = vsub.s32 0, %v495
  %v497 = vrot.slane %v489, %v496
  %v500 = vmul.f32 %v493, %v455
  %v501 = vmul.f32 %v493, %v456
  %v502 = vmul.f32 %v497, %v457
  %v503 = vmul.f32 %v497, %v458
  %504 = vadd.xlane.f32.xlu0 %v500
  %v505 = vpop.xlane.xlu0 %504
  %506 = vadd.xlane.f32.xlu0 %v501
  %v507 = vpop.xlane.xlu0 %506
  %508 = vadd.xlane.f32.xlu0 %v502
  %v509 = vpop.xlane.xlu0 %508
  %510 = vadd.xlane.f32.xlu0 %v503
  %v511 = vpop.xlane.xlu0 %510
  %v516 = vlaneseq
  %v517 = vand.u32 %v516, 127
  %v518 = vlaneseq
  %v519 = vshrl.u32 %v518, 7
  %v520 = vsub.s32 %v517, %v519
  %v521 = vrot.slane %v505, %v520
  %v522 = vadd.s32 %v517, 4294967288
  %v523 = vlaneseq
  %v524 = vshrl.u32 %v523, 7
  %v525 = vsub.s32 %v522, %v524
  %v526 = vrot.slane %v507, %v525
  %vm527 = vcmask 130112
  %v528 = vsel %vm527, %v526, %v521
  %v529 = vlaneseq
  %v530 = vshrl.u32 %v529, 7
  %v531 = vsub.s32 %v517, %v530
  %v532 = vrot.slane %v509, %v531
  %v533 = vlaneseq
  %v534 = vshrl.u32 %v533, 7
  %v535 = vsub.s32 %v522, %v534
  %v536 = vrot.slane %v511, %v535
  %v537 = vsel %vm527, %v536, %v532
  %vm538 = vcmask 1041409
  %v539 = vsel %vm538, %v537, %v528
  %vm541 = vcmask 123904
  %v542 = vsel %vm541, %v539, -inf
  %543 = vmax.xlane.f32.xlu0 %v542
  %v544 = vpop.xlane.xlu0 %543
  %v546 = vlaneseq
  %v547 = vshrl.u32 %v546, 7
  %v548 = vsub.s32 0, %v547
  %v549 = vrot.slane %v544, %v548
  %v550 = vlaneseq
  %v551 = vshrl.u32 %v550, 7
  %v552 = vsub.s32 1, %v551
  %v553 = vrot.slane %v544, %v552
  %v556 = vsub.f32 %v505, %v549
  %v557 = vsub.f32 %v507, %v549
  %v558 = vsub.f32 %v509, %v553
  %v559 = vsub.f32 %v511, %v553
  %v560 = vmul.f32 %v556, 1.442695
  %v561 = vpow.pop %v560
  %v562 = vmul.f32 %v557, 1.442695
  %v563 = vpow.pop %v562
  %v564 = vmul.f32 %v558, 1.442695
  %v565 = vpow.pop %v564
  %v566 = vmul.f32 %v559, 1.442695
  %v567 = vpow.pop %v566
  %572 = vset.pattern.permute.xlu0 0
  %573 = vperm.xlu0 %572, %v561
  %v574 = vpop.permute.xlu0 %573
  %575 = vset.pattern.permute.xlu0 0
  %576 = vperm.xlu0 %575, %v563
  %v577 = vpop.permute.xlu0 %576
  %578 = vset.pattern.permute.xlu0 0
  %579 = vperm.xlu0 %578, %v565
  %v580 = vpop.permute.xlu0 %579
  %581 = vset.pattern.permute.xlu0 0
  %582 = vperm.xlu0 %581, %v567
  %v583 = vpop.permute.xlu0 %582
  %v584 = vlaneseq
  %v585 = vshrl.u32 %v584, 7
  %v586 = vsub.s32 %v517, %v585
  %v587 = vrot.slane %v574, %v586
  %v588 = vlaneseq
  %v589 = vshrl.u32 %v588, 7
  %v590 = vsub.s32 %v522, %v589
  %v591 = vrot.slane %v577, %v590
  %v592 = vsel %vm527, %v591, %v587
  %v593 = vlaneseq
  %v594 = vshrl.u32 %v593, 7
  %v595 = vsub.s32 %v517, %v594
  %v596 = vrot.slane %v580, %v595
  %v597 = vlaneseq
  %v598 = vshrl.u32 %v597, 7
  %v599 = vsub.s32 %v522, %v598
  %v600 = vrot.slane %v583, %v599
  %v601 = vsel %vm527, %v600, %v596
  %v602 = vsel %vm538, %v601, %v592
  %v604 = vsel %vm541, %v602, 0.0
  %605 = vadd.xlane.f32.xlu0 %v604
  %v606 = vpop.xlane.xlu0 %605
  %v608 = vlaneseq
  %v609 = vshrl.u32 %v608, 7
  %v610 = vsub.s32 0, %v609
  %v611 = vrot.slane %v606, %v610
  %v612 = vlaneseq
  %v613 = vshrl.u32 %v612, 7
  %v614 = vsub.s32 1, %v613
  %v615 = vrot.slane %v606, %v614
  %v618 = vrcp.pop %v611
  %v619 = vmul.f32 %v561, %v618
  %v620 = vmul.f32 %v563, %v618
  %v621 = vrcp.pop %v615
  %v622 = vmul.f32 %v565, %v621
  %v623 = vmul.f32 %v567, %v621
  %625 = vset.pattern.permute.xlu0 0
  %626 = vperm.xlu0 %625, %v619
  %v627 = vpop.permute.xlu0 %626
  %630 = vset.pattern.permute.xlu0 0
  %631 = vperm.xlu0 %630, %v620
  %v632 = vpop.permute.xlu0 %631
  %635 = vset.pattern.permute.xlu0 0
  %636 = vperm.xlu0 %635, %v622
  %v637 = vpop.permute.xlu0 %636
  %640 = vset.pattern.permute.xlu0 0
  %641 = vperm.xlu0 %640, %v623
  %v642 = vpop.permute.xlu0 %641
  %v644 = vmul.f32 %v627, %v463
  %v645 = vmul.f32 %v632, %v464
  %v646 = vmul.f32 %v637, %v465
  %v647 = vmul.f32 %v642, %v466
  %v648 = vadd.f32 %v644, %v645
  %v649 = vrot.slane %v648, 4
  %v650 = vadd.f32 %v648, %v649
  %v651 = vrot.slane %v650, 2
  %v652 = vadd.f32 %v650, %v651
  %v653 = vrot.slane %v652, 1
  %v654 = vadd.f32 %v652, %v653
  %v655 = vadd.f32 %v646, %v647
  %v656 = vrot.slane %v655, 4
  %v657 = vadd.f32 %v655, %v656
  %v658 = vrot.slane %v657, 2
  %v659 = vadd.f32 %v657, %v658
  %v660 = vrot.slane %v659, 1
  %v661 = vadd.f32 %v659, %v660
  %v662 = vpack.c.bf16 %v654, %v654
  %v663 = vpack.c.bf16 %v661, %v661
  %v664 = vld [vmem:[%s10] sm:$0xf]
  %v665 = vld [vmem:[%s10 + $0x4] sm:$0xf]
  %v666 = vld [vmem:[%s10 + $0x8] sm:$0xf]
  %v667 = vld [vmem:[%s10 + $0xc] sm:$0xf]
  %v668 = vld [vmem:[%s10 + $0x10] sm:$0xf]
  %v669 = vld [vmem:[%s10 + $0x14] sm:$0xf]
  %v670 = vld [vmem:[%s10 + $0x18] sm:$0xf]
  %v671 = vld [vmem:[%s10 + $0x1c] sm:$0xf]
  %v672 = vld [vmem:[%s10 + $0x20] sm:$0xf]
  %v673 = vld [vmem:[%s10 + $0x24] sm:$0xf]
  %v674 = vld [vmem:[%s10 + $0x28] sm:$0xf]
  %v675 = vld [vmem:[%s10 + $0x2c] sm:$0xf]
  %v676 = vld [vmem:[%s10 + $0x30] sm:$0xf]
  %v677 = vld [vmem:[%s10 + $0x34] sm:$0xf]
  %v678 = vld [vmem:[%s10 + $0x38] sm:$0xf]
  %v679 = vld [vmem:[%s10 + $0x3c] sm:$0xf]
  %v680 = vld [vmem:[%s11] sm:$0x1]
  %v682 = vlaneseq
  %v683 = vshrl.u32 %v682, 7
  %v684 = vsub.s32 0, %v683
  %v685 = vrot.slane %v680, %v684
  %v689 = vunpack.c.l.b16 %v662
  %v690 = vunpack.c.l.b16 %v663
  %v691 = vsel %vm538, %v690, %v689
  %v692 = vpack.c.b16 %v691, %v691
  %v710 = vunpack.c.l.b16 %v664
  %v711 = vunpack.c.l.b16 %v665
  %v712 = vunpack.c.l.b16 %v666
  %v713 = vunpack.c.l.b16 %v667
  %v714 = vunpack.c.l.b16 %v668
  %v715 = vunpack.c.l.b16 %v669
  %v716 = vunpack.c.l.b16 %v670
  %v717 = vunpack.c.l.b16 %v671
  %v718 = vunpack.c.l.b16 %v672
  %v719 = vunpack.c.l.b16 %v673
  %v720 = vunpack.c.l.b16 %v674
  %v721 = vunpack.c.l.b16 %v675
  %v722 = vunpack.c.l.b16 %v676
  %v723 = vunpack.c.l.b16 %v677
  %v724 = vunpack.c.l.b16 %v678
  %v725 = vunpack.c.l.b16 %v679
  %v726 = vpack.c.b16 %v711, %v710
  %v727 = vpack.c.b16 %v713, %v712
  %v728 = vpack.c.b16 %v715, %v714
  %v729 = vpack.c.b16 %v717, %v716
  %v730 = vpack.c.b16 %v719, %v718
  %v731 = vpack.c.b16 %v721, %v720
  %v732 = vpack.c.b16 %v723, %v722
  %v733 = vpack.c.b16 %v725, %v724
  %742 = vmatprep.subr.bf16.mxu0 0
  %743 = vmatpush1.bf16.msra.mxu0 %v726
  %744 = vmatprep.subr.bf16.mxu0 0
  %745 = vmatpush1.bf16.msra.mxu0 %v727
  %746 = vmatprep.subr.bf16.mxu0 0
  %747 = vmatpush1.bf16.msra.mxu0 %v728
  %748 = vmatprep.subr.bf16.mxu0 0
  %749 = vmatpush1.bf16.msra.mxu0 %v729
  %750 = vmatprep.subr.bf16.mxu0 0
  %751 = vmatpush1.bf16.msra.mxu0 %v730
  %752 = vmatprep.subr.bf16.mxu0 0
  %753 = vmatpush1.bf16.msra.mxu0 %v731
  %754 = vmatprep.subr.bf16.mxu0 0
  %755 = vmatpush1.bf16.msra.mxu0 %v732
  %756 = vmatprep.subr.bf16.mxu0 0
  %757 = vmatpush1.bf16.msra.mxu0 %v733
  %758 = vmatprep.subr.bf16.mxu0 0
  %759 = vmatpush1.bf16.msra.mxu0 0
  %760 = vmatprep.subr.bf16.mxu0 0
  %761 = vmatpush1.bf16.msra.mxu0 0
  %762 = vmatprep.subr.bf16.mxu0 0
  %763 = vmatpush1.bf16.msra.mxu0 0
  %764 = vmatprep.subr.bf16.mxu0 0
  %765 = vmatpush1.bf16.msra.mxu0 0
  %766 = vmatprep.subr.bf16.mxu0 0
  %767 = vmatpush1.bf16.msra.mxu0 0
  %768 = vmatprep.subr.bf16.mxu0 0
  %769 = vmatpush1.bf16.msra.mxu0 0
  %770 = vmatprep.subr.bf16.mxu0 0
  %771 = vmatpush1.bf16.msra.mxu0 0
  %772 = vmatprep.subr.bf16.mxu0 0
  %773 = vmatpush1.bf16.msra.mxu0 0
  %774 = vmatprep.mubr.bf16.mxu0 0
  %775 = vmatmul.mubr.bf16.gmra.mrb[0].mxu0 %v692
  %v776 = vpop.f32.mrb[0].mxu0
  %v777 = vadd.f32 %v685, %v776
  %v778 = vpop.f32.mrb[0].mxu0
  %v779 = vpop.f32.mrb[0].mxu0
  %v780 = vpop.f32.mrb[0].mxu0
  %781 = vdwg.mxu0
  %v782 = vadd.f32 %v777, %v337
  %v783 = vld [vmem:[%s20] sm:$0x1]
  %v784 = vld [vmem:[%s21] sm:$0x1]
  %v785 = vsel %vm309, %v782, 0.0
  %786 = vadd.xlane.f32.xlu0 %v785
  %v787 = vpop.xlane.xlu0 %786
  %v788 = vmul.f32 %v787, %v313
  %v789 = vsub.f32 %v782, %v788
  %v790 = vmul.f32 %v789, %v789
  %v791 = vsel %vm309, %v790, 0.0
  %792 = vadd.xlane.f32.xlu0 %v791
  %v793 = vpop.xlane.xlu0 %792
  %v794 = vmul.f32 %v793, %v313
  %v795 = vadd.f32 %v794, 1e-06
  %v796 = vrsqrt.pop %v795
  %v797 = vmul.f32 %v789, %v796
  %v799 = vlaneseq
  %v800 = vshrl.u32 %v799, 7
  %v801 = vsub.s32 0, %v800
  %v802 = vrot.slane %v783, %v801
  %v804 = vmul.f32 %v797, %v802
  %v806 = vlaneseq
  %v807 = vshrl.u32 %v806, 7
  %v808 = vsub.s32 0, %v807
  %v809 = vrot.slane %v784, %v808
  %v811 = vadd.f32 %v804, %v809
  %v812 = vpack.c.bf16 %v811, %v811
  %v813 = vld [vmem:[%s12] sm:$0xff]
  %v814 = vld [vmem:[%s12 + $0x8] sm:$0xff]
  %v815 = vld [vmem:[%s12 + $0x10] sm:$0xff]
  %v816 = vld [vmem:[%s12 + $0x18] sm:$0xff]
  %v817 = vld [vmem:[%s12 + $0x20] sm:$0xff]
  %v818 = vld [vmem:[%s12 + $0x28] sm:$0xff]
  %v819 = vld [vmem:[%s12 + $0x30] sm:$0xff]
  %v820 = vld [vmem:[%s12 + $0x38] sm:$0xff]
  %v821 = vld [vmem:[%s12 + $0x40] sm:$0xff]
  %v822 = vld [vmem:[%s12 + $0x48] sm:$0xff]
  %v823 = vld [vmem:[%s12 + $0x50] sm:$0xff]
  %v824 = vld [vmem:[%s12 + $0x58] sm:$0xff]
  %v825 = vld [vmem:[%s12 + $0x60] sm:$0xff]
  %v826 = vld [vmem:[%s12 + $0x68] sm:$0xff]
  %v827 = vld [vmem:[%s12 + $0x70] sm:$0xff]
  %v828 = vld [vmem:[%s12 + $0x78] sm:$0xff]
  %v829 = vld [vmem:[%s13] sm:$0x3]
  %v831 = vlaneseq
  %v832 = vshrl.u32 %v831, 7
  %v833 = vsub.s32 0, %v832
  %v834 = vrot.slane %v829, %v833
  %v835 = vlaneseq
  %v836 = vshrl.u32 %v835, 7
  %v837 = vsub.s32 1, %v836
  %v838 = vrot.slane %v829, %v837
  %v857 = vunpack.c.l.b16 %v813
  %v858 = vunpack.c.h.b16 %v813
  %v859 = vunpack.c.l.b16 %v814
  %v860 = vunpack.c.h.b16 %v814
  %v861 = vunpack.c.l.b16 %v815
  %v862 = vunpack.c.h.b16 %v815
  %v863 = vunpack.c.l.b16 %v816
  %v864 = vunpack.c.h.b16 %v816
  %v865 = vunpack.c.l.b16 %v817
  %v866 = vunpack.c.h.b16 %v817
  %v867 = vunpack.c.l.b16 %v818
  %v868 = vunpack.c.h.b16 %v818
  %v869 = vunpack.c.l.b16 %v819
  %v870 = vunpack.c.h.b16 %v819
  %v871 = vunpack.c.l.b16 %v820
  %v872 = vunpack.c.h.b16 %v820
  %v873 = vunpack.c.l.b16 %v821
  %v874 = vunpack.c.h.b16 %v821
  %v875 = vunpack.c.l.b16 %v822
  %v876 = vunpack.c.h.b16 %v822
  %v877 = vunpack.c.l.b16 %v823
  %v878 = vunpack.c.h.b16 %v823
  %v879 = vunpack.c.l.b16 %v824
  %v880 = vunpack.c.h.b16 %v824
  %v881 = vunpack.c.l.b16 %v825
  %v882 = vunpack.c.h.b16 %v825
  %v883 = vunpack.c.l.b16 %v826
  %v884 = vunpack.c.h.b16 %v826
  %v885 = vunpack.c.l.b16 %v827
  %v886 = vunpack.c.h.b16 %v827
  %v887 = vunpack.c.l.b16 %v828
  %v888 = vunpack.c.h.b16 %v828
  %v889 = vpack.c.b16 %v859, %v857
  %v890 = vpack.c.b16 %v860, %v858
  %v891 = vpack.c.b16 %v863, %v861
  %v892 = vpack.c.b16 %v864, %v862
  %v893 = vpack.c.b16 %v867, %v865
  %v894 = vpack.c.b16 %v868, %v866
  %v895 = vpack.c.b16 %v871, %v869
  %v896 = vpack.c.b16 %v872, %v870
  %v897 = vpack.c.b16 %v875, %v873
  %v898 = vpack.c.b16 %v876, %v874
  %v899 = vpack.c.b16 %v879, %v877
  %v900 = vpack.c.b16 %v880, %v878
  %v901 = vpack.c.b16 %v883, %v881
  %v902 = vpack.c.b16 %v884, %v882
  %v903 = vpack.c.b16 %v887, %v885
  %v904 = vpack.c.b16 %v888, %v886
  %921 = vmatprep.subr.bf16.mxu0 %v890
  %922 = vmatpush1.bf16.msra.mxu0 %v889
  %923 = vmatprep.subr.bf16.mxu0 %v892
  %924 = vmatpush1.bf16.msra.mxu0 %v891
  %925 = vmatprep.subr.bf16.mxu0 %v894
  %926 = vmatpush1.bf16.msra.mxu0 %v893
  %927 = vmatprep.subr.bf16.mxu0 %v896
  %928 = vmatpush1.bf16.msra.mxu0 %v895
  %929 = vmatprep.subr.bf16.mxu0 %v898
  %930 = vmatpush1.bf16.msra.mxu0 %v897
  %931 = vmatprep.subr.bf16.mxu0 %v900
  %932 = vmatpush1.bf16.msra.mxu0 %v899
  %933 = vmatprep.subr.bf16.mxu0 %v902
  %934 = vmatpush1.bf16.msra.mxu0 %v901
  %935 = vmatprep.subr.bf16.mxu0 %v904
  %936 = vmatpush1.bf16.msra.mxu0 %v903
  %937 = vmatprep.subr.bf16.mxu0 0
  %938 = vmatpush1.bf16.msra.mxu0 0
  %939 = vmatprep.subr.bf16.mxu0 0
  %940 = vmatpush1.bf16.msra.mxu0 0
  %941 = vmatprep.subr.bf16.mxu0 0
  %942 = vmatpush1.bf16.msra.mxu0 0
  %943 = vmatprep.subr.bf16.mxu0 0
  %944 = vmatpush1.bf16.msra.mxu0 0
  %945 = vmatprep.subr.bf16.mxu0 0
  %946 = vmatpush1.bf16.msra.mxu0 0
  %947 = vmatprep.subr.bf16.mxu0 0
  %948 = vmatpush1.bf16.msra.mxu0 0
  %949 = vmatprep.subr.bf16.mxu0 0
  %950 = vmatpush1.bf16.msra.mxu0 0
  %951 = vmatprep.subr.bf16.mxu0 0
  %952 = vmatpush1.bf16.msra.mxu0 0
  %953 = vmatprep.mubr.bf16.mxu0 0
  %954 = vmatmul.mubr.bf16.gmra.mrb[0].mxu0 %v812
  %v955 = vpop.f32.mrb[0].mxu0
  %v956 = vadd.f32 %v834, %v955
  %v957 = vpop.f32.mrb[0].mxu0
  %v958 = vadd.f32 %v838, %v957
  %v959 = vpop.f32.mrb[0].mxu0
  %v960 = vpop.f32.mrb[0].mxu0
  %961 = vdwg.mxu0
  %v962 = vmax.f32 %v956, 0.0
  %v963 = vmax.f32 %v958, 0.0
  %v964 = vpack.c.bf16 %v962, %v962
  %v965 = vpack.c.bf16 %v963, %v963
  %v966 = vld [vmem:[%s14] sm:$0xf]
  %v967 = vld [vmem:[%s14 + $0x4] sm:$0xf]
  %v968 = vld [vmem:[%s14 + $0x8] sm:$0xf]
  %v969 = vld [vmem:[%s14 + $0xc] sm:$0xf]
  %v970 = vld [vmem:[%s14 + $0x10] sm:$0xf]
  %v971 = vld [vmem:[%s14 + $0x14] sm:$0xf]
  %v972 = vld [vmem:[%s14 + $0x18] sm:$0xf]
  %v973 = vld [vmem:[%s14 + $0x1c] sm:$0xf]
  %v974 = vld [vmem:[%s14 + $0x20] sm:$0xf]
  %v975 = vld [vmem:[%s14 + $0x24] sm:$0xf]
  %v976 = vld [vmem:[%s14 + $0x28] sm:$0xf]
  %v977 = vld [vmem:[%s14 + $0x2c] sm:$0xf]
  %v978 = vld [vmem:[%s14 + $0x30] sm:$0xf]
  %v979 = vld [vmem:[%s14 + $0x34] sm:$0xf]
  %v980 = vld [vmem:[%s14 + $0x38] sm:$0xf]
  %v981 = vld [vmem:[%s14 + $0x3c] sm:$0xf]
  %v982 = vld [vmem:[%s14 + $0x40] sm:$0xf]
  %v983 = vld [vmem:[%s14 + $0x44] sm:$0xf]
  %v984 = vld [vmem:[%s14 + $0x48] sm:$0xf]
  %v985 = vld [vmem:[%s14 + $0x4c] sm:$0xf]
  %v986 = vld [vmem:[%s14 + $0x50] sm:$0xf]
  %v987 = vld [vmem:[%s14 + $0x54] sm:$0xf]
  %v988 = vld [vmem:[%s14 + $0x58] sm:$0xf]
  %v989 = vld [vmem:[%s14 + $0x5c] sm:$0xf]
  %v990 = vld [vmem:[%s14 + $0x60] sm:$0xf]
  %v991 = vld [vmem:[%s14 + $0x64] sm:$0xf]
  %v992 = vld [vmem:[%s14 + $0x68] sm:$0xf]
  %v993 = vld [vmem:[%s14 + $0x6c] sm:$0xf]
  %v994 = vld [vmem:[%s14 + $0x70] sm:$0xf]
  %v995 = vld [vmem:[%s14 + $0x74] sm:$0xf]
  %v996 = vld [vmem:[%s14 + $0x78] sm:$0xf]
  %v997 = vld [vmem:[%s14 + $0x7c] sm:$0xf]
  %v998 = vld [vmem:[%s15] sm:$0x1]
  %v1000 = vlaneseq
  %v1001 = vshrl.u32 %v1000, 7
  %v1002 = vsub.s32 0, %v1001
  %v1003 = vrot.slane %v998, %v1002
  %v1037 = vunpack.c.l.b16 %v966
  %v1038 = vunpack.c.l.b16 %v967
  %v1039 = vunpack.c.l.b16 %v968
  %v1040 = vunpack.c.l.b16 %v969
  %v1041 = vunpack.c.l.b16 %v970
  %v1042 = vunpack.c.l.b16 %v971
  %v1043 = vunpack.c.l.b16 %v972
  %v1044 = vunpack.c.l.b16 %v973
  %v1045 = vunpack.c.l.b16 %v974
  %v1046 = vunpack.c.l.b16 %v975
  %v1047 = vunpack.c.l.b16 %v976
  %v1048 = vunpack.c.l.b16 %v977
  %v1049 = vunpack.c.l.b16 %v978
  %v1050 = vunpack.c.l.b16 %v979
  %v1051 = vunpack.c.l.b16 %v980
  %v1052 = vunpack.c.l.b16 %v981
  %v1053 = vunpack.c.l.b16 %v982
  %v1054 = vunpack.c.l.b16 %v983
  %v1055 = vunpack.c.l.b16 %v984
  %v1056 = vunpack.c.l.b16 %v985
  %v1057 = vunpack.c.l.b16 %v986
  %v1058 = vunpack.c.l.b16 %v987
  %v1059 = vunpack.c.l.b16 %v988
  %v1060 = vunpack.c.l.b16 %v989
  %v1061 = vunpack.c.l.b16 %v990
  %v1062 = vunpack.c.l.b16 %v991
  %v1063 = vunpack.c.l.b16 %v992
  %v1064 = vunpack.c.l.b16 %v993
  %v1065 = vunpack.c.l.b16 %v994
  %v1066 = vunpack.c.l.b16 %v995
  %v1067 = vunpack.c.l.b16 %v996
  %v1068 = vunpack.c.l.b16 %v997
  %v1069 = vpack.c.b16 %v1038, %v1037
  %v1070 = vpack.c.b16 %v1040, %v1039
  %v1071 = vpack.c.b16 %v1042, %v1041
  %v1072 = vpack.c.b16 %v1044, %v1043
  %v1073 = vpack.c.b16 %v1046, %v1045
  %v1074 = vpack.c.b16 %v1048, %v1047
  %v1075 = vpack.c.b16 %v1050, %v1049
  %v1076 = vpack.c.b16 %v1052, %v1051
  %v1077 = vpack.c.b16 %v1054, %v1053
  %v1078 = vpack.c.b16 %v1056, %v1055
  %v1079 = vpack.c.b16 %v1058, %v1057
  %v1080 = vpack.c.b16 %v1060, %v1059
  %v1081 = vpack.c.b16 %v1062, %v1061
  %v1082 = vpack.c.b16 %v1064, %v1063
  %v1083 = vpack.c.b16 %v1066, %v1065
  %v1084 = vpack.c.b16 %v1068, %v1067
  %1101 = vmatprep.subr.bf16.mxu0 0
  %1102 = vmatpush1.bf16.msra.mxu0 %v1069
  %1103 = vmatprep.subr.bf16.mxu0 0
  %1104 = vmatpush1.bf16.msra.mxu0 %v1070
  %1105 = vmatprep.subr.bf16.mxu0 0
  %1106 = vmatpush1.bf16.msra.mxu0 %v1071
  %1107 = vmatprep.subr.bf16.mxu0 0
  %1108 = vmatpush1.bf16.msra.mxu0 %v1072
  %1109 = vmatprep.subr.bf16.mxu0 0
  %1110 = vmatpush1.bf16.msra.mxu0 %v1073
  %1111 = vmatprep.subr.bf16.mxu0 0
  %1112 = vmatpush1.bf16.msra.mxu0 %v1074
  %1113 = vmatprep.subr.bf16.mxu0 0
  %1114 = vmatpush1.bf16.msra.mxu0 %v1075
  %1115 = vmatprep.subr.bf16.mxu0 0
  %1116 = vmatpush1.bf16.msra.mxu0 %v1076
  %1117 = vmatprep.subr.bf16.mxu0 0
  %1118 = vmatpush1.bf16.msra.mxu0 %v1077
  %1119 = vmatprep.subr.bf16.mxu0 0
  %1120 = vmatpush1.bf16.msra.mxu0 %v1078
  %1121 = vmatprep.subr.bf16.mxu0 0
  %1122 = vmatpush1.bf16.msra.mxu0 %v1079
  %1123 = vmatprep.subr.bf16.mxu0 0
  %1124 = vmatpush1.bf16.msra.mxu0 %v1080
  %1125 = vmatprep.subr.bf16.mxu0 0
  %1126 = vmatpush1.bf16.msra.mxu0 %v1081
  %1127 = vmatprep.subr.bf16.mxu0 0
  %1128 = vmatpush1.bf16.msra.mxu0 %v1082
  %1129 = vmatprep.subr.bf16.mxu0 0
  %1130 = vmatpush1.bf16.msra.mxu0 %v1083
  %1131 = vmatprep.subr.bf16.mxu0 0
  %1132 = vmatpush1.bf16.msra.mxu0 %v1084
  %1133 = vmatprep.mubr.bf16.mxu0 %v965
  %1134 = vmatmul.mubr.bf16.gmra.mrb[0].mxu0 %v964
  %v1135 = vpop.f32.mrb[0].mxu0
  %v1136 = vadd.f32 %v1003, %v1135
  %v1137 = vpop.f32.mrb[0].mxu0
  %v1138 = vpop.f32.mrb[0].mxu0
  %v1139 = vpop.f32.mrb[0].mxu0
  %1140 = vdwg.mxu0
  %v1141 = vadd.f32 %v1136, %v811
  %v1142 = vld [vmem:[%s22] sm:$0x1]
  %v1143 = vld [vmem:[%s23] sm:$0x1]
  %v1144 = vsel %vm309, %v1141, 0.0
  %1145 = vadd.xlane.f32.xlu0 %v1144
  %v1146 = vpop.xlane.xlu0 %1145
  %v1147 = vmul.f32 %v1146, %v313
  %v1148 = vsub.f32 %v1141, %v1147
  %v1149 = vmul.f32 %v1148, %v1148
  %v1150 = vsel %vm309, %v1149, 0.0
  %1151 = vadd.xlane.f32.xlu0 %v1150
  %v1152 = vpop.xlane.xlu0 %1151
  %v1153 = vmul.f32 %v1152, %v313
  %v1154 = vadd.f32 %v1153, 1e-06
  %v1155 = vrsqrt.pop %v1154
  %v1156 = vmul.f32 %v1148, %v1155
  %v1158 = vlaneseq
  %v1159 = vshrl.u32 %v1158, 7
  %v1160 = vsub.s32 0, %v1159
  %v1161 = vrot.slane %v1142, %v1160
  %v1163 = vmul.f32 %v1156, %v1161
  %v1165 = vlaneseq
  %v1166 = vshrl.u32 %v1165, 7
  %v1167 = vsub.s32 0, %v1166
  %v1168 = vrot.slane %v1143, %v1167
  %v1170 = vadd.f32 %v1163, %v1168
  %v1171 = vpack.c.bf16 %v1170, %v1170
  %v1172 = vld [vmem:[%s16] sm:$0xf]
  %v1173 = vld [vmem:[%s16 + $0x4] sm:$0xf]
  %v1174 = vld [vmem:[%s16 + $0x8] sm:$0xf]
  %v1175 = vld [vmem:[%s16 + $0xc] sm:$0xf]
  %v1176 = vld [vmem:[%s16 + $0x10] sm:$0xf]
  %v1177 = vld [vmem:[%s16 + $0x14] sm:$0xf]
  %v1178 = vld [vmem:[%s16 + $0x18] sm:$0xf]
  %v1179 = vld [vmem:[%s16 + $0x1c] sm:$0xf]
  %v1180 = vld [vmem:[%s16 + $0x20] sm:$0xf]
  %v1181 = vld [vmem:[%s16 + $0x24] sm:$0xf]
  %v1182 = vld [vmem:[%s16 + $0x28] sm:$0xf]
  %v1183 = vld [vmem:[%s16 + $0x2c] sm:$0xf]
  %v1184 = vld [vmem:[%s16 + $0x30] sm:$0xf]
  %v1185 = vld [vmem:[%s16 + $0x34] sm:$0xf]
  %v1186 = vld [vmem:[%s16 + $0x38] sm:$0xf]
  %v1187 = vld [vmem:[%s16 + $0x3c] sm:$0xf]
  %v1188 = vld [vmem:[%s17] sm:$0x1]
  %v1190 = vlaneseq
  %v1191 = vshrl.u32 %v1190, 7
  %v1192 = vsub.s32 0, %v1191
  %v1193 = vrot.slane %v1188, %v1192
  %v1211 = vunpack.c.l.b16 %v1172
  %v1212 = vunpack.c.l.b16 %v1173
  %v1213 = vunpack.c.l.b16 %v1174
  %v1214 = vunpack.c.l.b16 %v1175
  %v1215 = vunpack.c.l.b16 %v1176
  %v1216 = vunpack.c.l.b16 %v1177
  %v1217 = vunpack.c.l.b16 %v1178
  %v1218 = vunpack.c.l.b16 %v1179
  %v1219 = vunpack.c.l.b16 %v1180
  %v1220 = vunpack.c.l.b16 %v1181
  %v1221 = vunpack.c.l.b16 %v1182
  %v1222 = vunpack.c.l.b16 %v1183
  %v1223 = vunpack.c.l.b16 %v1184
  %v1224 = vunpack.c.l.b16 %v1185
  %v1225 = vunpack.c.l.b16 %v1186
  %v1226 = vunpack.c.l.b16 %v1187
  %v1227 = vpack.c.b16 %v1212, %v1211
  %v1228 = vpack.c.b16 %v1214, %v1213
  %v1229 = vpack.c.b16 %v1216, %v1215
  %v1230 = vpack.c.b16 %v1218, %v1217
  %v1231 = vpack.c.b16 %v1220, %v1219
  %v1232 = vpack.c.b16 %v1222, %v1221
  %v1233 = vpack.c.b16 %v1224, %v1223
  %v1234 = vpack.c.b16 %v1226, %v1225
  %1243 = vmatprep.subr.bf16.mxu0 0
  %1244 = vmatpush1.bf16.msra.mxu0 %v1227
  %1245 = vmatprep.subr.bf16.mxu0 0
  %1246 = vmatpush1.bf16.msra.mxu0 %v1228
  %1247 = vmatprep.subr.bf16.mxu0 0
  %1248 = vmatpush1.bf16.msra.mxu0 %v1229
  %1249 = vmatprep.subr.bf16.mxu0 0
  %1250 = vmatpush1.bf16.msra.mxu0 %v1230
  %1251 = vmatprep.subr.bf16.mxu0 0
  %1252 = vmatpush1.bf16.msra.mxu0 %v1231
  %1253 = vmatprep.subr.bf16.mxu0 0
  %1254 = vmatpush1.bf16.msra.mxu0 %v1232
  %1255 = vmatprep.subr.bf16.mxu0 0
  %1256 = vmatpush1.bf16.msra.mxu0 %v1233
  %1257 = vmatprep.subr.bf16.mxu0 0
  %1258 = vmatpush1.bf16.msra.mxu0 %v1234
  %1259 = vmatprep.subr.bf16.mxu0 0
  %1260 = vmatpush1.bf16.msra.mxu0 0
  %1261 = vmatprep.subr.bf16.mxu0 0
  %1262 = vmatpush1.bf16.msra.mxu0 0
  %1263 = vmatprep.subr.bf16.mxu0 0
  %1264 = vmatpush1.bf16.msra.mxu0 0
  %1265 = vmatprep.subr.bf16.mxu0 0
  %1266 = vmatpush1.bf16.msra.mxu0 0
  %1267 = vmatprep.subr.bf16.mxu0 0
  %1268 = vmatpush1.bf16.msra.mxu0 0
  %1269 = vmatprep.subr.bf16.mxu0 0
  %1270 = vmatpush1.bf16.msra.mxu0 0
  %1271 = vmatprep.subr.bf16.mxu0 0
  %1272 = vmatpush1.bf16.msra.mxu0 0
  %1273 = vmatprep.subr.bf16.mxu0 0
  %1274 = vmatpush1.bf16.msra.mxu0 0
  %1275 = vmatprep.mubr.bf16.mxu0 0
  %1276 = vmatmul.mubr.bf16.gmra.mrb[0].mxu0 %v1171
  %v1277 = vpop.f32.mrb[0].mxu0
  %v1278 = vadd.f32 %v1193, %v1277
  %v1279 = vpop.f32.mrb[0].mxu0
  %v1280 = vpop.f32.mrb[0].mxu0
  %v1281 = vpop.f32.mrb[0].mxu0
  %1282 = vdwg.mxu0
  %v1283 = vsel %vm309, %v1278, -inf
  %1284 = vmax.xlane.f32.xlu0 %v1283
  %v1285 = vpop.xlane.xlu0 %1284
  %v1286 = vsub.f32 %v1278, %v1285
  %v1287 = vmul.f32 %v1286, 1.442695
  %v1288 = vpow.pop %v1287
  %v1289 = vsel %vm309, %v1288, 0.0
  %1290 = vadd.xlane.f32.xlu0 %v1289
  %v1291 = vpop.xlane.xlu0 %1290
  %v1292 = vrcp.pop %v1291
  %v1293 = vmul.f32 %v1288, %v1292
  %1294 = vst [vmem:[%s24] sm:$0x3] %v1293
  %v1295 = vlog2.pop %v1291
  %v1296 = vmul.f32 %v1295, 0.6931472
  %v1297 = vadd.f32 %v1285, %v1296
  %v1298 = vld [vmem:[%s3] sm:$0x3]
  %1299 = vset.pattern.permute.xlu0 0
  %1300 = vperm.xlu0 %1299, %v1298
  %v1301 = vpop.permute.xlu0 %1300
  %vm1302 = vcmp.eq.s32.totalorder %v517, %v1301
  %v1303 = vsel %vm1302, %v1278, 0.0
  %v1304 = vsel %vm309, %v1303, 0.0
  %1305 = vadd.xlane.f32.xlu0 %v1304
  %v1306 = vpop.xlane.xlu0 %1305
  %v1307 = vsub.f32 %v1297, %v1306
  %vm1308 = vcmask 1024
  %1309 = vst.msk [vmem:[%s25] sm:$0x3] %vm1308, %v1307
  %vm1310 = vcmp.ge.f32.partialorder %v1278, %v1285
  %v1311 = vsel %vm1310, %v517, 128
  %v1312 = vsel %vm309, %v1311, 2147483647
  %v1313 = vand.u32 %v1312, 65535
  %v1314 = vshra.s32 %v1312, 16
  %v1315 = vcvt.s32.f32 %v1313
  %v1316 = vcvt.s32.f32 %v1314
  %1317 = vmin.xlane.f32.xlu0 %v1316
  %v1318 = vpop.xlane.xlu0 %1317
  %vm1319 = vcmp.eq.f32.partialorder %v1316, %v1318
  %v1320 = vsel %vm1319, %v1315, inf
  %1321 = vmin.xlane.f32.xlu0 %v1320
  %v1322 = vpop.xlane.xlu0 %1321
  %v1323 = vcvt.f32.s32 %v1322
  %v1324 = vcvt.f32.s32 %v1318
  %v1325 = vshll.u32 %v1324, 16
  %v1326 = vadd.s32 %v1325, %v1323
  %1327 = vst.msk [vmem:[%s26] sm:$0x3] %vm1308, %v1326
  // Predicated region
  $region98: #{forward.6} parent=0 // pred_check
    _
  $region99: #{forward.6} parent=0 // pred_check_branch
    %1329 = sbr.rel (0) target = $region101
  $region100: #{forward.6} parent=0 // pred_region
    _
  $region101: #{forward.6} parent=0 // pred_fallthru
    _
  // Predicated region
  $region102: #{forward.6} parent=0 // pred_check
    _
  $region103: #{forward.6} parent=0 // pred_check_branch
    %1331 = sbr.rel (0) target = $region105
  $region104: #{forward.6} parent=0 // pred_region
    _
  $region105: #{forward.6} parent=0 // pred_fallthru
    _
  // Predicated region
  $region106: #{forward.6} parent=0 // pred_check
    _
  $region107: #{forward.6} parent=0 // pred_check_branch
    %1333 = sbr.rel (0) target = $region109
  $region108: #{forward.6} parent=0 // pred_region
    _
  $region109: #{forward.6} parent=0 // pred_fallthru
    _
  // Predicated region
  $region110: #{forward.6} parent=0 // pred_check
    _
  $region111: #{forward.6} parent=0 // pred_check_branch
    %1335 = sbr.rel (0) target = $region113
  $region112: #{forward.6} parent=0 // pred_region
    _
  $region113: #{forward.6} parent=0 // pred_fallthru
    _
  // Predicated region
  $region114: #{forward.6} parent=0 // pred_check
    _
  $region115: #{forward.6} parent=0 // pred_check_branch
    %1337 = sbr.rel (0) target = $region117
  $region116: #{forward.6} parent=0 // pred_region
    _
  $region117: #{forward.6} parent=0 // pred_fallthru
    _
  // Predicated region
  $region118: #{forward.6} parent=0 // pred_check
    _
  $region119: #{forward.6} parent=0 // pred_check_branch
    %1339 = sbr.rel (0) target = $region121
  $region120: #{forward.6} parent=0 // pred_region
    _
  $region121: #{forward.6} parent=0 // pred_fallthru
    _

</llo_original>
